<compile_context>
chip_gen: v6e
topology: v6e:2x2x1
jax: 0.10.0
libtpu: 0.0.40
codegen_flags: <defaults>
</compile_context>

<pallas_src>
import functools

import jax
import jax.numpy as jnp
import numpy as np
from jax import lax
from jax.experimental import pallas as pl
from jax.experimental.pallas import tpu as pltpu


def _round_up(x, m):
    return ((x + m - 1) // m) * m


# ------------------------------ fused kernel -------------------------------- #

def _rdb_fused_kernel(*refs, C, G0, G, H, W, WPp, PAD, CS):
    """One grid step == one image of the batch.

    refs = [x, mask, w0, b0, ..., w_{C-1}, b_{C-1}, wf, bf, o, feat_scratch]
      x:    (1, G0, H*W)        flattened NCHW input block (f32)
      mask: (1, S)              1.0 at interior (image) positions of padded grid
      w_i:  (G, 9*(G0+i*G))     stacked per-tap conv weights (bf16)
      b_i:  (G, 1)              conv bias (f32)
      wf:   (G0, G0+C*G)        1x1 fusion weights (bf16)
      bf:   (G0, 1)             fusion bias (f32)
      o:    (1, G0, H*W)        flattened NCHW output block (f32)
      feat: (G0+C*G, R)         VMEM feature scratch (bf16), R = S + 2*PAD

    Layout: padded grid has H+2 rows of WPp (128-multiple) lanes; image pixel
    (y, x) lives at buffer index PAD + (y+1)*WPp + x.  Columns >= W and rows
    0 / H+1 are the zero halo; PAD lanes of over-pad on each side keep every
    3x3 tap a static in-range lane offset.
    """
    x_ref, mask_ref = refs[0], refs[1]
    conv_w = [refs[2 + 2 * i] for i in range(C)]
    conv_b = [refs[3 + 2 * i] for i in range(C)]
    wf_ref = refs[2 + 2 * C]
    bf_ref = refs[3 + 2 * C]
    o_ref = refs[4 + 2 * C]
    feat = refs[5 + 2 * C]

    HP2 = H + 2
    S = HP2 * WPp
    R = S + 2 * PAD
    HW = H * W
    ctot = G0 + C * G
    fdt = feat.dtype
    base = PAD + WPp                    # buffer index of image pixel (0, 0)

    # ----- restricted, aligned memsets (no full-scratch zeroing) ----- #
    # Left over-pad for ALL channels (the only over-pad lane ever read for an
    # interior output is PAD-1); aligned, PAD is a multiple of 128.
    feat[:, 0:PAD] = jnp.zeros((ctot, PAD), fdt)
    # Input-channel rows: halo rows/cols + interior (interior overwritten below).
    feat[0:G0, PAD:R] = jnp.zeros((G0, R - PAD), fdt)

    # ----- scatter input rows into the padded layout (aligned row starts) ----- #
    xin = x_ref[0, :, :]                # (G0, H*W) f32, exact residual source
    for y in range(H):
        dst = base + y * WPp            # multiple of 128
        feat[0:G0, dst:dst + W] = xin[:, y * W:(y + 1) * W].astype(fdt)

    mask_all = mask_ref[...]            # (1, S) f32

    # Static lane-chunking of the padded spatial axis (S and CS are 128-mult.).
    chunks = [(s0, min(CS, S - s0)) for s0 in range(0, S, CS)]

    # ----- dense conv layers: one fat MXU dot per (layer, chunk) ----- #
    for i in range(C):
        cin = G0 + i * G
        wmat = conv_w[i][...]           # (G, 9*cin) bf16
        bias = conv_b[i][...]           # (G, 1)     f32
        row0 = G0 + i * G
        for (s0, sz) in chunks:
            # im2col stack of the 9 shifted tap slabs -> (9*cin, sz)
            slabs = []
            for t in range(9):
                off = (t // 3 - 1) * WPp + (t % 3 - 1)
                c0 = PAD + s0 + off
                slabs.append(feat[0:cin, c0:c0 + sz])
            taps = jnp.concatenate(slabs, axis=0)
            acc = jnp.dot(wmat, taps, preferred_element_type=jnp.float32) + bias
            acc = jnp.maximum(acc, 0.0)
            # Select (not multiply): exact zeros at halo positions even if the
            # un-zeroed over-pad contributed garbage there.
            msk = mask_all[:, s0:s0 + sz] > 0.0
            acc = jnp.where(msk, acc, 0.0)
            feat[row0:row0 + G, PAD + s0:PAD + s0 + sz] = acc.astype(fdt)

    # ----- 1x1 fusion over interior positions only + residual, ONE store ----- #
    wfm = wf_ref[...]                   # (G0, ctot) bf16
    bfv = bf_ref[...]                   # (G0, 1)    f32
    interior = jnp.concatenate(
        [feat[0:ctot, base + y * WPp: base + y * WPp + W] for y in range(H)],
        axis=1)                         # (ctot, H*W) bf16, lane-dense
    fus = jnp.dot(wfm, interior, preferred_element_type=jnp.float32) + bfv
    o_ref[0, :, :] = (fus + xin).astype(o_ref.dtype)


# --------------------------------- wrapper ---------------------------------- #

def res_dense_block(x_nchw, params, *, mxu_dtype=jnp.bfloat16):
    """Matches ResDenseBlock.forward. Input/Output are NCHW like PyTorch."""
    N, G0, H, W = x_nchw.shape
    convs = params["convs"]
    C = len(convs)
    G = convs[0][0].shape[0]
    ctot = G0 + C * G

    WPp = _round_up(W + 1, 128)         # padded row stride, 128-aligned
    HP2 = H + 2
    S = HP2 * WPp                       # multiple of 128
    PAD = WPp + 128                     # over-pad, 128-aligned, >= WPp+1
    R = S + 2 * PAD
    HW = H * W
    CS = min(S, 2048)                   # lane-chunk (both multiples of 128)

    # Interior mask of the padded flat grid (compile-time constant).
    yy, xx = np.meshgrid(np.arange(HP2), np.arange(WPp), indexing="ij")
    mask = ((yy >= 1) & (yy <= H) & (xx < W)).astype(np.float32)
    mask = jnp.asarray(mask.reshape(1, S))

    x_flat = x_nchw.reshape(N, G0, HW)  # free: same contiguous HBM layout

    inputs = [x_flat, mask]
    in_specs = [
        pl.BlockSpec((1, G0, HW), lambda i: (i, 0, 0)),
        pl.BlockSpec((1, S), lambda i: (0, 0)),
    ]

    flops = 0
    param_bytes = 0
    for (w, b) in convs:
        cin = w.shape[1]
        # PyTorch (out, in, 3, 3) -> (G, 9*cin): [g, (ky*3+kx)*cin + j] = w[g,j,ky,kx]
        wflat = jnp.transpose(w, (0, 2, 3, 1)).reshape(G, 9 * cin).astype(mxu_dtype)
        inputs += [wflat, b.reshape(G, 1).astype(jnp.float32)]
        in_specs += [
            pl.BlockSpec((G, 9 * cin), lambda i: (0, 0)),
            pl.BlockSpec((G, 1), lambda i: (0, 0)),
        ]
        flops += 2 * 9 * G * cin * HW
        param_bytes += int(w.size) * 2 + int(b.size) * 4

    wf, bf = params["fusion"]
    inputs += [wf.astype(mxu_dtype), bf.reshape(G0, 1).astype(jnp.float32)]
    in_specs += [
        pl.BlockSpec((G0, ctot), lambda i: (0, 0)),
        pl.BlockSpec((G0, 1), lambda i: (0, 0)),
    ]
    flops += 2 * G0 * ctot * HW
    flops *= N
    param_bytes += int(wf.size) * 2 + int(bf.size) * 4
    io_bytes = 2 * N * G0 * HW * 4

    kern = functools.partial(_rdb_fused_kernel, C=C, G0=G0, G=G, H=H, W=W,
                             WPp=WPp, PAD=PAD, CS=CS)
    out_flat = pl.pallas_call(
        kern,
        out_shape=jax.ShapeDtypeStruct((N, G0, HW), x_nchw.dtype),
        grid=(N,),
        in_specs=in_specs,
        out_specs=pl.BlockSpec((1, G0, HW), lambda i: (i, 0, 0)),
        scratch_shapes=[pltpu.VMEM((ctot, R), mxu_dtype)],
        compiler_params=pltpu.CompilerParams(
            dimension_semantics=("parallel",),
            # Headroom-conscious cap (fits v7x's 64 MiB per-core VMEM too).
            vmem_limit_bytes=48 * 1024 * 1024,
        ),
        cost_estimate=pl.CostEstimate(
            flops=int(flops), transcendentals=0,
            bytes_accessed=int(io_bytes + param_bytes)),
    )(*inputs)
    return out_flat.reshape(N, G0, H, W)


# ------------------------------- parameters ---------------------------------- #

def init_params(key, G0, G, C):
    """Deterministic synthetic parameters (PyTorch-shaped: OIHW conv weights)."""
    params = {"convs": [], "fusion": None}
    for i in range(C):
        in_c = G0 + i * G
        key, kw, kb = jax.random.split(key, 3)
        w = jax.random.normal(kw, (G, in_c, 3, 3), jnp.float32) * 0.05
        b = jax.random.normal(kb, (G,), jnp.float32) * 0.05
        params["convs"].append((w, b))
    in_c = G0 + C * G
    key, kw, kb = jax.random.split(key, 3)
    wf = jax.random.normal(kw, (G0, in_c), jnp.float32) * 0.05
    bf = jax.random.normal(kb, (G0,), jnp.float32) * 0.05
    params["fusion"] = (wf, bf)
    return params


# ------------------------------ pure-JAX ref --------------------------------- #

def res_dense_block_ref(x, params):
    res = [x]
    for (w, b) in params["convs"]:
        llf = jnp.concatenate(res, axis=1)
        y = lax.conv_general_dilated(
            llf, w, window_strides=(1, 1), padding=((1, 1), (1, 1)),
            dimension_numbers=("NCHW", "OIHW", "NCHW"))
        res.append(jnp.maximum(y + b.reshape(1, -1, 1, 1), 0.0))
    llf = jnp.concatenate(res, axis=1)
    wf, bf = params["fusion"]
    out = jnp.einsum("nchw,oc->nohw", llf, wf) + bf.reshape(1, -1, 1, 1)
    return out + x


# ----------------------------------- main ------------------------------------ #

if __name__ == "__main__":
    # Small shapes consistent with the module (scaled-down G0/G/C).
    G0, G, C = 16, 8, 3
    N, H, W = 2, 8, 8

    key = jax.random.PRNGKey(0)
    key, kx = jax.random.split(key)
    x = jax.random.normal(kx, (N, G0, H, W), jnp.float32)   # NCHW like PyTorch

    params = init_params(key, G0, G, C)

    out = jax.block_until_ready(res_dense_block(x, params))

    ref = res_dense_block_ref(x, params)
    # bf16 MXU operands with f32 accumulation -> slightly loosened tolerance.
    np.testing.assert_allclose(np.asarray(out), np.asarray(ref),
                               rtol=5e-2, atol=5e-2)
    assert out.shape == (N, G0, H, W)

    print("KERNEL_OK")
</pallas_src>

<mosaic_0001>
module attributes {stable_mosaic.version = 11 : i64} {
  func.func @_rdb_fused_kernel(%arg0: i32, %arg1: memref<1x16x64xf32, #tpu.memory_space<vmem>>, %arg2: memref<1x1280xf32, #tpu.memory_space<vmem>>, %arg3: memref<8x144xbf16, #tpu.memory_space<vmem>>, %arg4: memref<8x1xf32, #tpu.memory_space<vmem>>, %arg5: memref<8x216xbf16, #tpu.memory_space<vmem>>, %arg6: memref<8x1xf32, #tpu.memory_space<vmem>>, %arg7: memref<8x288xbf16, #tpu.memory_space<vmem>>, %arg8: memref<8x1xf32, #tpu.memory_space<vmem>>, %arg9: memref<16x40xbf16, #tpu.memory_space<vmem>>, %arg10: memref<16x1xf32, #tpu.memory_space<vmem>>, %arg11: memref<1x16x64xf32, #tpu.memory_space<vmem>>, %arg12: memref<40x1792xbf16, #tpu.memory_space<vmem>>) attributes {dimension_semantics = [#tpu.dimension_semantics<parallel>], iteration_bounds = array<i64: 2>, scalar_prefetch = 0 : i64, scratch_operands = 1 : i64, tpu.core_type = #tpu.core_type<tc>, window_params = [{transform_indices = @transform_0, window_bounds = array<i64: 1, 16, 64>}, {pipeline_mode = #tpu.pipeline_mode<synchronous>, transform_indices = @transform_1, window_bounds = array<i64: 1, 1280>}, {pipeline_mode = #tpu.pipeline_mode<synchronous>, transform_indices = @transform_2, window_bounds = array<i64: 8, 144>}, {pipeline_mode = #tpu.pipeline_mode<synchronous>, transform_indices = @transform_3, window_bounds = array<i64: 8, 1>}, {pipeline_mode = #tpu.pipeline_mode<synchronous>, transform_indices = @transform_4, window_bounds = array<i64: 8, 216>}, {pipeline_mode = #tpu.pipeline_mode<synchronous>, transform_indices = @transform_5, window_bounds = array<i64: 8, 1>}, {pipeline_mode = #tpu.pipeline_mode<synchronous>, transform_indices = @transform_6, window_bounds = array<i64: 8, 288>}, {pipeline_mode = #tpu.pipeline_mode<synchronous>, transform_indices = @transform_7, window_bounds = array<i64: 8, 1>}, {pipeline_mode = #tpu.pipeline_mode<synchronous>, transform_indices = @transform_8, window_bounds = array<i64: 16, 40>}, {pipeline_mode = #tpu.pipeline_mode<synchronous>, transform_indices = @transform_9, window_bounds = array<i64: 16, 1>}, {transform_indices = @transform_10, window_bounds = array<i64: 1, 16, 64>}]} {
    %cst = arith.constant 0.000000e+00 : bf16
    %0 = vector.broadcast %cst : bf16 to vector<40x256xbf16>
    %c0 = arith.constant 0 : index
    %c0_0 = arith.constant 0 : index
    %1 = vector.load %arg12[%c0, %c0_0] : memref<40x1792xbf16, #tpu.memory_space<vmem>>, vector<40x256xbf16>
    tpu.vector_store %arg12[%c0, %c0_0], %0 {strides = array<i32>} : memref<40x1792xbf16, #tpu.memory_space<vmem>>, vector<40x256xbf16>,
    %cst_1 = arith.constant 0.000000e+00 : bf16
    %2 = vector.broadcast %cst_1 : bf16 to vector<16x1536xbf16>
    %c0_2 = arith.constant 0 : index
    %c256 = arith.constant 256 : index
    %3 = vector.load %arg12[%c0_2, %c256] : memref<40x1792xbf16, #tpu.memory_space<vmem>>, vector<16x1536xbf16>
    tpu.vector_store %arg12[%c0_2, %c256], %2 {strides = array<i32>} : memref<40x1792xbf16, #tpu.memory_space<vmem>>, vector<16x1536xbf16>,
    %c0_3 = arith.constant 0 : index
    %c0_4 = arith.constant 0 : index
    %c0_5 = arith.constant 0 : index
    %4 = vector.load %arg1[%c0_3, %c0_4, %c0_5] : memref<1x16x64xf32, #tpu.memory_space<vmem>>, vector<1x16x64xf32>
    %5 = vector.shape_cast %4 : vector<1x16x64xf32> to vector<16x64xf32>
    %6 = vector.extract_strided_slice %5 {offsets = [0, 0], sizes = [16, 8], strides = [1, 1]} : vector<16x64xf32> to vector<16x8xf32>
    %7 = arith.truncf %6 : vector<16x8xf32> to vector<16x8xbf16>
    %c0_6 = arith.constant 0 : index
    %c384 = arith.constant 384 : index
    %8 = vector.load %arg12[%c0_6, %c384] : memref<40x1792xbf16, #tpu.memory_space<vmem>>, vector<16x8xbf16>
    tpu.vector_store %arg12[%c0_6, %c384], %7 {strides = array<i32>} : memref<40x1792xbf16, #tpu.memory_space<vmem>>, vector<16x8xbf16>,
    %9 = vector.extract_strided_slice %5 {offsets = [0, 8], sizes = [16, 8], strides = [1, 1]} : vector<16x64xf32> to vector<16x8xf32>
    %10 = arith.truncf %9 : vector<16x8xf32> to vector<16x8xbf16>
    %c0_7 = arith.constant 0 : index
    %c512 = arith.constant 512 : index
    %11 = vector.load %arg12[%c0_7, %c512] : memref<40x1792xbf16, #tpu.memory_space<vmem>>, vector<16x8xbf16>
    tpu.vector_store %arg12[%c0_7, %c512], %10 {strides = array<i32>} : memref<40x1792xbf16, #tpu.memory_space<vmem>>, vector<16x8xbf16>,
    %12 = vector.extract_strided_slice %5 {offsets = [0, 16], sizes = [16, 8], strides = [1, 1]} : vector<16x64xf32> to vector<16x8xf32>
    %13 = arith.truncf %12 : vector<16x8xf32> to vector<16x8xbf16>
    %c0_8 = arith.constant 0 : index
    %c640 = arith.constant 640 : index
    %14 = vector.load %arg12[%c0_8, %c640] : memref<40x1792xbf16, #tpu.memory_space<vmem>>, vector<16x8xbf16>
    tpu.vector_store %arg12[%c0_8, %c640], %13 {strides = array<i32>} : memref<40x1792xbf16, #tpu.memory_space<vmem>>, vector<16x8xbf16>,
    %15 = vector.extract_strided_slice %5 {offsets = [0, 24], sizes = [16, 8], strides = [1, 1]} : vector<16x64xf32> to vector<16x8xf32>
    %16 = arith.truncf %15 : vector<16x8xf32> to vector<16x8xbf16>
    %c0_9 = arith.constant 0 : index
    %c768 = arith.constant 768 : index
    %17 = vector.load %arg12[%c0_9, %c768] : memref<40x1792xbf16, #tpu.memory_space<vmem>>, vector<16x8xbf16>
    tpu.vector_store %arg12[%c0_9, %c768], %16 {strides = array<i32>} : memref<40x1792xbf16, #tpu.memory_space<vmem>>, vector<16x8xbf16>,
    %18 = vector.extract_strided_slice %5 {offsets = [0, 32], sizes = [16, 8], strides = [1, 1]} : vector<16x64xf32> to vector<16x8xf32>
    %19 = arith.truncf %18 : vector<16x8xf32> to vector<16x8xbf16>
    %c0_10 = arith.constant 0 : index
    %c896 = arith.constant 896 : index
    %20 = vector.load %arg12[%c0_10, %c896] : memref<40x1792xbf16, #tpu.memory_space<vmem>>, vector<16x8xbf16>
    tpu.vector_store %arg12[%c0_10, %c896], %19 {strides = array<i32>} : memref<40x1792xbf16, #tpu.memory_space<vmem>>, vector<16x8xbf16>,
    %21 = vector.extract_strided_slice %5 {offsets = [0, 40], sizes = [16, 8], strides = [1, 1]} : vector<16x64xf32> to vector<16x8xf32>
    %22 = arith.truncf %21 : vector<16x8xf32> to vector<16x8xbf16>
    %c0_11 = arith.constant 0 : index
    %c1024 = arith.constant 1024 : index
    %23 = vector.load %arg12[%c0_11, %c1024] : memref<40x1792xbf16, #tpu.memory_space<vmem>>, vector<16x8xbf16>
    tpu.vector_store %arg12[%c0_11, %c1024], %22 {strides = array<i32>} : memref<40x1792xbf16, #tpu.memory_space<vmem>>, vector<16x8xbf16>,
    %24 = vector.extract_strided_slice %5 {offsets = [0, 48], sizes = [16, 8], strides = [1, 1]} : vector<16x64xf32> to vector<16x8xf32>
    %25 = arith.truncf %24 : vector<16x8xf32> to vector<16x8xbf16>
    %c0_12 = arith.constant 0 : index
    %c1152 = arith.constant 1152 : index
    %26 = vector.load %arg12[%c0_12, %c1152] : memref<40x1792xbf16, #tpu.memory_space<vmem>>, vector<16x8xbf16>
    tpu.vector_store %arg12[%c0_12, %c1152], %25 {strides = array<i32>} : memref<40x1792xbf16, #tpu.memory_space<vmem>>, vector<16x8xbf16>,
    %27 = vector.extract_strided_slice %5 {offsets = [0, 56], sizes = [16, 8], strides = [1, 1]} : vector<16x64xf32> to vector<16x8xf32>
    %28 = arith.truncf %27 : vector<16x8xf32> to vector<16x8xbf16>
    %c0_13 = arith.constant 0 : index
    %c1280 = arith.constant 1280 : index
    %29 = vector.load %arg12[%c0_13, %c1280] : memref<40x1792xbf16, #tpu.memory_space<vmem>>, vector<16x8xbf16>
    tpu.vector_store %arg12[%c0_13, %c1280], %28 {strides = array<i32>} : memref<40x1792xbf16, #tpu.memory_space<vmem>>, vector<16x8xbf16>,
    %c0_14 = arith.constant 0 : index
    %c0_15 = arith.constant 0 : index
    %30 = vector.load %arg2[%c0_14, %c0_15] : memref<1x1280xf32, #tpu.memory_space<vmem>>, vector<1x1280xf32>
    %c0_16 = arith.constant 0 : index
    %c0_17 = arith.constant 0 : index
    %31 = vector.load %arg3[%c0_16, %c0_17] : memref<8x144xbf16, #tpu.memory_space<vmem>>, vector<8x144xbf16>
    %c0_18 = arith.constant 0 : index
    %c0_19 = arith.constant 0 : index
    %32 = vector.load %arg4[%c0_18, %c0_19] : memref<8x1xf32, #tpu.memory_space<vmem>>, vector<8x1xf32>
    %c0_20 = arith.constant 0 : index
    %c127 = arith.constant 127 : index
    %33 = vector.load %arg12[%c0_20, %c127] : memref<40x1792xbf16, #tpu.memory_space<vmem>>, vector<16x1280xbf16>
    %c0_21 = arith.constant 0 : index
    %c128 = arith.constant 128 : index
    %34 = vector.load %arg12[%c0_21, %c128] : memref<40x1792xbf16, #tpu.memory_space<vmem>>, vector<16x1280xbf16>
    %c0_22 = arith.constant 0 : index
    %c129 = arith.constant 129 : index
    %35 = vector.load %arg12[%c0_22, %c129] : memref<40x1792xbf16, #tpu.memory_space<vmem>>, vector<16x1280xbf16>
    %c0_23 = arith.constant 0 : index
    %c255 = arith.constant 255 : index
    %36 = vector.load %arg12[%c0_23, %c255] : memref<40x1792xbf16, #tpu.memory_space<vmem>>, vector<16x1280xbf16>
    %c0_24 = arith.constant 0 : index
    %c256_25 = arith.constant 256 : index
    %37 = vector.load %arg12[%c0_24, %c256_25] : memref<40x1792xbf16, #tpu.memory_space<vmem>>, vector<16x1280xbf16>
    %c0_26 = arith.constant 0 : index
    %c257 = arith.constant 257 : index
    %38 = vector.load %arg12[%c0_26, %c257] : memref<40x1792xbf16, #tpu.memory_space<vmem>>, vector<16x1280xbf16>
    %c0_27 = arith.constant 0 : index
    %c383 = arith.constant 383 : index
    %39 = vector.load %arg12[%c0_27, %c383] : memref<40x1792xbf16, #tpu.memory_space<vmem>>, vector<16x1280xbf16>
    %c0_28 = arith.constant 0 : index
    %c384_29 = arith.constant 384 : index
    %40 = vector.load %arg12[%c0_28, %c384_29] : memref<40x1792xbf16, #tpu.memory_space<vmem>>, vector<16x1280xbf16>
    %c0_30 = arith.constant 0 : index
    %c385 = arith.constant 385 : index
    %41 = vector.load %arg12[%c0_30, %c385] : memref<40x1792xbf16, #tpu.memory_space<vmem>>, vector<16x1280xbf16>
    %42 = tpu.concatenate %33, %34, %35, %36, %37, %38, %39, %40, %41 in 0 : vector<16x1280xbf16>, vector<16x1280xbf16>, vector<16x1280xbf16>, vector<16x1280xbf16>, vector<16x1280xbf16>, vector<16x1280xbf16>, vector<16x1280xbf16>, vector<16x1280xbf16>, vector<16x1280xbf16> -> vector<144x1280xbf16>
    %cst_31 = arith.constant dense<0.000000e+00> : vector<8x1280xf32>
    %43 = tpu.matmul %31, %42, %cst_31 {dimension_numbers = #tpu.dot_dimension_numbers<[1], [0], [0], [1], [0, 0, 1, 1], [], []>} : vector<8x144xbf16>, vector<144x1280xbf16>, vector<8x1280xf32> -> vector<8x1280xf32>
    %44 = vector.broadcast %32 : vector<8x1xf32> to vector<8x1280xf32>
    %45 = arith.addf %43, %44 : vector<8x1280xf32>
    %cst_32 = arith.constant 0.000000e+00 : f32
    %46 = vector.broadcast %cst_32 : f32 to vector<8x1280xf32>
    %47 = arith.maximumf %45, %46 : vector<8x1280xf32>
    %cst_33 = arith.constant 0.000000e+00 : f32
    %48 = vector.broadcast %cst_33 : f32 to vector<1x1280xf32>
    %49 = arith.cmpf ogt, %30, %48 : vector<1x1280xf32>
    %cst_34 = arith.constant 0.000000e+00 : f32
    %50 = vector.shape_cast %49 : vector<1x1280xi1> to vector<1x1280xi1>
    %51 = vector.broadcast %50 : vector<1x1280xi1> to vector<8x1280xi1>
    %52 = vector.broadcast %cst_34 : f32 to vector<8x1280xf32>
    %53 = arith.select %51, %47, %52 : vector<8x1280xi1>, vector<8x1280xf32>
    %54 = arith.truncf %53 : vector<8x1280xf32> to vector<8x1280xbf16>
    %c16 = arith.constant 16 : index
    %c256_35 = arith.constant 256 : index
    %55 = vector.load %arg12[%c16, %c256_35] : memref<40x1792xbf16, #tpu.memory_space<vmem>>, vector<8x1280xbf16>
    tpu.vector_store %arg12[%c16, %c256_35], %54 {strides = array<i32>} : memref<40x1792xbf16, #tpu.memory_space<vmem>>, vector<8x1280xbf16>,
    %c0_36 = arith.constant 0 : index
    %c0_37 = arith.constant 0 : index
    %56 = vector.load %arg5[%c0_36, %c0_37] : memref<8x216xbf16, #tpu.memory_space<vmem>>, vector<8x216xbf16>
    %c0_38 = arith.constant 0 : index
    %c0_39 = arith.constant 0 : index
    %57 = vector.load %arg6[%c0_38, %c0_39] : memref<8x1xf32, #tpu.memory_space<vmem>>, vector<8x1xf32>
    %c0_40 = arith.constant 0 : index
    %c127_41 = arith.constant 127 : index
    %58 = vector.load %arg12[%c0_40, %c127_41] : memref<40x1792xbf16, #tpu.memory_space<vmem>>, vector<24x1280xbf16>
    %c0_42 = arith.constant 0 : index
    %c128_43 = arith.constant 128 : index
    %59 = vector.load %arg12[%c0_42, %c128_43] : memref<40x1792xbf16, #tpu.memory_space<vmem>>, vector<24x1280xbf16>
    %c0_44 = arith.constant 0 : index
    %c129_45 = arith.constant 129 : index
    %60 = vector.load %arg12[%c0_44, %c129_45] : memref<40x1792xbf16, #tpu.memory_space<vmem>>, vector<24x1280xbf16>
    %c0_46 = arith.constant 0 : index
    %c255_47 = arith.constant 255 : index
    %61 = vector.load %arg12[%c0_46, %c255_47] : memref<40x1792xbf16, #tpu.memory_space<vmem>>, vector<24x1280xbf16>
    %c0_48 = arith.constant 0 : index
    %c256_49 = arith.constant 256 : index
    %62 = vector.load %arg12[%c0_48, %c256_49] : memref<40x1792xbf16, #tpu.memory_space<vmem>>, vector<24x1280xbf16>
    %c0_50 = arith.constant 0 : index
    %c257_51 = arith.constant 257 : index
    %63 = vector.load %arg12[%c0_50, %c257_51] : memref<40x1792xbf16, #tpu.memory_space<vmem>>, vector<24x1280xbf16>
    %c0_52 = arith.constant 0 : index
    %c383_53 = arith.constant 383 : index
    %64 = vector.load %arg12[%c0_52, %c383_53] : memref<40x1792xbf16, #tpu.memory_space<vmem>>, vector<24x1280xbf16>
    %c0_54 = arith.constant 0 : index
    %c384_55 = arith.constant 384 : index
    %65 = vector.load %arg12[%c0_54, %c384_55] : memref<40x1792xbf16, #tpu.memory_space<vmem>>, vector<24x1280xbf16>
    %c0_56 = arith.constant 0 : index
    %c385_57 = arith.constant 385 : index
    %66 = vector.load %arg12[%c0_56, %c385_57] : memref<40x1792xbf16, #tpu.memory_space<vmem>>, vector<24x1280xbf16>
    %67 = tpu.concatenate %58, %59, %60, %61, %62, %63, %64, %65, %66 in 0 : vector<24x1280xbf16>, vector<24x1280xbf16>, vector<24x1280xbf16>, vector<24x1280xbf16>, vector<24x1280xbf16>, vector<24x1280xbf16>, vector<24x1280xbf16>, vector<24x1280xbf16>, vector<24x1280xbf16> -> vector<216x1280xbf16>
    %cst_58 = arith.constant dense<0.000000e+00> : vector<8x1280xf32>
    %68 = tpu.matmul %56, %67, %cst_58 {dimension_numbers = #tpu.dot_dimension_numbers<[1], [0], [0], [1], [0, 0, 1, 1], [], []>} : vector<8x216xbf16>, vector<216x1280xbf16>, vector<8x1280xf32> -> vector<8x1280xf32>
    %69 = vector.broadcast %57 : vector<8x1xf32> to vector<8x1280xf32>
    %70 = arith.addf %68, %69 : vector<8x1280xf32>
    %cst_59 = arith.constant 0.000000e+00 : f32
    %71 = vector.broadcast %cst_59 : f32 to vector<8x1280xf32>
    %72 = arith.maximumf %70, %71 : vector<8x1280xf32>
    %cst_60 = arith.constant 0.000000e+00 : f32
    %73 = vector.broadcast %cst_60 : f32 to vector<1x1280xf32>
    %74 = arith.cmpf ogt, %30, %73 : vector<1x1280xf32>
    %cst_61 = arith.constant 0.000000e+00 : f32
    %75 = vector.shape_cast %74 : vector<1x1280xi1> to vector<1x1280xi1>
    %76 = vector.broadcast %75 : vector<1x1280xi1> to vector<8x1280xi1>
    %77 = vector.broadcast %cst_61 : f32 to vector<8x1280xf32>
    %78 = arith.select %76, %72, %77 : vector<8x1280xi1>, vector<8x1280xf32>
    %79 = arith.truncf %78 : vector<8x1280xf32> to vector<8x1280xbf16>
    %c24 = arith.constant 24 : index
    %c256_62 = arith.constant 256 : index
    %80 = vector.load %arg12[%c24, %c256_62] : memref<40x1792xbf16, #tpu.memory_space<vmem>>, vector<8x1280xbf16>
    tpu.vector_store %arg12[%c24, %c256_62], %79 {strides = array<i32>} : memref<40x1792xbf16, #tpu.memory_space<vmem>>, vector<8x1280xbf16>,
    %c0_63 = arith.constant 0 : index
    %c0_64 = arith.constant 0 : index
    %81 = vector.load %arg7[%c0_63, %c0_64] : memref<8x288xbf16, #tpu.memory_space<vmem>>, vector<8x288xbf16>
    %c0_65 = arith.constant 0 : index
    %c0_66 = arith.constant 0 : index
    %82 = vector.load %arg8[%c0_65, %c0_66] : memref<8x1xf32, #tpu.memory_space<vmem>>, vector<8x1xf32>
    %c0_67 = arith.constant 0 : index
    %c127_68 = arith.constant 127 : index
    %83 = vector.load %arg12[%c0_67, %c127_68] : memref<40x1792xbf16, #tpu.memory_space<vmem>>, vector<32x1280xbf16>
    %c0_69 = arith.constant 0 : index
    %c128_70 = arith.constant 128 : index
    %84 = vector.load %arg12[%c0_69, %c128_70] : memref<40x1792xbf16, #tpu.memory_space<vmem>>, vector<32x1280xbf16>
    %c0_71 = arith.constant 0 : index
    %c129_72 = arith.constant 129 : index
    %85 = vector.load %arg12[%c0_71, %c129_72] : memref<40x1792xbf16, #tpu.memory_space<vmem>>, vector<32x1280xbf16>
    %c0_73 = arith.constant 0 : index
    %c255_74 = arith.constant 255 : index
    %86 = vector.load %arg12[%c0_73, %c255_74] : memref<40x1792xbf16, #tpu.memory_space<vmem>>, vector<32x1280xbf16>
    %c0_75 = arith.constant 0 : index
    %c256_76 = arith.constant 256 : index
    %87 = vector.load %arg12[%c0_75, %c256_76] : memref<40x1792xbf16, #tpu.memory_space<vmem>>, vector<32x1280xbf16>
    %c0_77 = arith.constant 0 : index
    %c257_78 = arith.constant 257 : index
    %88 = vector.load %arg12[%c0_77, %c257_78] : memref<40x1792xbf16, #tpu.memory_space<vmem>>, vector<32x1280xbf16>
    %c0_79 = arith.constant 0 : index
    %c383_80 = arith.constant 383 : index
    %89 = vector.load %arg12[%c0_79, %c383_80] : memref<40x1792xbf16, #tpu.memory_space<vmem>>, vector<32x1280xbf16>
    %c0_81 = arith.constant 0 : index
    %c384_82 = arith.constant 384 : index
    %90 = vector.load %arg12[%c0_81, %c384_82] : memref<40x1792xbf16, #tpu.memory_space<vmem>>, vector<32x1280xbf16>
    %c0_83 = arith.constant 0 : index
    %c385_84 = arith.constant 385 : index
    %91 = vector.load %arg12[%c0_83, %c385_84] : memref<40x1792xbf16, #tpu.memory_space<vmem>>, vector<32x1280xbf16>
    %92 = tpu.concatenate %83, %84, %85, %86, %87, %88, %89, %90, %91 in 0 : vector<32x1280xbf16>, vector<32x1280xbf16>, vector<32x1280xbf16>, vector<32x1280xbf16>, vector<32x1280xbf16>, vector<32x1280xbf16>, vector<32x1280xbf16>, vector<32x1280xbf16>, vector<32x1280xbf16> -> vector<288x1280xbf16>
    %cst_85 = arith.constant dense<0.000000e+00> : vector<8x1280xf32>
    %93 = tpu.matmul %81, %92, %cst_85 {dimension_numbers = #tpu.dot_dimension_numbers<[1], [0], [0], [1], [0, 0, 1, 1], [], []>} : vector<8x288xbf16>, vector<288x1280xbf16>, vector<8x1280xf32> -> vector<8x1280xf32>
    %94 = vector.broadcast %82 : vector<8x1xf32> to vector<8x1280xf32>
    %95 = arith.addf %93, %94 : vector<8x1280xf32>
    %cst_86 = arith.constant 0.000000e+00 : f32
    %96 = vector.broadcast %cst_86 : f32 to vector<8x1280xf32>
    %97 = arith.maximumf %95, %96 : vector<8x1280xf32>
    %cst_87 = arith.constant 0.000000e+00 : f32
    %98 = vector.broadcast %cst_87 : f32 to vector<1x1280xf32>
    %99 = arith.cmpf ogt, %30, %98 : vector<1x1280xf32>
    %cst_88 = arith.constant 0.000000e+00 : f32
    %100 = vector.shape_cast %99 : vector<1x1280xi1> to vector<1x1280xi1>
    %101 = vector.broadcast %100 : vector<1x1280xi1> to vector<8x1280xi1>
    %102 = vector.broadcast %cst_88 : f32 to vector<8x1280xf32>
    %103 = arith.select %101, %97, %102 : vector<8x1280xi1>, vector<8x1280xf32>
    %104 = arith.truncf %103 : vector<8x1280xf32> to vector<8x1280xbf16>
    %c32 = arith.constant 32 : index
    %c256_89 = arith.constant 256 : index
    %105 = vector.load %arg12[%c32, %c256_89] : memref<40x1792xbf16, #tpu.memory_space<vmem>>, vector<8x1280xbf16>
    tpu.vector_store %arg12[%c32, %c256_89], %104 {strides = array<i32>} : memref<40x1792xbf16, #tpu.memory_space<vmem>>, vector<8x1280xbf16>,
    %c0_90 = arith.constant 0 : index
    %c0_91 = arith.constant 0 : index
    %106 = vector.load %arg9[%c0_90, %c0_91] : memref<16x40xbf16, #tpu.memory_space<vmem>>, vector<16x40xbf16>
    %c0_92 = arith.constant 0 : index
    %c0_93 = arith.constant 0 : index
    %107 = vector.load %arg10[%c0_92, %c0_93] : memref<16x1xf32, #tpu.memory_space<vmem>>, vector<16x1xf32>
    %c0_94 = arith.constant 0 : index
    %c384_95 = arith.constant 384 : index
    %108 = vector.load %arg12[%c0_94, %c384_95] : memref<40x1792xbf16, #tpu.memory_space<vmem>>, vector<40x8xbf16>
    %c0_96 = arith.constant 0 : index
    %c512_97 = arith.constant 512 : index
    %109 = vector.load %arg12[%c0_96, %c512_97] : memref<40x1792xbf16, #tpu.memory_space<vmem>>, vector<40x8xbf16>
    %c0_98 = arith.constant 0 : index
    %c640_99 = arith.constant 640 : index
    %110 = vector.load %arg12[%c0_98, %c640_99] : memref<40x1792xbf16, #tpu.memory_space<vmem>>, vector<40x8xbf16>
    %c0_100 = arith.constant 0 : index
    %c768_101 = arith.constant 768 : index
    %111 = vector.load %arg12[%c0_100, %c768_101] : memref<40x1792xbf16, #tpu.memory_space<vmem>>, vector<40x8xbf16>
    %c0_102 = arith.constant 0 : index
    %c896_103 = arith.constant 896 : index
    %112 = vector.load %arg12[%c0_102, %c896_103] : memref<40x1792xbf16, #tpu.memory_space<vmem>>, vector<40x8xbf16>
    %c0_104 = arith.constant 0 : index
    %c1024_105 = arith.constant 1024 : index
    %113 = vector.load %arg12[%c0_104, %c1024_105] : memref<40x1792xbf16, #tpu.memory_space<vmem>>, vector<40x8xbf16>
    %c0_106 = arith.constant 0 : index
    %c1152_107 = arith.constant 1152 : index
    %114 = vector.load %arg12[%c0_106, %c1152_107] : memref<40x1792xbf16, #tpu.memory_space<vmem>>, vector<40x8xbf16>
    %c0_108 = arith.constant 0 : index
    %c1280_109 = arith.constant 1280 : index
    %115 = vector.load %arg12[%c0_108, %c1280_109] : memref<40x1792xbf16, #tpu.memory_space<vmem>>, vector<40x8xbf16>
    %116 = tpu.concatenate %108, %109, %110, %111, %112, %113, %114, %115 in 1 : vector<40x8xbf16>, vector<40x8xbf16>, vector<40x8xbf16>, vector<40x8xbf16>, vector<40x8xbf16>, vector<40x8xbf16>, vector<40x8xbf16>, vector<40x8xbf16> -> vector<40x64xbf16>
    %cst_110 = arith.constant dense<0.000000e+00> : vector<16x64xf32>
    %117 = tpu.matmul %106, %116, %cst_110 {dimension_numbers = #tpu.dot_dimension_numbers<[1], [0], [0], [1], [0, 0, 1, 1], [], []>} : vector<16x40xbf16>, vector<40x64xbf16>, vector<16x64xf32> -> vector<16x64xf32>
    %118 = vector.broadcast %107 : vector<16x1xf32> to vector<16x64xf32>
    %119 = arith.addf %117, %118 : vector<16x64xf32>
    %120 = arith.addf %119, %5 : vector<16x64xf32>
    %c0_111 = arith.constant 0 : index
    %c0_112 = arith.constant 0 : index
    %c0_113 = arith.constant 0 : index
    %121 = vector.load %arg11[%c0_111, %c0_112, %c0_113] : memref<1x16x64xf32, #tpu.memory_space<vmem>>, vector<1x16x64xf32>
    %122 = vector.shape_cast %121 : vector<1x16x64xf32> to vector<16x64xf32>
    %123 = vector.shape_cast %120 : vector<16x64xf32> to vector<1x16x64xf32>
    tpu.vector_store %arg11[%c0_111, %c0_112, %c0_113], %123 {strides = array<i32>} : memref<1x16x64xf32, #tpu.memory_space<vmem>>, vector<1x16x64xf32>,
    return
  }
  func.func @transform_0(%arg0: i32) -> (i32, i32, i32) {
    %c0_i32 = arith.constant 0 : i32
    %c0_i32_0 = arith.constant 0 : i32
    %c0_i32_1 = arith.constant 0 : i32
    return %arg0, %c0_i32, %c0_i32_0 : i32, i32, i32
  }
  func.func @transform_1(%arg0: i32) -> (i32, i32) {
    %c0_i32 = arith.constant 0 : i32
    %c0_i32_0 = arith.constant 0 : i32
    %c0_i32_1 = arith.constant 0 : i32
    return %c0_i32, %c0_i32_0 : i32, i32
  }
  func.func @transform_2(%arg0: i32) -> (i32, i32) {
    %c0_i32 = arith.constant 0 : i32
    %c0_i32_0 = arith.constant 0 : i32
    %c0_i32_1 = arith.constant 0 : i32
    return %c0_i32, %c0_i32_0 : i32, i32
  }
  func.func @transform_3(%arg0: i32) -> (i32, i32) {
    %c0_i32 = arith.constant 0 : i32
    %c0_i32_0 = arith.constant 0 : i32
    %c0_i32_1 = arith.constant 0 : i32
    return %c0_i32, %c0_i32_0 : i32, i32
  }
  func.func @transform_4(%arg0: i32) -> (i32, i32) {
    %c0_i32 = arith.constant 0 : i32
    %c0_i32_0 = arith.constant 0 : i32
    %c0_i32_1 = arith.constant 0 : i32
    return %c0_i32, %c0_i32_0 : i32, i32
  }
  func.func @transform_5(%arg0: i32) -> (i32, i32) {
    %c0_i32 = arith.constant 0 : i32
    %c0_i32_0 = arith.constant 0 : i32
    %c0_i32_1 = arith.constant 0 : i32
    return %c0_i32, %c0_i32_0 : i32, i32
  }
  func.func @transform_6(%arg0: i32) -> (i32, i32) {
    %c0_i32 = arith.constant 0 : i32
    %c0_i32_0 = arith.constant 0 : i32
    %c0_i32_1 = arith.constant 0 : i32
    return %c0_i32, %c0_i32_0 : i32, i32
  }
  func.func @transform_7(%arg0: i32) -> (i32, i32) {
    %c0_i32 = arith.constant 0 : i32
    %c0_i32_0 = arith.constant 0 : i32
    %c0_i32_1 = arith.constant 0 : i32
    return %c0_i32, %c0_i32_0 : i32, i32
  }
  func.func @transform_8(%arg0: i32) -> (i32, i32) {
    %c0_i32 = arith.constant 0 : i32
    %c0_i32_0 = arith.constant 0 : i32
    %c0_i32_1 = arith.constant 0 : i32
    return %c0_i32, %c0_i32_0 : i32, i32
  }
  func.func @transform_9(%arg0: i32) -> (i32, i32) {
    %c0_i32 = arith.constant 0 : i32
    %c0_i32_0 = arith.constant 0 : i32
    %c0_i32_1 = arith.constant 0 : i32
    return %c0_i32, %c0_i32_0 : i32, i32
  }
  func.func @transform_10(%arg0: i32) -> (i32, i32, i32) {
    %c0_i32 = arith.constant 0 : i32
    %c0_i32_0 = arith.constant 0 : i32
    %c0_i32_1 = arith.constant 0 : i32
    return %arg0, %c0_i32, %c0_i32_0 : i32, i32, i32
  }
}

</mosaic_0001>

<llo_original>
// kernel: tpu_custom_call.1
$region0: #{tpu_custom_call.1}
  #allocation0 [shape = 'u32[]', space=smem, size = 0x4, offset = 0x4, fixed_abs, tag = 'smem constant byte address 0x4 - core index']
  #allocation1 [shape = 'u32[144,128]{1,0:T(1,128)}', space=vmem, size = 0x12000, scoped, tag = 'internal scratch']
  #allocation2 [shape = 'bf16[40,1792]{1,0:T(8,128)(2,1)}', space=vmem, size = 0x23000, scoped, tag = 'scratch operand']
  %s0 = inlined_call_operand.vmem [shape: f32[2,16,64], index: 0, kind: input, shape index: {}]
  %s1 = inlined_call_operand.hbm [shape: f32[1,1280], index: 1, kind: input, shape index: {}]
  %s2 = inlined_call_operand.hbm [shape: bf16[8,144], index: 2, kind: input, shape index: {}]
  %s3 = inlined_call_operand.vmem [shape: f32[8,1], index: 3, kind: input, shape index: {}]
  %s4 = inlined_call_operand.hbm [shape: bf16[8,216], index: 4, kind: input, shape index: {}]
  %s5 = inlined_call_operand.vmem [shape: f32[8,1], index: 5, kind: input, shape index: {}]
  %s6 = inlined_call_operand.vmem [shape: bf16[8,288], index: 6, kind: input, shape index: {}]
  %s7 = inlined_call_operand.vmem [shape: f32[8,1], index: 7, kind: input, shape index: {}]
  %s8 = inlined_call_operand.vmem [shape: bf16[16,40], index: 8, kind: input, shape index: {}]
  %s9 = inlined_call_operand.vmem [shape: f32[16,1], index: 9, kind: input, shape index: {}]
  %s10 = inlined_call_operand.hbm [shape: f32[2,16,64], index: 10, kind: output, shape index: {}]
  %s11 = sld [smem:[#allocation0]]
  $region85: #{tpu_custom_call.1} parent=0
    _
  %s13 = ssub.s32 1, %s11
  %s14 = scalar_select 0, %s13, %s11
  $region1: #{tpu_custom_call.1} parent=0
    #allocation3 [shape = 'u8[5120]{0}', space=vmem, size = 0x1400, scoped, tag = 'input window, operand 1, single buffered']
    #allocation4 [shape = 's32[2]{0}', space=sflag, size = 0x8, scoped, tag = 'scoped memory for tpu_custom_call.1']
    #allocation5 [shape = 's32[2]{0}', space=sflag, size = 0x8, scoped, tag = 'scoped memory for tpu_custom_call.1']
    #allocation6 [shape = 'u8[4096]{0}', space=vmem, size = 0x1000, scoped, tag = 'input window, operand 2, single buffered']
    #allocation7 [shape = 's32[1]{0}', space=sflag, size = 0x4, scoped, tag = 'scoped memory for tpu_custom_call.1']
    #allocation8 [shape = 'u8[4096]{0}', space=vmem, size = 0x1000, scoped, tag = 'input window, operand 4, single buffered']
    #allocation9 [shape = 'u8[16384]{0}', space=vmem, size = 0x4000, scoped, tag = 'output window, operand 0']
    %15 = vsyncpa [#allocation4], 0
    %16 = vsyncpa [#allocation7], 0
    %17 = vsyncpa [#allocation5], 0
    %s18 = scalar_lea.sflag [#allocation5], 1
    %19 = vsyncpa %s18, 0
    loop: start=0, step=1, limit=4
    $region2: #{tpu_custom_call.1} parent=1 // loop_pre_header
      _
    $region3: #{tpu_custom_call.1} parent=1 // loop_header
      %s21 = sphi 0, %s25
      %p22 = scmp.ge.s32.totalorder %s21, 4
      %s31 = sphi 0, %s33
      %s34 = sphi 0, %s31
      %s35 = sphi 0, %s34
      %s51 = sphi 0, %s35
      %s55 = sphi 0, %s55
      %s57 = sphi 0, %s55
      %s58 = sphi 0, %s57
      %s72 = sphi 0, %s58
      %s76 = sphi 0, %s76
      %s78 = sphi 0, %s76
      %s79 = sphi 0, %s78
      %s93 = sphi 0, %s79
      %s97 = sphi 0, %s97
      %s99 = sphi 0, %s97
      %s100 = sphi 0, %s99
      %s114 = sphi 0, %s100
      %s118 = sphi 0, %s118
      %s120 = sphi 0, %s118
      %s121 = sphi 0, %s120
      %s135 = sphi 0, %s121
      %s139 = sphi 0, %s139
      %s141 = sphi 0, %s139
      %s142 = sphi 0, %s141
      %s156 = sphi 0, %s142
      %s160 = sphi 0, %s160
      %s162 = sphi 0, %s160
      %s163 = sphi 0, %s162
      %s177 = sphi 0, %s163
      %s181 = sphi 0, %s181
      %s183 = sphi 0, %s181
      %s184 = sphi 0, %s183
      %s198 = sphi 0, %s184
      %s202 = sphi 0, %s202
      %s204 = sphi 0, %s202
      %s205 = sphi 0, %s204
      %s219 = sphi 0, %s205
      %s223 = sphi 0, %s223
      %s225 = sphi 0, %s223
      %s226 = sphi 0, %s225
      %s240 = sphi 0, %s226
      %s246 = sphi 0, %s248
      %s249 = sphi 0, %s246
      %s250 = sphi 0, %s249
      %s266 = sphi 0, %s250
    $region4: #{tpu_custom_call.1} parent=1 // loop_header_branch
      %24 = sbr.rel (%p22) target = $region8
    $region5: #{tpu_custom_call.1} parent=1 // loop_body
      %s26 = ssub.s32 %s21, 1
      %s27 = ssub.s32 %s21, 2
      %s28 = sadd.s32 %s21, 1
      %s29 = ssub.s32 %s21, %s28
      %p30 = scmp.eq.s32.totalorder %s29, 0
      %s32 = sadd.s32 %s31, 1
      %s33 = scalar_select %p30, %s31, %s32
      %p36 = pneg %p30
      %p37 = scmp.eq.s32.totalorder %s21, 1
      %p38 = por %p36, %p37
      %p39 = scmp.ne.s32.totalorder %s31, %s34
      %p40 = scmp.eq.s32.totalorder %s21, 0
      %p41 = por %p39, %p40
      %p42 = scmp.ne.s32.totalorder %s31, %s34
      %p43 = scmp.eq.s32.totalorder %s26, 1
      %p44 = por %p42, %p43
      %p45 = scmp.ne.s32.totalorder %s34, %s35
      %p46 = scmp.eq.s32.totalorder %s26, 0
      %p47 = por %p45, %p46
      %p48 = scmp.ne.s32.totalorder %s34, %s35
      %p49 = scmp.eq.s32.totalorder %s27, 1
      %p50 = por %p48, %p49
      %p52 = scmp.ne.s32.totalorder %s35, %s51
      %p53 = scmp.eq.s32.totalorder %s27, 0
      %p54 = por %p52, %p53
      %s56 = sadd.s32 %s55, 1
      %p59 = scmp.eq.s32.totalorder %s21, 1
      %p60 = scmp.ne.s32.totalorder %s55, %s57
      %p61 = scmp.eq.s32.totalorder %s21, 0
      %p62 = por %p60, %p61
      %p63 = scmp.ne.s32.totalorder %s55, %s57
      %p64 = scmp.eq.s32.totalorder %s26, 1
      %p65 = por %p63, %p64
      %p66 = scmp.ne.s32.totalorder %s57, %s58
      %p67 = scmp.eq.s32.totalorder %s26, 0
      %p68 = por %p66, %p67
      %p69 = scmp.ne.s32.totalorder %s57, %s58
      %p70 = scmp.eq.s32.totalorder %s27, 1
      %p71 = por %p69, %p70
      %p73 = scmp.ne.s32.totalorder %s58, %s72
      %p74 = scmp.eq.s32.totalorder %s27, 0
      %p75 = por %p73, %p74
      %s77 = sadd.s32 %s76, 1
      %p80 = scmp.eq.s32.totalorder %s21, 1
      %p81 = scmp.ne.s32.totalorder %s76, %s78
      %p82 = scmp.eq.s32.totalorder %s21, 0
      %p83 = por %p81, %p82
      %p84 = scmp.ne.s32.totalorder %s76, %s78
      %p85 = scmp.eq.s32.totalorder %s26, 1
      %p86 = por %p84, %p85
      %p87 = scmp.ne.s32.totalorder %s78, %s79
      %p88 = scmp.eq.s32.totalorder %s26, 0
      %p89 = por %p87, %p88
      %p90 = scmp.ne.s32.totalorder %s78, %s79
      %p91 = scmp.eq.s32.totalorder %s27, 1
      %p92 = por %p90, %p91
      %p94 = scmp.ne.s32.totalorder %s79, %s93
      %p95 = scmp.eq.s32.totalorder %s27, 0
      %p96 = por %p94, %p95
      %s98 = sadd.s32 %s97, 1
      %p101 = scmp.eq.s32.totalorder %s21, 1
      %p102 = scmp.ne.s32.totalorder %s97, %s99
      %p103 = scmp.eq.s32.totalorder %s21, 0
      %p104 = por %p102, %p103
      %p105 = scmp.ne.s32.totalorder %s97, %s99
      %p106 = scmp.eq.s32.totalorder %s26, 1
      %p107 = por %p105, %p106
      %p108 = scmp.ne.s32.totalorder %s99, %s100
      %p109 = scmp.eq.s32.totalorder %s26, 0
      %p110 = por %p108, %p109
      %p111 = scmp.ne.s32.totalorder %s99, %s100
      %p112 = scmp.eq.s32.totalorder %s27, 1
      %p113 = por %p111, %p112
      %p115 = scmp.ne.s32.totalorder %s100, %s114
      %p116 = scmp.eq.s32.totalorder %s27, 0
      %p117 = por %p115, %p116
      %s119 = sadd.s32 %s118, 1
      %p122 = scmp.eq.s32.totalorder %s21, 1
      %p123 = scmp.ne.s32.totalorder %s118, %s120
      %p124 = scmp.eq.s32.totalorder %s21, 0
      %p125 = por %p123, %p124
      %p126 = scmp.ne.s32.totalorder %s118, %s120
      %p127 = scmp.eq.s32.totalorder %s26, 1
      %p128 = por %p126, %p127
      %p129 = scmp.ne.s32.totalorder %s120, %s121
      %p130 = scmp.eq.s32.totalorder %s26, 0
      %p131 = por %p129, %p130
      %p132 = scmp.ne.s32.totalorder %s120, %s121
      %p133 = scmp.eq.s32.totalorder %s27, 1
      %p134 = por %p132, %p133
      %p136 = scmp.ne.s32.totalorder %s121, %s135
      %p137 = scmp.eq.s32.totalorder %s27, 0
      %p138 = por %p136, %p137
      %s140 = sadd.s32 %s139, 1
      %p143 = scmp.eq.s32.totalorder %s21, 1
      %p144 = scmp.ne.s32.totalorder %s139, %s141
      %p145 = scmp.eq.s32.totalorder %s21, 0
      %p146 = por %p144, %p145
      %p147 = scmp.ne.s32.totalorder %s139, %s141
      %p148 = scmp.eq.s32.totalorder %s26, 1
      %p149 = por %p147, %p148
      %p150 = scmp.ne.s32.totalorder %s141, %s142
      %p151 = scmp.eq.s32.totalorder %s26, 0
      %p152 = por %p150, %p151
      %p153 = scmp.ne.s32.totalorder %s141, %s142
      %p154 = scmp.eq.s32.totalorder %s27, 1
      %p155 = por %p153, %p154
      %p157 = scmp.ne.s32.totalorder %s142, %s156
      %p158 = scmp.eq.s32.totalorder %s27, 0
      %p159 = por %p157, %p158
      %s161 = sadd.s32 %s160, 1
      %p164 = scmp.eq.s32.totalorder %s21, 1
      %p165 = scmp.ne.s32.totalorder %s160, %s162
      %p166 = scmp.eq.s32.totalorder %s21, 0
      %p167 = por %p165, %p166
      %p168 = scmp.ne.s32.totalorder %s160, %s162
      %p169 = scmp.eq.s32.totalorder %s26, 1
      %p170 = por %p168, %p169
      %p171 = scmp.ne.s32.totalorder %s162, %s163
      %p172 = scmp.eq.s32.totalorder %s26, 0
      %p173 = por %p171, %p172
      %p174 = scmp.ne.s32.totalorder %s162, %s163
      %p175 = scmp.eq.s32.totalorder %s27, 1
      %p176 = por %p174, %p175
      %p178 = scmp.ne.s32.totalorder %s163, %s177
      %p179 = scmp.eq.s32.totalorder %s27, 0
      %p180 = por %p178, %p179
      %s182 = sadd.s32 %s181, 1
      %p185 = scmp.eq.s32.totalorder %s21, 1
      %p186 = scmp.ne.s32.totalorder %s181, %s183
      %p187 = scmp.eq.s32.totalorder %s21, 0
      %p188 = por %p186, %p187
      %p189 = scmp.ne.s32.totalorder %s181, %s183
      %p190 = scmp.eq.s32.totalorder %s26, 1
      %p191 = por %p189, %p190
      %p192 = scmp.ne.s32.totalorder %s183, %s184
      %p193 = scmp.eq.s32.totalorder %s26, 0
      %p194 = por %p192, %p193
      %p195 = scmp.ne.s32.totalorder %s183, %s184
      %p196 = scmp.eq.s32.totalorder %s27, 1
      %p197 = por %p195, %p196
      %p199 = scmp.ne.s32.totalorder %s184, %s198
      %p200 = scmp.eq.s32.totalorder %s27, 0
      %p201 = por %p199, %p200
      %s203 = sadd.s32 %s202, 1
      %p206 = scmp.eq.s32.totalorder %s21, 1
      %p207 = scmp.ne.s32.totalorder %s202, %s204
      %p208 = scmp.eq.s32.totalorder %s21, 0
      %p209 = por %p207, %p208
      %p210 = scmp.ne.s32.totalorder %s202, %s204
      %p211 = scmp.eq.s32.totalorder %s26, 1
      %p212 = por %p210, %p211
      %p213 = scmp.ne.s32.totalorder %s204, %s205
      %p214 = scmp.eq.s32.totalorder %s26, 0
      %p215 = por %p213, %p214
      %p216 = scmp.ne.s32.totalorder %s204, %s205
      %p217 = scmp.eq.s32.totalorder %s27, 1
      %p218 = por %p216, %p217
      %p220 = scmp.ne.s32.totalorder %s205, %s219
      %p221 = scmp.eq.s32.totalorder %s27, 0
      %p222 = por %p220, %p221
      %s224 = sadd.s32 %s223, 1
      %p227 = scmp.eq.s32.totalorder %s21, 1
      %p228 = scmp.ne.s32.totalorder %s223, %s225
      %p229 = scmp.eq.s32.totalorder %s21, 0
      %p230 = por %p228, %p229
      %p231 = scmp.ne.s32.totalorder %s223, %s225
      %p232 = scmp.eq.s32.totalorder %s26, 1
      %p233 = por %p231, %p232
      %p234 = scmp.ne.s32.totalorder %s225, %s226
      %p235 = scmp.eq.s32.totalorder %s26, 0
      %p236 = por %p234, %p235
      %p237 = scmp.ne.s32.totalorder %s225, %s226
      %p238 = scmp.eq.s32.totalorder %s27, 1
      %p239 = por %p237, %p238
      %p241 = scmp.ne.s32.totalorder %s226, %s240
      %p242 = scmp.eq.s32.totalorder %s27, 0
      %p243 = por %p241, %p242
      %s244 = ssub.s32 %s21, %s28
      %p245 = scmp.eq.s32.totalorder %s244, 0
      %s247 = sadd.s32 %s246, 1
      %s248 = scalar_select %p245, %s246, %s247
      %p251 = pneg %p245
      %p252 = scmp.eq.s32.totalorder %s21, 1
      %p253 = por %p251, %p252
      %p254 = scmp.ne.s32.totalorder %s246, %s249
      %p255 = scmp.eq.s32.totalorder %s21, 0
      %p256 = por %p254, %p255
      %p257 = scmp.ne.s32.totalorder %s246, %s249
      %p258 = scmp.eq.s32.totalorder %s26, 1
      %p259 = por %p257, %p258
      %p260 = scmp.ne.s32.totalorder %s249, %s250
      %p261 = scmp.eq.s32.totalorder %s26, 0
      %p262 = por %p260, %p261
      %p263 = scmp.ne.s32.totalorder %s249, %s250
      %p264 = scmp.eq.s32.totalorder %s27, 1
      %p265 = por %p263, %p264
      %p267 = scmp.ne.s32.totalorder %s250, %s266
      %p268 = scmp.eq.s32.totalorder %s27, 0
      %p269 = por %p267, %p268
      %p270 = scmp.le.s32.totalorder 1, %s21
      %p271 = scmp.lt.s32.totalorder %s21, 3
      %p272 = pnand %p270, %p271
      %p273 = pneg %p272
      // Predicated region
      $region9: #{tpu_custom_call.1} parent=5 // pred_check
        _
      $region10: #{tpu_custom_call.1} parent=5 // pred_check_branch
        %275 = sbr.rel (%p272) target = $region12
      $region11: #{tpu_custom_call.1} parent=5 // pred_region
        %s276 = ssub.s32 %s21, 1
        // Predicated region
        $region13: #{tpu_custom_call.1} parent=11 // pred_check
          %p277 = pneg %p68
        $region14: #{tpu_custom_call.1} parent=11 // pred_check_branch
          %279 = sbr.rel (%p277) target = $region16
        $region15: #{tpu_custom_call.1} parent=11 // pred_region
          %s281 = ssub.s32 160, 160
          %282 = vsyncadd [#allocation4], %s281
          %s284 = sshll.u32 [#allocation3], 4
          %s285 = int_to_ptr.vmem [resolvable:$true] %s284
          %287 = dma.hbm_to_vmem [thread:$0]  %s1, 160, %s285, [#allocation4]
        $region16: #{tpu_custom_call.1} parent=11 // pred_fallthru
          _
        // Predicated region
        $region17: #{tpu_custom_call.1} parent=11 // pred_check
          %p288 = pneg %p89
        $region18: #{tpu_custom_call.1} parent=11 // pred_check_branch
          %290 = sbr.rel (%p288) target = $region20
        $region19: #{tpu_custom_call.1} parent=11 // pred_region
          %s292 = ssub.s32 128, 128
          %293 = vsyncadd [#allocation7], %s292
          %s295 = sshll.u32 [#allocation6], 4
          %s296 = int_to_ptr.vmem [resolvable:$true] %s295
          %298 = dma.hbm_to_vmem [thread:$0]  %s2, 128, %s296, [#allocation7]
        $region20: #{tpu_custom_call.1} parent=11 // pred_fallthru
          _
        // Predicated region
        $region21: #{tpu_custom_call.1} parent=11 // pred_check
          %p299 = pneg %p110
        $region22: #{tpu_custom_call.1} parent=11 // pred_check_branch
          %301 = sbr.rel (%p299) target = $region24
        $region23: #{tpu_custom_call.1} parent=11 // pred_region
          _
        $region24: #{tpu_custom_call.1} parent=11 // pred_fallthru
          _
        // Predicated region
        $region25: #{tpu_custom_call.1} parent=11 // pred_check
          %p302 = pneg %p131
        $region26: #{tpu_custom_call.1} parent=11 // pred_check_branch
          %304 = sbr.rel (%p302) target = $region28
        $region27: #{tpu_custom_call.1} parent=11 // pred_region
          %s306 = ssub.s32 128, 128
          %307 = vsyncadd [#allocation7], %s306
          %s309 = sshll.u32 [#allocation8], 4
          %s310 = int_to_ptr.vmem [resolvable:$true] %s309
          %312 = dma.hbm_to_vmem [thread:$0]  %s4, 128, %s310, [#allocation7]
        $region28: #{tpu_custom_call.1} parent=11 // pred_fallthru
          _
        // Predicated region
        $region29: #{tpu_custom_call.1} parent=11 // pred_check
          %p313 = pneg %p152
        $region30: #{tpu_custom_call.1} parent=11 // pred_check_branch
          %315 = sbr.rel (%p313) target = $region32
        $region31: #{tpu_custom_call.1} parent=11 // pred_region
          _
        $region32: #{tpu_custom_call.1} parent=11 // pred_fallthru
          _
        // Predicated region
        $region33: #{tpu_custom_call.1} parent=11 // pred_check
          %p316 = pneg %p173
        $region34: #{tpu_custom_call.1} parent=11 // pred_check_branch
          %318 = sbr.rel (%p316) target = $region36
        $region35: #{tpu_custom_call.1} parent=11 // pred_region
          _
        $region36: #{tpu_custom_call.1} parent=11 // pred_fallthru
          _
        // Predicated region
        $region37: #{tpu_custom_call.1} parent=11 // pred_check
          %p319 = pneg %p194
        $region38: #{tpu_custom_call.1} parent=11 // pred_check_branch
          %321 = sbr.rel (%p319) target = $region40
        $region39: #{tpu_custom_call.1} parent=11 // pred_region
          _
        $region40: #{tpu_custom_call.1} parent=11 // pred_fallthru
          _
        // Predicated region
        $region41: #{tpu_custom_call.1} parent=11 // pred_check
          %p322 = pneg %p215
        $region42: #{tpu_custom_call.1} parent=11 // pred_check_branch
          %324 = sbr.rel (%p322) target = $region44
        $region43: #{tpu_custom_call.1} parent=11 // pred_region
          _
        $region44: #{tpu_custom_call.1} parent=11 // pred_fallthru
          _
        // Predicated region
        $region45: #{tpu_custom_call.1} parent=11 // pred_check
          %p325 = pneg %p236
        $region46: #{tpu_custom_call.1} parent=11 // pred_check_branch
          %327 = sbr.rel (%p325) target = $region48
        $region47: #{tpu_custom_call.1} parent=11 // pred_region
          _
        $region48: #{tpu_custom_call.1} parent=11 // pred_fallthru
          _
      $region12: #{tpu_custom_call.1} parent=5 // pred_fallthru
        _
      %p328 = scmp.lt.s32.totalorder %s21, 2
      // Predicated region
      $region49: #{tpu_custom_call.1} parent=5 // pred_check
        %p329 = pneg %p328
      $region50: #{tpu_custom_call.1} parent=5 // pred_check_branch
        %331 = sbr.rel (%p329) target = $region52
      $region51: #{tpu_custom_call.1} parent=5 // pred_region
        // Predicated region
        $region53: #{tpu_custom_call.1} parent=51 // pred_check
          %p332 = pneg %p41
        $region54: #{tpu_custom_call.1} parent=51 // pred_check_branch
          %334 = sbr.rel (%p332) target = $region56
        $region55: #{tpu_custom_call.1} parent=51 // pred_region
          %p335 = scmp.lt.s32.totalorder %s21, 1
          %s336 = scalar_select %p335, %s21, 1
          %s337 = smul.addr %s336, 2
          %s338 = smul.addr %s337, 8
          %s339 = scalar_lea.vmem %s0, %s338
        $region56: #{tpu_custom_call.1} parent=51 // pred_fallthru
          _
      $region52: #{tpu_custom_call.1} parent=5 // pred_fallthru
        _
      %p340 = scmp.le.s32.totalorder 1, %s21
      %p341 = scmp.lt.s32.totalorder %s21, 3
      %p342 = pnand %p340, %p341
      %p343 = pneg %p342
      // Predicated region
      $region57: #{tpu_custom_call.1} parent=5 // pred_check
        _
      $region58: #{tpu_custom_call.1} parent=5 // pred_check_branch
        %345 = sbr.rel (%p342) target = $region60
      $region59: #{tpu_custom_call.1} parent=5 // pred_region
        %s346 = ssub.s32 %s21, 1
        // Predicated region
        $region61: #{tpu_custom_call.1} parent=59 // pred_check
          %p347 = pneg %p68
        $region62: #{tpu_custom_call.1} parent=59 // pred_check_branch
          %349 = sbr.rel (%p347) target = $region64
        $region63: #{tpu_custom_call.1} parent=59 // pred_region
          %350 = dma.done [#allocation4], 160
        $region64: #{tpu_custom_call.1} parent=59 // pred_fallthru
          _
        // Predicated region
        $region65: #{tpu_custom_call.1} parent=59 // pred_check
          %p351 = pneg %p89
        $region66: #{tpu_custom_call.1} parent=59 // pred_check_branch
          %353 = sbr.rel (%p351) target = $region68
        $region67: #{tpu_custom_call.1} parent=59 // pred_region
          %354 = dma.done [#allocation7], 128
        $region68: #{tpu_custom_call.1} parent=59 // pred_fallthru
          _
        // Predicated region
        $region69: #{tpu_custom_call.1} parent=59 // pred_check
          %p355 = pneg %p131
        $region70: #{tpu_custom_call.1} parent=59 // pred_check_branch
          %357 = sbr.rel (%p355) target = $region72
        $region71: #{tpu_custom_call.1} parent=59 // pred_region
          %358 = dma.done [#allocation7], 128
        $region72: #{tpu_custom_call.1} parent=59 // pred_fallthru
          _
        %p359 = scmp.lt.s32.totalorder %s26, 1
        %s360 = scalar_select %p359, %s26, 1
        %s361 = smul.addr %s360, 2
        %s362 = smul.addr %s361, 8
        %s363 = scalar_lea.vmem %s0, %s362
        %p364 = pneg %p47
        %p365 = pneg %p44
        %p366 = pneg %p68
        %p367 = pneg %p65
        %p368 = pneg %p89
        %p369 = pneg %p86
        %p370 = pneg %p110
        %p371 = pneg %p107
        %p372 = pneg %p131
        %p373 = pneg %p128
        %p374 = pneg %p152
        %p375 = pneg %p149
        %p376 = pneg %p173
        %p377 = pneg %p170
        %p378 = pneg %p194
        %p379 = pneg %p191
        %p380 = pneg %p215
        %p381 = pneg %p212
        %p382 = pneg %p236
        %p383 = pneg %p233
        %p384 = pneg %p262
        %p385 = pneg %p259
        %s386 = sand.u32 %s249, 1
        %s387 = scalar_lea.sflag [#allocation5], %s386
        %s388 = sand.u32 %s249, 1
        %s389 = smul.addr %s388, 16
        %s390 = scalar_lea.vmem [#allocation9], %s389
        %p391 = scmp.lt.s32.totalorder %s26, 1
        %s392 = scalar_select %p391, %s26, 1
        %s393 = smul.addr %s392, 2
        %s394 = smul.addr %s393, 8
        %s395 = scalar_lea.vmem %s0, %s394
        %397 = vst [vmem:[#allocation2] sm:$0xff] 0
        %398 = vst [vmem:[#allocation2 + $0x38] sm:$0xff] 0
        %399 = vst [vmem:[#allocation2 + $0x70] sm:$0xff] 0
        %400 = vst [vmem:[#allocation2 + $0xa8] sm:$0xff] 0
        %401 = vst [vmem:[#allocation2 + $0xe0] sm:$0xff] 0
        %402 = vst [vmem:[#allocation2 + $0x8] sm:$0xff] 0
        %403 = vst [vmem:[#allocation2 + $0x10] sm:$0xff] 0
        %404 = vst [vmem:[#allocation2 + $0x18] sm:$0xff] 0
        %405 = vst [vmem:[#allocation2 + $0x20] sm:$0xff] 0
        %406 = vst [vmem:[#allocation2 + $0x28] sm:$0xff] 0
        %407 = vst [vmem:[#allocation2 + $0x30] sm:$0xff] 0
        %408 = vst [vmem:[#allocation2 + $0x40] sm:$0xff] 0
        %409 = vst [vmem:[#allocation2 + $0x48] sm:$0xff] 0
        %410 = vst [vmem:[#allocation2 + $0x50] sm:$0xff] 0
        %411 = vst [vmem:[#allocation2 + $0x58] sm:$0xff] 0
        %412 = vst [vmem:[#allocation2 + $0x60] sm:$0xff] 0
        %413 = vst [vmem:[#allocation2 + $0x68] sm:$0xff] 0
        %v414 = vld [vmem:[%s395] sm:$0xff]
        %v415 = vld [vmem:[%s395 + $0x8] sm:$0xff]
        %v416 = vpack.c.bf16 %v415, %v414
        %v418 = vunpack.c.l.b16 %v416
        %v419 = vunpack.c.h.b16 %v416
        %v420 = vpack.c.b16 %v418, %v418
        %v421 = vpack.c.b16 %v419, %v419
        %vm424 = vcmask 60416
        %425 = vst.msk [vmem:[#allocation2 + $0xc] sm:$0xf] %vm424, %v420
        %426 = vst.msk [vmem:[#allocation2 + $0x44] sm:$0xf] %vm424, %v421
        %427 = vrot.lane.b32.xlu0 %v420, 120
        %v428 = vpop.permute.xlu0 %427
        %429 = vrot.lane.b32.xlu0 %v421, 120
        %v430 = vpop.permute.xlu0 %429
        %433 = vst.msk [vmem:[#allocation2 + $0x10] sm:$0xf] %vm424, %v428
        %434 = vst.msk [vmem:[#allocation2 + $0x48] sm:$0xf] %vm424, %v430
        %435 = vrot.lane.b32.xlu0 %v420, 112
        %v436 = vpop.permute.xlu0 %435
        %437 = vrot.lane.b32.xlu0 %v421, 112
        %v438 = vpop.permute.xlu0 %437
        %441 = vst.msk [vmem:[#allocation2 + $0x14] sm:$0xf] %vm424, %v436
        %442 = vst.msk [vmem:[#allocation2 + $0x4c] sm:$0xf] %vm424, %v438
        %443 = vrot.lane.b32.xlu0 %v420, 104
        %v444 = vpop.permute.xlu0 %443
        %445 = vrot.lane.b32.xlu0 %v421, 104
        %v446 = vpop.permute.xlu0 %445
        %449 = vst.msk [vmem:[#allocation2 + $0x18] sm:$0xf] %vm424, %v444
        %450 = vst.msk [vmem:[#allocation2 + $0x50] sm:$0xf] %vm424, %v446
        %451 = vrot.lane.b32.xlu0 %v420, 96
        %v452 = vpop.permute.xlu0 %451
        %453 = vrot.lane.b32.xlu0 %v421, 96
        %v454 = vpop.permute.xlu0 %453
        %457 = vst.msk [vmem:[#allocation2 + $0x1c] sm:$0xf] %vm424, %v452
        %458 = vst.msk [vmem:[#allocation2 + $0x54] sm:$0xf] %vm424, %v454
        %459 = vrot.lane.b32.xlu0 %v420, 88
        %v460 = vpop.permute.xlu0 %459
        %461 = vrot.lane.b32.xlu0 %v421, 88
        %v462 = vpop.permute.xlu0 %461
        %465 = vst.msk [vmem:[#allocation2 + $0x20] sm:$0xf] %vm424, %v460
        %466 = vst.msk [vmem:[#allocation2 + $0x58] sm:$0xf] %vm424, %v462
        %467 = vrot.lane.b32.xlu0 %v420, 80
        %v468 = vpop.permute.xlu0 %467
        %469 = vrot.lane.b32.xlu0 %v421, 80
        %v470 = vpop.permute.xlu0 %469
        %473 = vst.msk [vmem:[#allocation2 + $0x24] sm:$0xf] %vm424, %v468
        %474 = vst.msk [vmem:[#allocation2 + $0x5c] sm:$0xf] %vm424, %v470
        %475 = vrot.lane.b32.xlu0 %v420, 72
        %v476 = vpop.permute.xlu0 %475
        %477 = vrot.lane.b32.xlu0 %v421, 72
        %v478 = vpop.permute.xlu0 %477
        %481 = vst.msk [vmem:[#allocation2 + $0x28] sm:$0xf] %vm424, %v476
        %482 = vst.msk [vmem:[#allocation2 + $0x60] sm:$0xf] %vm424, %v478
        %v483 = vld [vmem:[#allocation3] sm:$0xff]
        %v484 = vld [vmem:[#allocation3 + $0x8] sm:$0x3]
        %v485 = vld [vmem:[#allocation6] sm:$0xff]
        %v486 = vld [vmem:[%s3] sm:$0xff]
        %v487 = vld [vmem:[#allocation2] sm:$0xff]
        %v488 = vld [vmem:[#allocation2 + $0x8] sm:$0xff]
        %v489 = vld [vmem:[#allocation2 + $0x10] sm:$0xff]
        %v490 = vld [vmem:[#allocation2 + $0x18] sm:$0xff]
        %v491 = vld [vmem:[#allocation2 + $0x20] sm:$0xff]
        %v492 = vld [vmem:[#allocation2 + $0x28] sm:$0xf]
        %v493 = vld [vmem:[#allocation2 + $0x38] sm:$0xff]
        %v494 = vld [vmem:[#allocation2 + $0x40] sm:$0xff]
        %v495 = vld [vmem:[#allocation2 + $0x48] sm:$0xff]
        %v496 = vld [vmem:[#allocation2 + $0x50] sm:$0xff]
        %v497 = vld [vmem:[#allocation2 + $0x58] sm:$0xff]
        %v498 = vld [vmem:[#allocation2 + $0x60] sm:$0xf]
        %v499 = vld [vmem:[#allocation2 + $0x4] sm:$0xff]
        %v500 = vld [vmem:[#allocation2 + $0xc] sm:$0xff]
        %v501 = vld [vmem:[#allocation2 + $0x14] sm:$0xff]
        %v502 = vld [vmem:[#allocation2 + $0x1c] sm:$0xff]
        %v503 = vld [vmem:[#allocation2 + $0x24] sm:$0xff]
        %v504 = vld [vmem:[#allocation2 + $0x3c] sm:$0xff]
        %v505 = vld [vmem:[#allocation2 + $0x44] sm:$0xff]
        %v506 = vld [vmem:[#allocation2 + $0x4c] sm:$0xff]
        %v507 = vld [vmem:[#allocation2 + $0x54] sm:$0xff]
        %v508 = vld [vmem:[#allocation2 + $0x5c] sm:$0xff]
        %v509 = vld [vmem:[#allocation2 + $0x2c] sm:$0xf]
        %v510 = vld [vmem:[#allocation2 + $0x64] sm:$0xf]
        %v511 = vld [vmem:[#allocation2 + $0x28] sm:$0xff]
        %v512 = vld [vmem:[#allocation2 + $0x60] sm:$0xff]
        %v513 = vld [vmem:[#allocation2 + $0x30] sm:$0xf]
        %v514 = vld [vmem:[#allocation2 + $0x68] sm:$0xf]
        %v515 = vld [vmem:[#allocation2 + $0x2c] sm:$0xff]
        %v516 = vld [vmem:[#allocation2 + $0x64] sm:$0xff]
        %v517 = vld [vmem:[#allocation2 + $0x34] sm:$0xf]
        %v518 = vld [vmem:[#allocation2 + $0x6c] sm:$0xf]
        %v531 = vunpack.c.l.b16 %v487
        %v532 = vunpack.c.h.b16 %v487
        %v533 = vunpack.c.l.b16 %v488
        %v534 = vunpack.c.h.b16 %v488
        %v535 = vunpack.c.l.b16 %v489
        %v536 = vunpack.c.h.b16 %v489
        %v537 = vunpack.c.l.b16 %v490
        %v538 = vunpack.c.h.b16 %v490
        %v539 = vunpack.c.l.b16 %v491
        %v540 = vunpack.c.h.b16 %v491
        %v541 = vunpack.c.l.b16 %v492
        %v542 = vunpack.c.l.b16 %v493
        %v543 = vunpack.c.h.b16 %v493
        %v544 = vunpack.c.l.b16 %v494
        %v545 = vunpack.c.h.b16 %v494
        %v546 = vunpack.c.l.b16 %v495
        %v547 = vunpack.c.h.b16 %v495
        %v548 = vunpack.c.l.b16 %v496
        %v549 = vunpack.c.h.b16 %v496
        %v550 = vunpack.c.l.b16 %v497
        %v551 = vunpack.c.h.b16 %v497
        %v552 = vunpack.c.l.b16 %v498
        %v553 = vpack.c.b16 %v542, %v531
        %v554 = vpack.c.b16 %v543, %v532
        %v555 = vpack.c.b16 %v544, %v533
        %v556 = vpack.c.b16 %v545, %v534
        %v557 = vpack.c.b16 %v546, %v535
        %v558 = vpack.c.b16 %v547, %v536
        %v559 = vpack.c.b16 %v548, %v537
        %v560 = vpack.c.b16 %v549, %v538
        %v561 = vpack.c.b16 %v550, %v539
        %v562 = vpack.c.b16 %v551, %v540
        %v563 = vpack.c.b16 %v552, %v541
        %v574 = vunpack.c.l.b16 %v499
        %v575 = vunpack.c.h.b16 %v499
        %v576 = vunpack.c.l.b16 %v500
        %v577 = vunpack.c.h.b16 %v500
        %v578 = vunpack.c.l.b16 %v501
        %v579 = vunpack.c.h.b16 %v501
        %v580 = vunpack.c.l.b16 %v502
        %v581 = vunpack.c.h.b16 %v502
        %v582 = vunpack.c.l.b16 %v503
        %v583 = vunpack.c.h.b16 %v503
        %v584 = vunpack.c.l.b16 %v504
        %v585 = vunpack.c.h.b16 %v504
        %v586 = vunpack.c.l.b16 %v505
        %v587 = vunpack.c.h.b16 %v505
        %v588 = vunpack.c.l.b16 %v506
        %v589 = vunpack.c.h.b16 %v506
        %v590 = vunpack.c.l.b16 %v507
        %v591 = vunpack.c.h.b16 %v507
        %v592 = vunpack.c.l.b16 %v508
        %v593 = vunpack.c.h.b16 %v508
        %v594 = vpack.c.b16 %v584, %v574
        %v595 = vpack.c.b16 %v585, %v575
        %v596 = vpack.c.b16 %v586, %v576
        %v597 = vpack.c.b16 %v587, %v577
        %v598 = vpack.c.b16 %v588, %v578
        %v599 = vpack.c.b16 %v589, %v579
        %v600 = vpack.c.b16 %v590, %v580
        %v601 = vpack.c.b16 %v591, %v581
        %v602 = vpack.c.b16 %v592, %v582
        %v603 = vpack.c.b16 %v593, %v583
        %604 = vrot.lane.b32.xlu0 %v594, 127
        %v605 = vpop.permute.xlu0 %604
        %606 = vrot.lane.b32.xlu0 %v595, 127
        %v607 = vpop.permute.xlu0 %606
        %608 = vrot.lane.b32.xlu0 %v596, 127
        %v609 = vpop.permute.xlu0 %608
        %610 = vrot.lane.b32.xlu0 %v597, 127
        %v611 = vpop.permute.xlu0 %610
        %612 = vrot.lane.b32.xlu0 %v598, 127
        %v613 = vpop.permute.xlu0 %612
        %614 = vrot.lane.b32.xlu0 %v599, 127
        %v615 = vpop.permute.xlu0 %614
        %616 = vrot.lane.b32.xlu0 %v600, 127
        %v617 = vpop.permute.xlu0 %616
        %618 = vrot.lane.b32.xlu0 %v601, 127
        %v619 = vpop.permute.xlu0 %618
        %620 = vrot.lane.b32.xlu0 %v602, 127
        %v621 = vpop.permute.xlu0 %620
        %622 = vrot.lane.b32.xlu0 %v603, 127
        %v623 = vpop.permute.xlu0 %622
        %vm624 = vcmask 1039360
        %v625 = vsel %vm624, %v605, %v607
        %v626 = vsel %vm624, %v607, %v609
        %v627 = vsel %vm624, %v609, %v611
        %v628 = vsel %vm624, %v611, %v613
        %v629 = vsel %vm624, %v613, %v615
        %v630 = vsel %vm624, %v615, %v617
        %v631 = vsel %vm624, %v617, %v619
        %v632 = vsel %vm624, %v619, %v621
        %v633 = vsel %vm624, %v621, %v623
        %v636 = vunpack.c.l.b16 %v509
        %v637 = vunpack.c.l.b16 %v510
        %v638 = vpack.c.b16 %v637, %v636
        %639 = vrot.lane.b32.xlu0 %v594, 126
        %v640 = vpop.permute.xlu0 %639
        %641 = vrot.lane.b32.xlu0 %v595, 126
        %v642 = vpop.permute.xlu0 %641
        %643 = vrot.lane.b32.xlu0 %v596, 126
        %v644 = vpop.permute.xlu0 %643
        %645 = vrot.lane.b32.xlu0 %v597, 126
        %v646 = vpop.permute.xlu0 %645
        %647 = vrot.lane.b32.xlu0 %v598, 126
        %v648 = vpop.permute.xlu0 %647
        %649 = vrot.lane.b32.xlu0 %v599, 126
        %v650 = vpop.permute.xlu0 %649
        %651 = vrot.lane.b32.xlu0 %v600, 126
        %v652 = vpop.permute.xlu0 %651
        %653 = vrot.lane.b32.xlu0 %v601, 126
        %v654 = vpop.permute.xlu0 %653
        %655 = vrot.lane.b32.xlu0 %v602, 126
        %v656 = vpop.permute.xlu0 %655
        %657 = vrot.lane.b32.xlu0 %v603, 126
        %v658 = vpop.permute.xlu0 %657
        %659 = vrot.lane.b32.xlu0 %v638, 126
        %v660 = vpop.permute.xlu0 %659
        %vm661 = vcmask 1031168
        %v662 = vsel %vm661, %v640, %v642
        %v663 = vsel %vm661, %v642, %v644
        %v664 = vsel %vm661, %v644, %v646
        %v665 = vsel %vm661, %v646, %v648
        %v666 = vsel %vm661, %v648, %v650
        %v667 = vsel %vm661, %v650, %v652
        %v668 = vsel %vm661, %v652, %v654
        %v669 = vsel %vm661, %v654, %v656
        %v670 = vsel %vm661, %v656, %v658
        %v671 = vsel %vm661, %v658, %v660
        %v674 = vunpack.c.l.b16 %v511
        %v675 = vunpack.c.h.b16 %v511
        %v676 = vunpack.c.l.b16 %v512
        %v677 = vunpack.c.h.b16 %v512
        %v678 = vpack.c.b16 %v676, %v674
        %v679 = vpack.c.b16 %v677, %v675
        %680 = vrot.lane.b32.xlu0 %v555, 127
        %v681 = vpop.permute.xlu0 %680
        %682 = vrot.lane.b32.xlu0 %v556, 127
        %v683 = vpop.permute.xlu0 %682
        %684 = vrot.lane.b32.xlu0 %v557, 127
        %v685 = vpop.permute.xlu0 %684
        %686 = vrot.lane.b32.xlu0 %v558, 127
        %v687 = vpop.permute.xlu0 %686
        %688 = vrot.lane.b32.xlu0 %v559, 127
        %v689 = vpop.permute.xlu0 %688
        %690 = vrot.lane.b32.xlu0 %v560, 127
        %v691 = vpop.permute.xlu0 %690
        %692 = vrot.lane.b32.xlu0 %v561, 127
        %v693 = vpop.permute.xlu0 %692
        %694 = vrot.lane.b32.xlu0 %v562, 127
        %v695 = vpop.permute.xlu0 %694
        %696 = vrot.lane.b32.xlu0 %v678, 127
        %v697 = vpop.permute.xlu0 %696
        %698 = vrot.lane.b32.xlu0 %v679, 127
        %v699 = vpop.permute.xlu0 %698
        %v700 = vsel %vm624, %v681, %v683
        %v701 = vsel %vm624, %v683, %v685
        %v702 = vsel %vm624, %v685, %v687
        %v703 = vsel %vm624, %v687, %v689
        %v704 = vsel %vm624, %v689, %v691
        %v705 = vsel %vm624, %v691, %v693
        %v706 = vsel %vm624, %v693, %v695
        %v707 = vsel %vm624, %v695, %v697
        %v708 = vsel %vm624, %v697, %v699
        %v711 = vunpack.c.l.b16 %v513
        %v712 = vunpack.c.l.b16 %v514
        %v713 = vpack.c.b16 %v712, %v711
        %714 = vrot.lane.b32.xlu0 %v555, 126
        %v715 = vpop.permute.xlu0 %714
        %716 = vrot.lane.b32.xlu0 %v556, 126
        %v717 = vpop.permute.xlu0 %716
        %718 = vrot.lane.b32.xlu0 %v557, 126
        %v719 = vpop.permute.xlu0 %718
        %720 = vrot.lane.b32.xlu0 %v558, 126
        %v721 = vpop.permute.xlu0 %720
        %722 = vrot.lane.b32.xlu0 %v559, 126
        %v723 = vpop.permute.xlu0 %722
        %724 = vrot.lane.b32.xlu0 %v560, 126
        %v725 = vpop.permute.xlu0 %724
        %726 = vrot.lane.b32.xlu0 %v561, 126
        %v727 = vpop.permute.xlu0 %726
        %728 = vrot.lane.b32.xlu0 %v562, 126
        %v729 = vpop.permute.xlu0 %728
        %730 = vrot.lane.b32.xlu0 %v678, 126
        %v731 = vpop.permute.xlu0 %730
        %732 = vrot.lane.b32.xlu0 %v679, 126
        %v733 = vpop.permute.xlu0 %732
        %734 = vrot.lane.b32.xlu0 %v713, 126
        %v735 = vpop.permute.xlu0 %734
        %v736 = vsel %vm661, %v715, %v717
        %v737 = vsel %vm661, %v717, %v719
        %v738 = vsel %vm661, %v719, %v721
        %v739 = vsel %vm661, %v721, %v723
        %v740 = vsel %vm661, %v723, %v725
        %v741 = vsel %vm661, %v725, %v727
        %v742 = vsel %vm661, %v727, %v729
        %v743 = vsel %vm661, %v729, %v731
        %v744 = vsel %vm661, %v731, %v733
        %v745 = vsel %vm661, %v733, %v735
        %v748 = vunpack.c.l.b16 %v515
        %v749 = vunpack.c.h.b16 %v515
        %v750 = vunpack.c.l.b16 %v516
        %v751 = vunpack.c.h.b16 %v516
        %v752 = vpack.c.b16 %v750, %v748
        %v753 = vpack.c.b16 %v751, %v749
        %754 = vrot.lane.b32.xlu0 %v752, 127
        %v755 = vpop.permute.xlu0 %754
        %756 = vrot.lane.b32.xlu0 %v753, 127
        %v757 = vpop.permute.xlu0 %756
        %v758 = vsel %vm624, %v623, %v755
        %v759 = vsel %vm624, %v755, %v757
        %v762 = vunpack.c.l.b16 %v517
        %v763 = vunpack.c.l.b16 %v518
        %v764 = vpack.c.b16 %v763, %v762
        %765 = vrot.lane.b32.xlu0 %v752, 126
        %v766 = vpop.permute.xlu0 %765
        %767 = vrot.lane.b32.xlu0 %v753, 126
        %v768 = vpop.permute.xlu0 %767
        %769 = vrot.lane.b32.xlu0 %v764, 126
        %v770 = vpop.permute.xlu0 %769
        %v771 = vsel %vm661, %v658, %v766
        %v772 = vsel %vm661, %v766, %v768
        %v773 = vsel %vm661, %v768, %v770
        %775 = vset.pattern.permute.xlu0 0
        %776 = vperm.xlu0 %775, %v486
        %v777 = vpop.permute.xlu0 %776
        %v780 = vunpack.c.l.b16 %v485
        %v781 = vunpack.c.h.b16 %v485
        %v782 = vpack.c.b16 %v780, %v780
        %v783 = vpack.c.b16 %v781, %v781
        %785 = vrot.lane.b32.xlu0 %v553, 1
        %v786 = vpop.permute.xlu0 %785
        %787 = vrot.lane.b32.xlu0 %v554, 1
        %v788 = vpop.permute.xlu0 %787
        %789 = vrot.lane.b32.xlu0 %v555, 1
        %v790 = vpop.permute.xlu0 %789
        %791 = vrot.lane.b32.xlu0 %v556, 1
        %v792 = vpop.permute.xlu0 %791
        %793 = vrot.lane.b32.xlu0 %v557, 1
        %v794 = vpop.permute.xlu0 %793
        %795 = vrot.lane.b32.xlu0 %v558, 1
        %v796 = vpop.permute.xlu0 %795
        %797 = vrot.lane.b32.xlu0 %v559, 1
        %v798 = vpop.permute.xlu0 %797
        %799 = vrot.lane.b32.xlu0 %v560, 1
        %v800 = vpop.permute.xlu0 %799
        %801 = vrot.lane.b32.xlu0 %v561, 1
        %v802 = vpop.permute.xlu0 %801
        %803 = vrot.lane.b32.xlu0 %v562, 1
        %v804 = vpop.permute.xlu0 %803
        %805 = vrot.lane.b32.xlu0 %v563, 1
        %v806 = vpop.permute.xlu0 %805
        %807 = vrot.lane.b32.xlu0 %v605, 1
        %v808 = vpop.permute.xlu0 %807
        %809 = vrot.lane.b32.xlu0 %v625, 1
        %v810 = vpop.permute.xlu0 %809
        %811 = vrot.lane.b32.xlu0 %v626, 1
        %v812 = vpop.permute.xlu0 %811
        %813 = vrot.lane.b32.xlu0 %v627, 1
        %v814 = vpop.permute.xlu0 %813
        %815 = vrot.lane.b32.xlu0 %v628, 1
        %v816 = vpop.permute.xlu0 %815
        %817 = vrot.lane.b32.xlu0 %v629, 1
        %v818 = vpop.permute.xlu0 %817
        %819 = vrot.lane.b32.xlu0 %v630, 1
        %v820 = vpop.permute.xlu0 %819
        %821 = vrot.lane.b32.xlu0 %v631, 1
        %v822 = vpop.permute.xlu0 %821
        %823 = vrot.lane.b32.xlu0 %v632, 1
        %v824 = vpop.permute.xlu0 %823
        %825 = vrot.lane.b32.xlu0 %v633, 1
        %v826 = vpop.permute.xlu0 %825
        %827 = vrot.lane.b32.xlu0 %v623, 1
        %v828 = vpop.permute.xlu0 %827
        %829 = vrot.lane.b32.xlu0 %v640, 1
        %v830 = vpop.permute.xlu0 %829
        %831 = vrot.lane.b32.xlu0 %v662, 1
        %v832 = vpop.permute.xlu0 %831
        %833 = vrot.lane.b32.xlu0 %v663, 1
        %v834 = vpop.permute.xlu0 %833
        %835 = vrot.lane.b32.xlu0 %v664, 1
        %v836 = vpop.permute.xlu0 %835
        %837 = vrot.lane.b32.xlu0 %v665, 1
        %v838 = vpop.permute.xlu0 %837
        %839 = vrot.lane.b32.xlu0 %v666, 1
        %v840 = vpop.permute.xlu0 %839
        %841 = vrot.lane.b32.xlu0 %v667, 1
        %v842 = vpop.permute.xlu0 %841
        %843 = vrot.lane.b32.xlu0 %v668, 1
        %v844 = vpop.permute.xlu0 %843
        %845 = vrot.lane.b32.xlu0 %v669, 1
        %v846 = vpop.permute.xlu0 %845
        %847 = vrot.lane.b32.xlu0 %v670, 1
        %v848 = vpop.permute.xlu0 %847
        %849 = vrot.lane.b32.xlu0 %v671, 1
        %v850 = vpop.permute.xlu0 %849
        %851 = vrot.lane.b32.xlu0 %v594, 1
        %v852 = vpop.permute.xlu0 %851
        %853 = vrot.lane.b32.xlu0 %v595, 1
        %v854 = vpop.permute.xlu0 %853
        %855 = vrot.lane.b32.xlu0 %v596, 1
        %v856 = vpop.permute.xlu0 %855
        %857 = vrot.lane.b32.xlu0 %v597, 1
        %v858 = vpop.permute.xlu0 %857
        %859 = vrot.lane.b32.xlu0 %v598, 1
        %v860 = vpop.permute.xlu0 %859
        %861 = vrot.lane.b32.xlu0 %v599, 1
        %v862 = vpop.permute.xlu0 %861
        %863 = vrot.lane.b32.xlu0 %v600, 1
        %v864 = vpop.permute.xlu0 %863
        %865 = vrot.lane.b32.xlu0 %v601, 1
        %v866 = vpop.permute.xlu0 %865
        %867 = vrot.lane.b32.xlu0 %v602, 1
        %v868 = vpop.permute.xlu0 %867
        %869 = vrot.lane.b32.xlu0 %v603, 1
        %v870 = vpop.permute.xlu0 %869
        %871 = vrot.lane.b32.xlu0 %v638, 1
        %v872 = vpop.permute.xlu0 %871
        %873 = vrot.lane.b32.xlu0 %v681, 1
        %v874 = vpop.permute.xlu0 %873
        %875 = vrot.lane.b32.xlu0 %v700, 1
        %v876 = vpop.permute.xlu0 %875
        %877 = vrot.lane.b32.xlu0 %v701, 1
        %v878 = vpop.permute.xlu0 %877
        %879 = vrot.lane.b32.xlu0 %v702, 1
        %v880 = vpop.permute.xlu0 %879
        %881 = vrot.lane.b32.xlu0 %v703, 1
        %v882 = vpop.permute.xlu0 %881
        %883 = vrot.lane.b32.xlu0 %v704, 1
        %v884 = vpop.permute.xlu0 %883
        %885 = vrot.lane.b32.xlu0 %v705, 1
        %v886 = vpop.permute.xlu0 %885
        %887 = vrot.lane.b32.xlu0 %v706, 1
        %v888 = vpop.permute.xlu0 %887
        %889 = vrot.lane.b32.xlu0 %v707, 1
        %v890 = vpop.permute.xlu0 %889
        %891 = vrot.lane.b32.xlu0 %v708, 1
        %v892 = vpop.permute.xlu0 %891
        %893 = vrot.lane.b32.xlu0 %v699, 1
        %v894 = vpop.permute.xlu0 %893
        %895 = vrot.lane.b32.xlu0 %v715, 1
        %v896 = vpop.permute.xlu0 %895
        %897 = vrot.lane.b32.xlu0 %v736, 1
        %v898 = vpop.permute.xlu0 %897
        %899 = vrot.lane.b32.xlu0 %v737, 1
        %v900 = vpop.permute.xlu0 %899
        %901 = vrot.lane.b32.xlu0 %v738, 1
        %v902 = vpop.permute.xlu0 %901
        %903 = vrot.lane.b32.xlu0 %v739, 1
        %v904 = vpop.permute.xlu0 %903
        %905 = vrot.lane.b32.xlu0 %v740, 1
        %v906 = vpop.permute.xlu0 %905
        %907 = vrot.lane.b32.xlu0 %v741, 1
        %v908 = vpop.permute.xlu0 %907
        %909 = vrot.lane.b32.xlu0 %v742, 1
        %v910 = vpop.permute.xlu0 %909
        %911 = vrot.lane.b32.xlu0 %v743, 1
        %v912 = vpop.permute.xlu0 %911
        %913 = vrot.lane.b32.xlu0 %v744, 1
        %v914 = vpop.permute.xlu0 %913
        %915 = vrot.lane.b32.xlu0 %v745, 1
        %v916 = vpop.permute.xlu0 %915
        %917 = vrot.lane.b32.xlu0 %v678, 1
        %v918 = vpop.permute.xlu0 %917
        %919 = vrot.lane.b32.xlu0 %v679, 1
        %v920 = vpop.permute.xlu0 %919
        %921 = vrot.lane.b32.xlu0 %v713, 1
        %v922 = vpop.permute.xlu0 %921
        %923 = vrot.lane.b32.xlu0 %v609, 1
        %v924 = vpop.permute.xlu0 %923
        %925 = vrot.lane.b32.xlu0 %v758, 1
        %v926 = vpop.permute.xlu0 %925
        %927 = vrot.lane.b32.xlu0 %v759, 1
        %v928 = vpop.permute.xlu0 %927
        %929 = vrot.lane.b32.xlu0 %v757, 1
        %v930 = vpop.permute.xlu0 %929
        %931 = vrot.lane.b32.xlu0 %v644, 1
        %v932 = vpop.permute.xlu0 %931
        %933 = vrot.lane.b32.xlu0 %v771, 1
        %v934 = vpop.permute.xlu0 %933
        %935 = vrot.lane.b32.xlu0 %v772, 1
        %v936 = vpop.permute.xlu0 %935
        %937 = vrot.lane.b32.xlu0 %v773, 1
        %v938 = vpop.permute.xlu0 %937
        %vm939 = vcmask 7168
        %v940 = vsel %vm939, %v786, %v788
        %v941 = vsel %vm939, %v788, %v790
        %v942 = vsel %vm939, %v790, %v792
        %v943 = vsel %vm939, %v792, %v794
        %v944 = vsel %vm939, %v794, %v796
        %v945 = vsel %vm939, %v796, %v798
        %v946 = vsel %vm939, %v798, %v800
        %v947 = vsel %vm939, %v800, %v802
        %v948 = vsel %vm939, %v802, %v804
        %v949 = vsel %vm939, %v804, %v806
        %v950 = vsel %vm939, %v808, %v810
        %v951 = vsel %vm939, %v810, %v812
        %v952 = vsel %vm939, %v812, %v814
        %v953 = vsel %vm939, %v814, %v816
        %v954 = vsel %vm939, %v816, %v818
        %v955 = vsel %vm939, %v818, %v820
        %v956 = vsel %vm939, %v820, %v822
        %v957 = vsel %vm939, %v822, %v824
        %v958 = vsel %vm939, %v824, %v826
        %v959 = vsel %vm939, %v826, %v828
        %v960 = vsel %vm939, %v830, %v832
        %v961 = vsel %vm939, %v832, %v834
        %v962 = vsel %vm939, %v834, %v836
        %v963 = vsel %vm939, %v836, %v838
        %v964 = vsel %vm939, %v838, %v840
        %v965 = vsel %vm939, %v840, %v842
        %v966 = vsel %vm939, %v842, %v844
        %v967 = vsel %vm939, %v844, %v846
        %v968 = vsel %vm939, %v846, %v848
        %v969 = vsel %vm939, %v848, %v850
        %v970 = vsel %vm939, %v852, %v854
        %v971 = vsel %vm939, %v854, %v856
        %v972 = vsel %vm939, %v856, %v858
        %v973 = vsel %vm939, %v858, %v860
        %v974 = vsel %vm939, %v860, %v862
        %v975 = vsel %vm939, %v862, %v864
        %v976 = vsel %vm939, %v864, %v866
        %v977 = vsel %vm939, %v866, %v868
        %v978 = vsel %vm939, %v868, %v870
        %v979 = vsel %vm939, %v870, %v872
        %v980 = vsel %vm939, %v874, %v876
        %v981 = vsel %vm939, %v876, %v878
        %v982 = vsel %vm939, %v878, %v880
        %v983 = vsel %vm939, %v880, %v882
        %v984 = vsel %vm939, %v882, %v884
        %v985 = vsel %vm939, %v884, %v886
        %v986 = vsel %vm939, %v886, %v888
        %v987 = vsel %vm939, %v888, %v890
        %v988 = vsel %vm939, %v890, %v892
        %v989 = vsel %vm939, %v892, %v894
        %v990 = vsel %vm939, %v896, %v898
        %v991 = vsel %vm939, %v898, %v900
        %v992 = vsel %vm939, %v900, %v902
        %v993 = vsel %vm939, %v902, %v904
        %v994 = vsel %vm939, %v904, %v906
        %v995 = vsel %vm939, %v906, %v908
        %v996 = vsel %vm939, %v908, %v910
        %v997 = vsel %vm939, %v910, %v912
        %v998 = vsel %vm939, %v912, %v914
        %v999 = vsel %vm939, %v914, %v916
        %v1000 = vsel %vm939, %v804, %v918
        %v1001 = vsel %vm939, %v918, %v920
        %v1002 = vsel %vm939, %v920, %v922
        %v1003 = vsel %vm939, %v924, %v814
        %v1004 = vsel %vm939, %v826, %v926
        %v1005 = vsel %vm939, %v926, %v928
        %v1006 = vsel %vm939, %v928, %v930
        %v1007 = vsel %vm939, %v932, %v836
        %v1008 = vsel %vm939, %v848, %v934
        %v1009 = vsel %vm939, %v934, %v936
        %v1010 = vsel %vm939, %v936, %v938
        %vm1082 = vcmask 130048
        %v1084 = vsel %vm1082, %v783, 0
        %1086 = vmatprep.subr.bf16.mxu0 %v953
        %1087 = vmatpush1.bf16.msra.mxu0 %v1003
        %1088 = vmatprep.subr.bf16.mxu0 %v943
        %1089 = vmatpush1.bf16.msra.mxu0 %v942
        %1090 = vmatprep.subr.bf16.mxu0 %v991
        %1091 = vmatpush1.bf16.msra.mxu0 %v990
        %1092 = vmatprep.subr.bf16.mxu0 %v981
        %1093 = vmatpush1.bf16.msra.mxu0 %v980
        %1094 = vmatprep.subr.bf16.mxu0 %v971
        %1095 = vmatpush1.bf16.msra.mxu0 %v970
        %1096 = vmatprep.subr.bf16.mxu0 %v961
        %1097 = vmatpush1.bf16.msra.mxu0 %v960
        %1098 = vmatprep.subr.bf16.mxu0 %v951
        %1099 = vmatpush1.bf16.msra.mxu0 %v950
        %1100 = vmatprep.subr.bf16.mxu0 %v941
        %1101 = vmatpush1.bf16.msra.mxu0 %v940
        %1102 = vmatprep.subr.bf16.mxu0 0
        %1103 = vmatpush2.bf16.msra.mxu0 0
        %1104 = vmatprep.subr.bf16.mxu0 0
        %1105 = vmatpush2.bf16.msra.mxu0 0
        %1106 = vmatprep.subr.bf16.mxu0 0
        %1107 = vmatpush2.bf16.msra.mxu0 0
        %1108 = vmatprep.subr.bf16.mxu0 0
        %1109 = vmatpush2.bf16.msra.mxu0 0
        %1110 = vmatprep.subr.bf16.mxu0 0
        %1111 = vmatpush2.bf16.msra.mxu0 0
        %1112 = vmatprep.subr.bf16.mxu0 0
        %1113 = vmatpush2.bf16.msra.mxu0 0
        %1114 = vmatprep.subr.bf16.mxu0 0
        %1115 = vmatpush2.bf16.msra.mxu0 0
        %1116 = vmatprep.subr.bf16.mxu0 %v963
        %1117 = vmatpush2.bf16.msra.mxu0 %v1007
        %1118 = vmatprep.mubr.bf16.mxu0 %v1084
        %1119 = vmatmul.mubr.bf16.gmra.mxu0 %v782
        %v1120 = vpop.f32.mrf.mxu0
        %v1121 = vadd.f32 %v777, %v1120
        %v1122 = vpop.f32.mrf.mxu0
        %v1123 = vadd.f32 %v777, %v1122
        %v1124 = vpop.f32.mrf.mxu0
        %v1125 = vpop.f32.mrf.mxu0
        %1126 = vdwg.mxu0
        %1127 = vmatprep.subr.bf16.mxu0 %v955
        %1128 = vmatpush1.bf16.msra.mxu0 %v954
        %1129 = vmatprep.subr.bf16.mxu0 %v945
        %1130 = vmatpush1.bf16.msra.mxu0 %v944
        %1131 = vmatprep.subr.bf16.mxu0 %v993
        %1132 = vmatpush1.bf16.msra.mxu0 %v992
        %1133 = vmatprep.subr.bf16.mxu0 %v983
        %1134 = vmatpush1.bf16.msra.mxu0 %v982
        %1135 = vmatprep.subr.bf16.mxu0 %v973
        %1136 = vmatpush1.bf16.msra.mxu0 %v972
        %1137 = vmatprep.subr.bf16.mxu0 %v963
        %1138 = vmatpush1.bf16.msra.mxu0 %v962
        %1139 = vmatprep.subr.bf16.mxu0 %v953
        %1140 = vmatpush1.bf16.msra.mxu0 %v952
        %1141 = vmatprep.subr.bf16.mxu0 %v943
        %1142 = vmatpush1.bf16.msra.mxu0 %v942
        %1143 = vmatprep.subr.bf16.mxu0 0
        %1144 = vmatpush2.bf16.msra.mxu0 0
        %1145 = vmatprep.subr.bf16.mxu0 0
        %1146 = vmatpush2.bf16.msra.mxu0 0
        %1147 = vmatprep.subr.bf16.mxu0 0
        %1148 = vmatpush2.bf16.msra.mxu0 0
        %1149 = vmatprep.subr.bf16.mxu0 0
        %1150 = vmatpush2.bf16.msra.mxu0 0
        %1151 = vmatprep.subr.bf16.mxu0 0
        %1152 = vmatpush2.bf16.msra.mxu0 0
        %1153 = vmatprep.subr.bf16.mxu0 0
        %1154 = vmatpush2.bf16.msra.mxu0 0
        %1155 = vmatprep.subr.bf16.mxu0 0
        %1156 = vmatpush2.bf16.msra.mxu0 0
        %1157 = vmatprep.subr.bf16.mxu0 %v965
        %1158 = vmatpush2.bf16.msra.mxu0 %v964
        %1159 = vmatprep.mubr.bf16.mxu0 %v1084
        %1160 = vmatmul.mubr.bf16.gmra.mxu0 %v782
        %v1161 = vpop.f32.mrf.mxu0
        %v1162 = vadd.f32 %v777, %v1161
        %v1163 = vpop.f32.mrf.mxu0
        %v1164 = vadd.f32 %v777, %v1163
        %v1165 = vpop.f32.mrf.mxu0
        %v1166 = vpop.f32.mrf.mxu0
        %1167 = vdwg.mxu0
        %1168 = vmatprep.subr.bf16.mxu0 %v957
        %1169 = vmatpush1.bf16.msra.mxu0 %v956
        %1170 = vmatprep.subr.bf16.mxu0 %v947
        %1171 = vmatpush1.bf16.msra.mxu0 %v946
        %1172 = vmatprep.subr.bf16.mxu0 %v995
        %1173 = vmatpush1.bf16.msra.mxu0 %v994
        %1174 = vmatprep.subr.bf16.mxu0 %v985
        %1175 = vmatpush1.bf16.msra.mxu0 %v984
        %1176 = vmatprep.subr.bf16.mxu0 %v975
        %1177 = vmatpush1.bf16.msra.mxu0 %v974
        %1178 = vmatprep.subr.bf16.mxu0 %v965
        %1179 = vmatpush1.bf16.msra.mxu0 %v964
        %1180 = vmatprep.subr.bf16.mxu0 %v955
        %1181 = vmatpush1.bf16.msra.mxu0 %v954
        %1182 = vmatprep.subr.bf16.mxu0 %v945
        %1183 = vmatpush1.bf16.msra.mxu0 %v944
        %1184 = vmatprep.subr.bf16.mxu0 0
        %1185 = vmatpush2.bf16.msra.mxu0 0
        %1186 = vmatprep.subr.bf16.mxu0 0
        %1187 = vmatpush2.bf16.msra.mxu0 0
        %1188 = vmatprep.subr.bf16.mxu0 0
        %1189 = vmatpush2.bf16.msra.mxu0 0
        %1190 = vmatprep.subr.bf16.mxu0 0
        %1191 = vmatpush2.bf16.msra.mxu0 0
        %1192 = vmatprep.subr.bf16.mxu0 0
        %1193 = vmatpush2.bf16.msra.mxu0 0
        %1194 = vmatprep.subr.bf16.mxu0 0
        %1195 = vmatpush2.bf16.msra.mxu0 0
        %1196 = vmatprep.subr.bf16.mxu0 0
        %1197 = vmatpush2.bf16.msra.mxu0 0
        %1198 = vmatprep.subr.bf16.mxu0 %v967
        %1199 = vmatpush2.bf16.msra.mxu0 %v966
        %1200 = vmatprep.mubr.bf16.mxu0 %v1084
        %1201 = vmatmul.mubr.bf16.gmra.mxu0 %v782
        %v1202 = vpop.f32.mrf.mxu0
        %v1203 = vadd.f32 %v777, %v1202
        %v1204 = vpop.f32.mrf.mxu0
        %v1205 = vadd.f32 %v777, %v1204
        %v1206 = vpop.f32.mrf.mxu0
        %v1207 = vpop.f32.mrf.mxu0
        %1208 = vdwg.mxu0
        %1209 = vmatprep.subr.bf16.mxu0 %v1004
        %1210 = vmatpush1.bf16.msra.mxu0 %v958
        %1211 = vmatprep.subr.bf16.mxu0 %v1000
        %1212 = vmatpush1.bf16.msra.mxu0 %v948
        %1213 = vmatprep.subr.bf16.mxu0 %v997
        %1214 = vmatpush1.bf16.msra.mxu0 %v996
        %1215 = vmatprep.subr.bf16.mxu0 %v987
        %1216 = vmatpush1.bf16.msra.mxu0 %v986
        %1217 = vmatprep.subr.bf16.mxu0 %v977
        %1218 = vmatpush1.bf16.msra.mxu0 %v976
        %1219 = vmatprep.subr.bf16.mxu0 %v967
        %1220 = vmatpush1.bf16.msra.mxu0 %v966
        %1221 = vmatprep.subr.bf16.mxu0 %v957
        %1222 = vmatpush1.bf16.msra.mxu0 %v956
        %1223 = vmatprep.subr.bf16.mxu0 %v947
        %1224 = vmatpush1.bf16.msra.mxu0 %v946
        %1225 = vmatprep.subr.bf16.mxu0 0
        %1226 = vmatpush2.bf16.msra.mxu0 0
        %1227 = vmatprep.subr.bf16.mxu0 0
        %1228 = vmatpush2.bf16.msra.mxu0 0
        %1229 = vmatprep.subr.bf16.mxu0 0
        %1230 = vmatpush2.bf16.msra.mxu0 0
        %1231 = vmatprep.subr.bf16.mxu0 0
        %1232 = vmatpush2.bf16.msra.mxu0 0
        %1233 = vmatprep.subr.bf16.mxu0 0
        %1234 = vmatpush2.bf16.msra.mxu0 0
        %1235 = vmatprep.subr.bf16.mxu0 0
        %1236 = vmatpush2.bf16.msra.mxu0 0
        %1237 = vmatprep.subr.bf16.mxu0 0
        %1238 = vmatpush2.bf16.msra.mxu0 0
        %1239 = vmatprep.subr.bf16.mxu0 %v1008
        %1240 = vmatpush2.bf16.msra.mxu0 %v968
        %1241 = vmatprep.mubr.bf16.mxu0 %v1084
        %1242 = vmatmul.mubr.bf16.gmra.mxu0 %v782
        %v1243 = vpop.f32.mrf.mxu0
        %v1244 = vadd.f32 %v777, %v1243
        %v1245 = vpop.f32.mrf.mxu0
        %v1246 = vadd.f32 %v777, %v1245
        %v1247 = vpop.f32.mrf.mxu0
        %v1248 = vpop.f32.mrf.mxu0
        %1249 = vdwg.mxu0
        %1250 = vmatprep.subr.bf16.mxu0 %v1006
        %1251 = vmatpush1.bf16.msra.mxu0 %v1005
        %1252 = vmatprep.subr.bf16.mxu0 %v1002
        %1253 = vmatpush1.bf16.msra.mxu0 %v1001
        %1254 = vmatprep.subr.bf16.mxu0 %v999
        %1255 = vmatpush1.bf16.msra.mxu0 %v998
        %1256 = vmatprep.subr.bf16.mxu0 %v989
        %1257 = vmatpush1.bf16.msra.mxu0 %v988
        %1258 = vmatprep.subr.bf16.mxu0 %v979
        %1259 = vmatpush1.bf16.msra.mxu0 %v978
        %1260 = vmatprep.subr.bf16.mxu0 %v969
        %1261 = vmatpush1.bf16.msra.mxu0 %v968
        %1262 = vmatprep.subr.bf16.mxu0 %v959
        %1263 = vmatpush1.bf16.msra.mxu0 %v958
        %1264 = vmatprep.subr.bf16.mxu0 %v949
        %1265 = vmatpush1.bf16.msra.mxu0 %v948
        %1266 = vmatprep.subr.bf16.mxu0 0
        %1267 = vmatpush2.bf16.msra.mxu0 0
        %1268 = vmatprep.subr.bf16.mxu0 0
        %1269 = vmatpush2.bf16.msra.mxu0 0
        %1270 = vmatprep.subr.bf16.mxu0 0
        %1271 = vmatpush2.bf16.msra.mxu0 0
        %1272 = vmatprep.subr.bf16.mxu0 0
        %1273 = vmatpush2.bf16.msra.mxu0 0
        %1274 = vmatprep.subr.bf16.mxu0 0
        %1275 = vmatpush2.bf16.msra.mxu0 0
        %1276 = vmatprep.subr.bf16.mxu0 0
        %1277 = vmatpush2.bf16.msra.mxu0 0
        %1278 = vmatprep.subr.bf16.mxu0 0
        %1279 = vmatpush2.bf16.msra.mxu0 0
        %1280 = vmatprep.subr.bf16.mxu0 %v1010
        %1281 = vmatpush2.bf16.msra.mxu0 %v1009
        %1282 = vmatprep.mubr.bf16.mxu0 %v1084
        %1283 = vmatmul.mubr.bf16.gmra.mxu0 %v782
        %v1284 = vpop.f32.mrf.mxu0
        %v1285 = vadd.f32 %v777, %v1284
        %v1286 = vpop.f32.mrf.mxu0
        %v1287 = vadd.f32 %v777, %v1286
        %v1288 = vpop.f32.mrf.mxu0
        %v1289 = vpop.f32.mrf.mxu0
        %1290 = vdwg.mxu0
        %v1291 = vmax.f32 %v1121, 0.0
        %v1292 = vmax.f32 %v1123, 0.0
        %v1293 = vmax.f32 %v1162, 0.0
        %v1294 = vmax.f32 %v1164, 0.0
        %v1295 = vmax.f32 %v1203, 0.0
        %v1296 = vmax.f32 %v1205, 0.0
        %v1297 = vmax.f32 %v1244, 0.0
        %v1298 = vmax.f32 %v1246, 0.0
        %v1299 = vmax.f32 %v1285, 0.0
        %v1300 = vmax.f32 %v1287, 0.0
        %vm1301 = vcmp.gt.f32.partialorder %v483, 0.0
        %vm1302 = vcmp.gt.f32.partialorder %v484, 0.0
        %v1303 = vsel %vm1301, 1, 0
        %v1304 = vsel %vm1302, 1, 0
        %v1305 = vlaneseq
        %v1306 = vshrl.u32 %v1305, 7
        %v1307 = vsub.s32 0, %v1306
        %v1308 = vrot.slane %v1303, %v1307
        %v1309 = vlaneseq
        %v1310 = vshrl.u32 %v1309, 7
        %v1311 = vsub.s32 1, %v1310
        %v1312 = vrot.slane %v1303, %v1311
        %v1313 = vlaneseq
        %v1314 = vshrl.u32 %v1313, 7
        %v1315 = vsub.s32 2, %v1314
        %v1316 = vrot.slane %v1303, %v1315
        %v1317 = vlaneseq
        %v1318 = vshrl.u32 %v1317, 7
        %v1319 = vsub.s32 3, %v1318
        %v1320 = vrot.slane %v1303, %v1319
        %v1321 = vlaneseq
        %v1322 = vshrl.u32 %v1321, 7
        %v1323 = vsub.s32 4, %v1322
        %v1324 = vrot.slane %v1303, %v1323
        %v1325 = vlaneseq
        %v1326 = vshrl.u32 %v1325, 7
        %v1327 = vsub.s32 5, %v1326
        %v1328 = vrot.slane %v1303, %v1327
        %v1329 = vlaneseq
        %v1330 = vshrl.u32 %v1329, 7
        %v1331 = vsub.s32 6, %v1330
        %v1332 = vrot.slane %v1303, %v1331
        %v1333 = vlaneseq
        %v1334 = vshrl.u32 %v1333, 7
        %v1335 = vsub.s32 7, %v1334
        %v1336 = vrot.slane %v1303, %v1335
        %v1337 = vlaneseq
        %v1338 = vshrl.u32 %v1337, 7
        %v1339 = vsub.s32 0, %v1338
        %v1340 = vrot.slane %v1304, %v1339
        %v1341 = vlaneseq
        %v1342 = vshrl.u32 %v1341, 7
        %v1343 = vsub.s32 1, %v1342
        %v1344 = vrot.slane %v1304, %v1343
        %vm1345 = vcmp.eq.s32.totalorder %v1308, 1
        %vm1346 = vcmp.eq.s32.totalorder %v1312, 1
        %vm1347 = vcmp.eq.s32.totalorder %v1316, 1
        %vm1348 = vcmp.eq.s32.totalorder %v1320, 1
        %vm1349 = vcmp.eq.s32.totalorder %v1324, 1
        %vm1350 = vcmp.eq.s32.totalorder %v1328, 1
        %vm1351 = vcmp.eq.s32.totalorder %v1332, 1
        %vm1352 = vcmp.eq.s32.totalorder %v1336, 1
        %vm1353 = vcmp.eq.s32.totalorder %v1340, 1
        %vm1354 = vcmp.eq.s32.totalorder %v1344, 1
        %v1355 = vsel %vm1345, %v1291, 0.0
        %v1356 = vsel %vm1346, %v1292, 0.0
        %v1357 = vsel %vm1347, %v1293, 0.0
        %v1358 = vsel %vm1348, %v1294, 0.0
        %v1359 = vsel %vm1349, %v1295, 0.0
        %v1360 = vsel %vm1350, %v1296, 0.0
        %v1361 = vsel %vm1351, %v1297, 0.0
        %v1362 = vsel %vm1352, %v1298, 0.0
        %v1363 = vsel %vm1353, %v1299, 0.0
        %v1364 = vsel %vm1354, %v1300, 0.0
        %v1365 = vpack.c.bf16 %v1355, %v1355
        %v1366 = vpack.c.bf16 %v1356, %v1356
        %v1367 = vpack.c.bf16 %v1357, %v1357
        %v1368 = vpack.c.bf16 %v1358, %v1358
        %v1369 = vpack.c.bf16 %v1359, %v1359
        %v1370 = vpack.c.bf16 %v1360, %v1360
        %v1371 = vpack.c.bf16 %v1361, %v1361
        %v1372 = vpack.c.bf16 %v1362, %v1362
        %v1373 = vpack.c.bf16 %v1363, %v1363
        %v1374 = vpack.c.bf16 %v1364, %v1364
        %v1385 = vunpack.c.l.b16 %v1365
        %v1386 = vunpack.c.l.b16 %v1366
        %v1387 = vunpack.c.l.b16 %v1367
        %v1388 = vunpack.c.l.b16 %v1368
        %v1389 = vunpack.c.l.b16 %v1369
        %v1390 = vunpack.c.l.b16 %v1370
        %v1391 = vunpack.c.l.b16 %v1371
        %v1392 = vunpack.c.l.b16 %v1372
        %v1393 = vunpack.c.l.b16 %v1373
        %v1394 = vunpack.c.l.b16 %v1374
        %v1395 = vpack.c.b16 %v1386, %v1385
        %v1396 = vpack.c.b16 %v1388, %v1387
        %v1397 = vpack.c.b16 %v1390, %v1389
        %v1398 = vpack.c.b16 %v1392, %v1391
        %v1399 = vpack.c.b16 %v1394, %v1393
        %1405 = vst [vmem:[#allocation2 + $0x78] sm:$0xff] %v1395
        %1406 = vst [vmem:[#allocation2 + $0x80] sm:$0xff] %v1396
        %1407 = vst [vmem:[#allocation2 + $0x88] sm:$0xff] %v1397
        %1408 = vst [vmem:[#allocation2 + $0x90] sm:$0xff] %v1398
        %1409 = vst [vmem:[#allocation2 + $0x98] sm:$0xff] %v1399
        %v1410 = vld [vmem:[#allocation8] sm:$0xff]
        %v1411 = vld [vmem:[%s5] sm:$0xff]
        %v1412 = vld [vmem:[#allocation2] sm:$0xff]
        %v1413 = vld [vmem:[#allocation2 + $0x8] sm:$0xff]
        %v1414 = vld [vmem:[#allocation2 + $0x10] sm:$0xff]
        %v1415 = vld [vmem:[#allocation2 + $0x18] sm:$0xff]
        %v1416 = vld [vmem:[#allocation2 + $0x20] sm:$0xff]
        %v1417 = vld [vmem:[#allocation2 + $0x28] sm:$0xf]
        %v1418 = vld [vmem:[#allocation2 + $0x38] sm:$0xff]
        %v1419 = vld [vmem:[#allocation2 + $0x40] sm:$0xff]
        %v1420 = vld [vmem:[#allocation2 + $0x48] sm:$0xff]
        %v1421 = vld [vmem:[#allocation2 + $0x50] sm:$0xff]
        %v1422 = vld [vmem:[#allocation2 + $0x58] sm:$0xff]
        %v1423 = vld [vmem:[#allocation2 + $0x60] sm:$0xf]
        %v1424 = vld [vmem:[#allocation2 + $0x70] sm:$0xff]
        %v1425 = vld [vmem:[#allocation2 + $0x78] sm:$0xff]
        %v1426 = vld [vmem:[#allocation2 + $0x80] sm:$0xff]
        %v1427 = vld [vmem:[#allocation2 + $0x88] sm:$0xff]
        %v1428 = vld [vmem:[#allocation2 + $0x90] sm:$0xff]
        %v1429 = vld [vmem:[#allocation2 + $0x98] sm:$0xf]
        %v1430 = vld [vmem:[#allocation2 + $0x4] sm:$0xff]
        %v1431 = vld [vmem:[#allocation2 + $0xc] sm:$0xff]
        %v1432 = vld [vmem:[#allocation2 + $0x14] sm:$0xff]
        %v1433 = vld [vmem:[#allocation2 + $0x1c] sm:$0xff]
        %v1434 = vld [vmem:[#allocation2 + $0x24] sm:$0xff]
        %v1435 = vld [vmem:[#allocation2 + $0x3c] sm:$0xff]
        %v1436 = vld [vmem:[#allocation2 + $0x44] sm:$0xff]
        %v1437 = vld [vmem:[#allocation2 + $0x4c] sm:$0xff]
        %v1438 = vld [vmem:[#allocation2 + $0x54] sm:$0xff]
        %v1439 = vld [vmem:[#allocation2 + $0x5c] sm:$0xff]
        %v1440 = vld [vmem:[#allocation2 + $0x74] sm:$0xff]
        %v1441 = vld [vmem:[#allocation2 + $0x7c] sm:$0xff]
        %v1442 = vld [vmem:[#allocation2 + $0x84] sm:$0xff]
        %v1443 = vld [vmem:[#allocation2 + $0x8c] sm:$0xff]
        %v1444 = vld [vmem:[#allocation2 + $0x94] sm:$0xff]
        %v1445 = vld [vmem:[#allocation2 + $0x2c] sm:$0xf]
        %v1446 = vld [vmem:[#allocation2 + $0x64] sm:$0xf]
        %v1447 = vld [vmem:[#allocation2 + $0x9c] sm:$0xf]
        %v1448 = vld [vmem:[#allocation2 + $0x28] sm:$0xff]
        %v1449 = vld [vmem:[#allocation2 + $0x60] sm:$0xff]
        %v1450 = vld [vmem:[#allocation2 + $0x98] sm:$0xff]
        %v1451 = vld [vmem:[#allocation2 + $0x30] sm:$0xf]
        %v1452 = vld [vmem:[#allocation2 + $0x68] sm:$0xf]
        %v1453 = vld [vmem:[#allocation2 + $0xa0] sm:$0xf]
        %v1454 = vld [vmem:[#allocation2 + $0x2c] sm:$0xff]
        %v1455 = vld [vmem:[#allocation2 + $0x64] sm:$0xff]
        %v1456 = vld [vmem:[#allocation2 + $0x9c] sm:$0xff]
        %v1457 = vld [vmem:[#allocation2 + $0x34] sm:$0xf]
        %v1458 = vld [vmem:[#allocation2 + $0x6c] sm:$0xf]
        %v1459 = vld [vmem:[#allocation2 + $0xa4] sm:$0xf]
        %v1478 = vunpack.c.l.b16 %v1412
        %v1479 = vunpack.c.h.b16 %v1412
        %v1480 = vunpack.c.l.b16 %v1413
        %v1481 = vunpack.c.h.b16 %v1413
        %v1482 = vunpack.c.l.b16 %v1414
        %v1483 = vunpack.c.h.b16 %v1414
        %v1484 = vunpack.c.l.b16 %v1415
        %v1485 = vunpack.c.h.b16 %v1415
        %v1486 = vunpack.c.l.b16 %v1416
        %v1487 = vunpack.c.h.b16 %v1416
        %v1488 = vunpack.c.l.b16 %v1417
        %v1489 = vunpack.c.l.b16 %v1418
        %v1490 = vunpack.c.h.b16 %v1418
        %v1491 = vunpack.c.l.b16 %v1419
        %v1492 = vunpack.c.h.b16 %v1419
        %v1493 = vunpack.c.l.b16 %v1420
        %v1494 = vunpack.c.h.b16 %v1420
        %v1495 = vunpack.c.l.b16 %v1421
        %v1496 = vunpack.c.h.b16 %v1421
        %v1497 = vunpack.c.l.b16 %v1422
        %v1498 = vunpack.c.h.b16 %v1422
        %v1499 = vunpack.c.l.b16 %v1423
        %v1500 = vunpack.c.l.b16 %v1424
        %v1501 = vunpack.c.h.b16 %v1424
        %v1502 = vunpack.c.l.b16 %v1425
        %v1503 = vunpack.c.h.b16 %v1425
        %v1504 = vunpack.c.l.b16 %v1426
        %v1505 = vunpack.c.h.b16 %v1426
        %v1506 = vunpack.c.l.b16 %v1427
        %v1507 = vunpack.c.h.b16 %v1427
        %v1508 = vunpack.c.l.b16 %v1428
        %v1509 = vunpack.c.h.b16 %v1428
        %v1510 = vunpack.c.l.b16 %v1429
        %v1511 = vpack.c.b16 %v1489, %v1478
        %v1512 = vpack.c.b16 %v1490, %v1479
        %v1513 = vpack.c.b16 %v1491, %v1480
        %v1514 = vpack.c.b16 %v1492, %v1481
        %v1515 = vpack.c.b16 %v1493, %v1482
        %v1516 = vpack.c.b16 %v1494, %v1483
        %v1517 = vpack.c.b16 %v1495, %v1484
        %v1518 = vpack.c.b16 %v1496, %v1485
        %v1519 = vpack.c.b16 %v1497, %v1486
        %v1520 = vpack.c.b16 %v1498, %v1487
        %v1521 = vpack.c.b16 %v1499, %v1488
        %v1522 = vpack.c.b16 %v1500, %v1500
        %v1523 = vpack.c.b16 %v1501, %v1501
        %v1524 = vpack.c.b16 %v1502, %v1502
        %v1525 = vpack.c.b16 %v1503, %v1503
        %v1526 = vpack.c.b16 %v1504, %v1504
        %v1527 = vpack.c.b16 %v1505, %v1505
        %v1528 = vpack.c.b16 %v1506, %v1506
        %v1529 = vpack.c.b16 %v1507, %v1507
        %v1530 = vpack.c.b16 %v1508, %v1508
        %v1531 = vpack.c.b16 %v1509, %v1509
        %v1532 = vpack.c.b16 %v1510, %v1510
        %v1548 = vunpack.c.l.b16 %v1430
        %v1549 = vunpack.c.h.b16 %v1430
        %v1550 = vunpack.c.l.b16 %v1431
        %v1551 = vunpack.c.h.b16 %v1431
        %v1552 = vunpack.c.l.b16 %v1432
        %v1553 = vunpack.c.h.b16 %v1432
        %v1554 = vunpack.c.l.b16 %v1433
        %v1555 = vunpack.c.h.b16 %v1433
        %v1556 = vunpack.c.l.b16 %v1434
        %v1557 = vunpack.c.h.b16 %v1434
        %v1558 = vunpack.c.l.b16 %v1435
        %v1559 = vunpack.c.h.b16 %v1435
        %v1560 = vunpack.c.l.b16 %v1436
        %v1561 = vunpack.c.h.b16 %v1436
        %v1562 = vunpack.c.l.b16 %v1437
        %v1563 = vunpack.c.h.b16 %v1437
        %v1564 = vunpack.c.l.b16 %v1438
        %v1565 = vunpack.c.h.b16 %v1438
        %v1566 = vunpack.c.l.b16 %v1439
        %v1567 = vunpack.c.h.b16 %v1439
        %v1568 = vunpack.c.l.b16 %v1440
        %v1569 = vunpack.c.h.b16 %v1440
        %v1570 = vunpack.c.l.b16 %v1441
        %v1571 = vunpack.c.h.b16 %v1441
        %v1572 = vunpack.c.l.b16 %v1442
        %v1573 = vunpack.c.h.b16 %v1442
        %v1574 = vunpack.c.l.b16 %v1443
        %v1575 = vunpack.c.h.b16 %v1443
        %v1576 = vunpack.c.l.b16 %v1444
        %v1577 = vunpack.c.h.b16 %v1444
        %v1578 = vpack.c.b16 %v1548, %v1548
        %v1579 = vpack.c.b16 %v1549, %v1549
        %v1580 = vpack.c.b16 %v1550, %v1550
        %v1581 = vpack.c.b16 %v1551, %v1551
        %v1582 = vpack.c.b16 %v1552, %v1552
        %v1583 = vpack.c.b16 %v1553, %v1553
        %v1584 = vpack.c.b16 %v1554, %v1554
        %v1585 = vpack.c.b16 %v1555, %v1555
        %v1586 = vpack.c.b16 %v1556, %v1556
        %v1587 = vpack.c.b16 %v1557, %v1557
        %v1588 = vpack.c.b16 %v1568, %v1558
        %v1589 = vpack.c.b16 %v1569, %v1559
        %v1590 = vpack.c.b16 %v1570, %v1560
        %v1591 = vpack.c.b16 %v1571, %v1561
        %v1592 = vpack.c.b16 %v1572, %v1562
        %v1593 = vpack.c.b16 %v1573, %v1563
        %v1594 = vpack.c.b16 %v1574, %v1564
        %v1595 = vpack.c.b16 %v1575, %v1565
        %v1596 = vpack.c.b16 %v1576, %v1566
        %v1597 = vpack.c.b16 %v1577, %v1567
        %1598 = vrot.lane.b32.xlu0 %v1578, 127
        %v1599 = vpop.permute.xlu0 %1598
        %1600 = vrot.lane.b32.xlu0 %v1579, 127
        %v1601 = vpop.permute.xlu0 %1600
        %1602 = vrot.lane.b32.xlu0 %v1580, 127
        %v1603 = vpop.permute.xlu0 %1602
        %1604 = vrot.lane.b32.xlu0 %v1581, 127
        %v1605 = vpop.permute.xlu0 %1604
        %1606 = vrot.lane.b32.xlu0 %v1582, 127
        %v1607 = vpop.permute.xlu0 %1606
        %1608 = vrot.lane.b32.xlu0 %v1583, 127
        %v1609 = vpop.permute.xlu0 %1608
        %1610 = vrot.lane.b32.xlu0 %v1584, 127
        %v1611 = vpop.permute.xlu0 %1610
        %1612 = vrot.lane.b32.xlu0 %v1585, 127
        %v1613 = vpop.permute.xlu0 %1612
        %1614 = vrot.lane.b32.xlu0 %v1586, 127
        %v1615 = vpop.permute.xlu0 %1614
        %1616 = vrot.lane.b32.xlu0 %v1587, 127
        %v1617 = vpop.permute.xlu0 %1616
        %1618 = vrot.lane.b32.xlu0 %v1588, 127
        %v1619 = vpop.permute.xlu0 %1618
        %1620 = vrot.lane.b32.xlu0 %v1589, 127
        %v1621 = vpop.permute.xlu0 %1620
        %1622 = vrot.lane.b32.xlu0 %v1590, 127
        %v1623 = vpop.permute.xlu0 %1622
        %1624 = vrot.lane.b32.xlu0 %v1591, 127
        %v1625 = vpop.permute.xlu0 %1624
        %1626 = vrot.lane.b32.xlu0 %v1592, 127
        %v1627 = vpop.permute.xlu0 %1626
        %1628 = vrot.lane.b32.xlu0 %v1593, 127
        %v1629 = vpop.permute.xlu0 %1628
        %1630 = vrot.lane.b32.xlu0 %v1594, 127
        %v1631 = vpop.permute.xlu0 %1630
        %1632 = vrot.lane.b32.xlu0 %v1595, 127
        %v1633 = vpop.permute.xlu0 %1632
        %1634 = vrot.lane.b32.xlu0 %v1596, 127
        %v1635 = vpop.permute.xlu0 %1634
        %1636 = vrot.lane.b32.xlu0 %v1597, 127
        %v1637 = vpop.permute.xlu0 %1636
        %v1638 = vsel %vm624, %v1599, %v1601
        %v1639 = vsel %vm624, %v1601, %v1603
        %v1640 = vsel %vm624, %v1603, %v1605
        %v1641 = vsel %vm624, %v1605, %v1607
        %v1642 = vsel %vm624, %v1607, %v1609
        %v1643 = vsel %vm624, %v1609, %v1611
        %v1644 = vsel %vm624, %v1611, %v1613
        %v1645 = vsel %vm624, %v1613, %v1615
        %v1646 = vsel %vm624, %v1615, %v1617
        %v1647 = vsel %vm624, %v1619, %v1621
        %v1648 = vsel %vm624, %v1621, %v1623
        %v1649 = vsel %vm624, %v1623, %v1625
        %v1650 = vsel %vm624, %v1625, %v1627
        %v1651 = vsel %vm624, %v1627, %v1629
        %v1652 = vsel %vm624, %v1629, %v1631
        %v1653 = vsel %vm624, %v1631, %v1633
        %v1654 = vsel %vm624, %v1633, %v1635
        %v1655 = vsel %vm624, %v1635, %v1637
        %v1659 = vunpack.c.l.b16 %v1445
        %v1660 = vunpack.c.l.b16 %v1446
        %v1661 = vunpack.c.l.b16 %v1447
        %v1662 = vpack.c.b16 %v1558, %v1548
        %v1663 = vpack.c.b16 %v1559, %v1549
        %v1664 = vpack.c.b16 %v1560, %v1550
        %v1665 = vpack.c.b16 %v1561, %v1551
        %v1666 = vpack.c.b16 %v1562, %v1552
        %v1667 = vpack.c.b16 %v1563, %v1553
        %v1668 = vpack.c.b16 %v1564, %v1554
        %v1669 = vpack.c.b16 %v1565, %v1555
        %v1670 = vpack.c.b16 %v1566, %v1556
        %v1671 = vpack.c.b16 %v1567, %v1557
        %v1672 = vpack.c.b16 %v1660, %v1659
        %v1673 = vpack.c.b16 %v1568, %v1568
        %v1674 = vpack.c.b16 %v1569, %v1569
        %v1675 = vpack.c.b16 %v1570, %v1570
        %v1676 = vpack.c.b16 %v1571, %v1571
        %v1677 = vpack.c.b16 %v1572, %v1572
        %v1678 = vpack.c.b16 %v1573, %v1573
        %v1679 = vpack.c.b16 %v1574, %v1574
        %v1680 = vpack.c.b16 %v1575, %v1575
        %v1681 = vpack.c.b16 %v1576, %v1576
        %v1682 = vpack.c.b16 %v1577, %v1577
        %v1683 = vpack.c.b16 %v1661, %v1661
        %1684 = vrot.lane.b32.xlu0 %v1662, 126
        %v1685 = vpop.permute.xlu0 %1684
        %1686 = vrot.lane.b32.xlu0 %v1663, 126
        %v1687 = vpop.permute.xlu0 %1686
        %1688 = vrot.lane.b32.xlu0 %v1664, 126
        %v1689 = vpop.permute.xlu0 %1688
        %1690 = vrot.lane.b32.xlu0 %v1665, 126
        %v1691 = vpop.permute.xlu0 %1690
        %1692 = vrot.lane.b32.xlu0 %v1666, 126
        %v1693 = vpop.permute.xlu0 %1692
        %1694 = vrot.lane.b32.xlu0 %v1667, 126
        %v1695 = vpop.permute.xlu0 %1694
        %1696 = vrot.lane.b32.xlu0 %v1668, 126
        %v1697 = vpop.permute.xlu0 %1696
        %1698 = vrot.lane.b32.xlu0 %v1669, 126
        %v1699 = vpop.permute.xlu0 %1698
        %1700 = vrot.lane.b32.xlu0 %v1670, 126
        %v1701 = vpop.permute.xlu0 %1700
        %1702 = vrot.lane.b32.xlu0 %v1671, 126
        %v1703 = vpop.permute.xlu0 %1702
        %1704 = vrot.lane.b32.xlu0 %v1672, 126
        %v1705 = vpop.permute.xlu0 %1704
        %1706 = vrot.lane.b32.xlu0 %v1673, 126
        %v1707 = vpop.permute.xlu0 %1706
        %1708 = vrot.lane.b32.xlu0 %v1674, 126
        %v1709 = vpop.permute.xlu0 %1708
        %1710 = vrot.lane.b32.xlu0 %v1675, 126
        %v1711 = vpop.permute.xlu0 %1710
        %1712 = vrot.lane.b32.xlu0 %v1676, 126
        %v1713 = vpop.permute.xlu0 %1712
        %1714 = vrot.lane.b32.xlu0 %v1677, 126
        %v1715 = vpop.permute.xlu0 %1714
        %1716 = vrot.lane.b32.xlu0 %v1678, 126
        %v1717 = vpop.permute.xlu0 %1716
        %1718 = vrot.lane.b32.xlu0 %v1679, 126
        %v1719 = vpop.permute.xlu0 %1718
        %1720 = vrot.lane.b32.xlu0 %v1680, 126
        %v1721 = vpop.permute.xlu0 %1720
        %1722 = vrot.lane.b32.xlu0 %v1681, 126
        %v1723 = vpop.permute.xlu0 %1722
        %1724 = vrot.lane.b32.xlu0 %v1682, 126
        %v1725 = vpop.permute.xlu0 %1724
        %1726 = vrot.lane.b32.xlu0 %v1683, 126
        %v1727 = vpop.permute.xlu0 %1726
        %v1728 = vsel %vm661, %v1685, %v1687
        %v1729 = vsel %vm661, %v1687, %v1689
        %v1730 = vsel %vm661, %v1689, %v1691
        %v1731 = vsel %vm661, %v1691, %v1693
        %v1732 = vsel %vm661, %v1693, %v1695
        %v1733 = vsel %vm661, %v1695, %v1697
        %v1734 = vsel %vm661, %v1697, %v1699
        %v1735 = vsel %vm661, %v1699, %v1701
        %v1736 = vsel %vm661, %v1701, %v1703
        %v1737 = vsel %vm661, %v1703, %v1705
        %v1738 = vsel %vm661, %v1707, %v1709
        %v1739 = vsel %vm661, %v1709, %v1711
        %v1740 = vsel %vm661, %v1711, %v1713
        %v1741 = vsel %vm661, %v1713, %v1715
        %v1742 = vsel %vm661, %v1715, %v1717
        %v1743 = vsel %vm661, %v1717, %v1719
        %v1744 = vsel %vm661, %v1719, %v1721
        %v1745 = vsel %vm661, %v1721, %v1723
        %v1746 = vsel %vm661, %v1723, %v1725
        %v1747 = vsel %vm661, %v1725, %v1727
        %v1748 = vpack.c.b16 %v1659, %v1659
        %v1749 = vpack.c.b16 %v1661, %v1660
        %v1753 = vunpack.c.l.b16 %v1448
        %v1754 = vunpack.c.h.b16 %v1448
        %v1755 = vunpack.c.l.b16 %v1449
        %v1756 = vunpack.c.h.b16 %v1449
        %v1757 = vunpack.c.l.b16 %v1450
        %v1758 = vunpack.c.h.b16 %v1450
        %v1759 = vpack.c.b16 %v1755, %v1753
        %v1760 = vpack.c.b16 %v1756, %v1754
        %v1761 = vpack.c.b16 %v1757, %v1757
        %v1762 = vpack.c.b16 %v1758, %v1758
        %1763 = vrot.lane.b32.xlu0 %v1513, 127
        %v1764 = vpop.permute.xlu0 %1763
        %1765 = vrot.lane.b32.xlu0 %v1514, 127
        %v1766 = vpop.permute.xlu0 %1765
        %1767 = vrot.lane.b32.xlu0 %v1515, 127
        %v1768 = vpop.permute.xlu0 %1767
        %1769 = vrot.lane.b32.xlu0 %v1516, 127
        %v1770 = vpop.permute.xlu0 %1769
        %1771 = vrot.lane.b32.xlu0 %v1517, 127
        %v1772 = vpop.permute.xlu0 %1771
        %1773 = vrot.lane.b32.xlu0 %v1518, 127
        %v1774 = vpop.permute.xlu0 %1773
        %1775 = vrot.lane.b32.xlu0 %v1519, 127
        %v1776 = vpop.permute.xlu0 %1775
        %1777 = vrot.lane.b32.xlu0 %v1520, 127
        %v1778 = vpop.permute.xlu0 %1777
        %1779 = vrot.lane.b32.xlu0 %v1759, 127
        %v1780 = vpop.permute.xlu0 %1779
        %1781 = vrot.lane.b32.xlu0 %v1760, 127
        %v1782 = vpop.permute.xlu0 %1781
        %1783 = vrot.lane.b32.xlu0 %v1524, 127
        %v1784 = vpop.permute.xlu0 %1783
        %1785 = vrot.lane.b32.xlu0 %v1525, 127
        %v1786 = vpop.permute.xlu0 %1785
        %1787 = vrot.lane.b32.xlu0 %v1526, 127
        %v1788 = vpop.permute.xlu0 %1787
        %1789 = vrot.lane.b32.xlu0 %v1527, 127
        %v1790 = vpop.permute.xlu0 %1789
        %1791 = vrot.lane.b32.xlu0 %v1528, 127
        %v1792 = vpop.permute.xlu0 %1791
        %1793 = vrot.lane.b32.xlu0 %v1529, 127
        %v1794 = vpop.permute.xlu0 %1793
        %1795 = vrot.lane.b32.xlu0 %v1530, 127
        %v1796 = vpop.permute.xlu0 %1795
        %1797 = vrot.lane.b32.xlu0 %v1531, 127
        %v1798 = vpop.permute.xlu0 %1797
        %1799 = vrot.lane.b32.xlu0 %v1761, 127
        %v1800 = vpop.permute.xlu0 %1799
        %1801 = vrot.lane.b32.xlu0 %v1762, 127
        %v1802 = vpop.permute.xlu0 %1801
        %v1803 = vsel %vm624, %v1764, %v1766
        %v1804 = vsel %vm624, %v1766, %v1768
        %v1805 = vsel %vm624, %v1768, %v1770
        %v1806 = vsel %vm624, %v1770, %v1772
        %v1807 = vsel %vm624, %v1772, %v1774
        %v1808 = vsel %vm624, %v1774, %v1776
        %v1809 = vsel %vm624, %v1776, %v1778
        %v1810 = vsel %vm624, %v1778, %v1780
        %v1811 = vsel %vm624, %v1780, %v1782
        %v1812 = vsel %vm624, %v1784, %v1786
        %v1813 = vsel %vm624, %v1786, %v1788
        %v1814 = vsel %vm624, %v1788, %v1790
        %v1815 = vsel %vm624, %v1790, %v1792
        %v1816 = vsel %vm624, %v1792, %v1794
        %v1817 = vsel %vm624, %v1794, %v1796
        %v1818 = vsel %vm624, %v1796, %v1798
        %v1819 = vsel %vm624, %v1798, %v1800
        %v1820 = vsel %vm624, %v1800, %v1802
        %v1824 = vunpack.c.l.b16 %v1451
        %v1825 = vunpack.c.l.b16 %v1452
        %v1826 = vunpack.c.l.b16 %v1453
        %v1827 = vpack.c.b16 %v1480, %v1480
        %v1828 = vpack.c.b16 %v1481, %v1481
        %v1829 = vpack.c.b16 %v1482, %v1482
        %v1830 = vpack.c.b16 %v1483, %v1483
        %v1831 = vpack.c.b16 %v1484, %v1484
        %v1832 = vpack.c.b16 %v1485, %v1485
        %v1833 = vpack.c.b16 %v1486, %v1486
        %v1834 = vpack.c.b16 %v1487, %v1487
        %v1835 = vpack.c.b16 %v1753, %v1753
        %v1836 = vpack.c.b16 %v1754, %v1754
        %v1837 = vpack.c.b16 %v1824, %v1824
        %v1838 = vpack.c.b16 %v1502, %v1491
        %v1839 = vpack.c.b16 %v1503, %v1492
        %v1840 = vpack.c.b16 %v1504, %v1493
        %v1841 = vpack.c.b16 %v1505, %v1494
        %v1842 = vpack.c.b16 %v1506, %v1495
        %v1843 = vpack.c.b16 %v1507, %v1496
        %v1844 = vpack.c.b16 %v1508, %v1497
        %v1845 = vpack.c.b16 %v1509, %v1498
        %v1846 = vpack.c.b16 %v1757, %v1755
        %v1847 = vpack.c.b16 %v1758, %v1756
        %v1848 = vpack.c.b16 %v1826, %v1825
        %1849 = vrot.lane.b32.xlu0 %v1827, 126
        %v1850 = vpop.permute.xlu0 %1849
        %1851 = vrot.lane.b32.xlu0 %v1828, 126
        %v1852 = vpop.permute.xlu0 %1851
        %1853 = vrot.lane.b32.xlu0 %v1829, 126
        %v1854 = vpop.permute.xlu0 %1853
        %1855 = vrot.lane.b32.xlu0 %v1830, 126
        %v1856 = vpop.permute.xlu0 %1855
        %1857 = vrot.lane.b32.xlu0 %v1831, 126
        %v1858 = vpop.permute.xlu0 %1857
        %1859 = vrot.lane.b32.xlu0 %v1832, 126
        %v1860 = vpop.permute.xlu0 %1859
        %1861 = vrot.lane.b32.xlu0 %v1833, 126
        %v1862 = vpop.permute.xlu0 %1861
        %1863 = vrot.lane.b32.xlu0 %v1834, 126
        %v1864 = vpop.permute.xlu0 %1863
        %1865 = vrot.lane.b32.xlu0 %v1835, 126
        %v1866 = vpop.permute.xlu0 %1865
        %1867 = vrot.lane.b32.xlu0 %v1836, 126
        %v1868 = vpop.permute.xlu0 %1867
        %1869 = vrot.lane.b32.xlu0 %v1837, 126
        %v1870 = vpop.permute.xlu0 %1869
        %1871 = vrot.lane.b32.xlu0 %v1838, 126
        %v1872 = vpop.permute.xlu0 %1871
        %1873 = vrot.lane.b32.xlu0 %v1839, 126
        %v1874 = vpop.permute.xlu0 %1873
        %1875 = vrot.lane.b32.xlu0 %v1840, 126
        %v1876 = vpop.permute.xlu0 %1875
        %1877 = vrot.lane.b32.xlu0 %v1841, 126
        %v1878 = vpop.permute.xlu0 %1877
        %1879 = vrot.lane.b32.xlu0 %v1842, 126
        %v1880 = vpop.permute.xlu0 %1879
        %1881 = vrot.lane.b32.xlu0 %v1843, 126
        %v1882 = vpop.permute.xlu0 %1881
        %1883 = vrot.lane.b32.xlu0 %v1844, 126
        %v1884 = vpop.permute.xlu0 %1883
        %1885 = vrot.lane.b32.xlu0 %v1845, 126
        %v1886 = vpop.permute.xlu0 %1885
        %1887 = vrot.lane.b32.xlu0 %v1846, 126
        %v1888 = vpop.permute.xlu0 %1887
        %1889 = vrot.lane.b32.xlu0 %v1847, 126
        %v1890 = vpop.permute.xlu0 %1889
        %1891 = vrot.lane.b32.xlu0 %v1848, 126
        %v1892 = vpop.permute.xlu0 %1891
        %v1893 = vsel %vm661, %v1850, %v1852
        %v1894 = vsel %vm661, %v1852, %v1854
        %v1895 = vsel %vm661, %v1854, %v1856
        %v1896 = vsel %vm661, %v1856, %v1858
        %v1897 = vsel %vm661, %v1858, %v1860
        %v1898 = vsel %vm661, %v1860, %v1862
        %v1899 = vsel %vm661, %v1862, %v1864
        %v1900 = vsel %vm661, %v1864, %v1866
        %v1901 = vsel %vm661, %v1866, %v1868
        %v1902 = vsel %vm661, %v1868, %v1870
        %v1903 = vsel %vm661, %v1872, %v1874
        %v1904 = vsel %vm661, %v1874, %v1876
        %v1905 = vsel %vm661, %v1876, %v1878
        %v1906 = vsel %vm661, %v1878, %v1880
        %v1907 = vsel %vm661, %v1880, %v1882
        %v1908 = vsel %vm661, %v1882, %v1884
        %v1909 = vsel %vm661, %v1884, %v1886
        %v1910 = vsel %vm661, %v1886, %v1888
        %v1911 = vsel %vm661, %v1888, %v1890
        %v1912 = vsel %vm661, %v1890, %v1892
        %v1913 = vpack.c.b16 %v1825, %v1824
        %v1914 = vpack.c.b16 %v1826, %v1826
        %v1918 = vunpack.c.l.b16 %v1454
        %v1919 = vunpack.c.h.b16 %v1454
        %v1920 = vunpack.c.l.b16 %v1455
        %v1921 = vunpack.c.h.b16 %v1455
        %v1922 = vunpack.c.l.b16 %v1456
        %v1923 = vunpack.c.h.b16 %v1456
        %v1924 = vpack.c.b16 %v1918, %v1918
        %v1925 = vpack.c.b16 %v1919, %v1919
        %v1926 = vpack.c.b16 %v1922, %v1920
        %v1927 = vpack.c.b16 %v1923, %v1921
        %1928 = vrot.lane.b32.xlu0 %v1924, 127
        %v1929 = vpop.permute.xlu0 %1928
        %1930 = vrot.lane.b32.xlu0 %v1925, 127
        %v1931 = vpop.permute.xlu0 %1930
        %1932 = vrot.lane.b32.xlu0 %v1926, 127
        %v1933 = vpop.permute.xlu0 %1932
        %1934 = vrot.lane.b32.xlu0 %v1927, 127
        %v1935 = vpop.permute.xlu0 %1934
        %v1936 = vsel %vm624, %v1617, %v1929
        %v1937 = vsel %vm624, %v1929, %v1931
        %v1938 = vsel %vm624, %v1637, %v1933
        %v1939 = vsel %vm624, %v1933, %v1935
        %v1943 = vunpack.c.l.b16 %v1457
        %v1944 = vunpack.c.l.b16 %v1458
        %v1945 = vunpack.c.l.b16 %v1459
        %v1946 = vpack.c.b16 %v1920, %v1918
        %v1947 = vpack.c.b16 %v1921, %v1919
        %v1948 = vpack.c.b16 %v1944, %v1943
        %v1949 = vpack.c.b16 %v1922, %v1922
        %v1950 = vpack.c.b16 %v1923, %v1923
        %v1951 = vpack.c.b16 %v1945, %v1945
        %1952 = vrot.lane.b32.xlu0 %v1946, 126
        %v1953 = vpop.permute.xlu0 %1952
        %1954 = vrot.lane.b32.xlu0 %v1947, 126
        %v1955 = vpop.permute.xlu0 %1954
        %1956 = vrot.lane.b32.xlu0 %v1948, 126
        %v1957 = vpop.permute.xlu0 %1956
        %1958 = vrot.lane.b32.xlu0 %v1949, 126
        %v1959 = vpop.permute.xlu0 %1958
        %1960 = vrot.lane.b32.xlu0 %v1950, 126
        %v1961 = vpop.permute.xlu0 %1960
        %1962 = vrot.lane.b32.xlu0 %v1951, 126
        %v1963 = vpop.permute.xlu0 %1962
        %v1964 = vsel %vm661, %v1703, %v1953
        %v1965 = vsel %vm661, %v1953, %v1955
        %v1966 = vsel %vm661, %v1955, %v1957
        %v1967 = vsel %vm661, %v1725, %v1959
        %v1968 = vsel %vm661, %v1959, %v1961
        %v1969 = vsel %vm661, %v1961, %v1963
        %vm1970 = vcmask 1043456
        %v1973 = vsel %vm1970, %v1522, %v1599
        %v1976 = vsel %vm1970, %v1523, %v1638
        %v1979 = vsel %vm1970, %v1524, %v1639
        %v1982 = vsel %vm1970, %v1525, %v1640
        %v1985 = vsel %vm1970, %v1526, %v1641
        %v1988 = vsel %vm1970, %v1527, %v1642
        %v1991 = vsel %vm1970, %v1528, %v1643
        %v1994 = vsel %vm1970, %v1529, %v1644
        %v1997 = vsel %vm1970, %v1530, %v1645
        %v2000 = vsel %vm1970, %v1531, %v1646
        %v2003 = vsel %vm1970, %v1532, %v1617
        %v2006 = vsel %vm1970, %v1707, %v1578
        %v2009 = vsel %vm1970, %v1738, %v1579
        %v2012 = vsel %vm1970, %v1739, %v1580
        %v2015 = vsel %vm1970, %v1740, %v1581
        %v2018 = vsel %vm1970, %v1741, %v1582
        %v2021 = vsel %vm1970, %v1742, %v1583
        %v2024 = vsel %vm1970, %v1743, %v1584
        %v2027 = vsel %vm1970, %v1744, %v1585
        %v2030 = vsel %vm1970, %v1745, %v1586
        %v2033 = vsel %vm1970, %v1746, %v1587
        %v2036 = vsel %vm1970, %v1747, %v1748
        %v2039 = vsel %vm1970, %v1784, %v1850
        %v2042 = vsel %vm1970, %v1812, %v1893
        %v2045 = vsel %vm1970, %v1813, %v1894
        %v2048 = vsel %vm1970, %v1814, %v1895
        %v2051 = vsel %vm1970, %v1815, %v1896
        %v2054 = vsel %vm1970, %v1816, %v1897
        %v2057 = vsel %vm1970, %v1817, %v1898
        %v2060 = vsel %vm1970, %v1818, %v1899
        %v2063 = vsel %vm1970, %v1819, %v1900
        %v2066 = vsel %vm1970, %v1820, %v1901
        %v2069 = vsel %vm1970, %v1802, %v1902
        %v2071 = vsel %vm1970, %v1524, %v1603
        %v2074 = vsel %vm1970, %v1761, %v1936
        %v2077 = vsel %vm1970, %v1762, %v1937
        %v2080 = vsel %vm1970, %v1914, %v1931
        %2082 = vset.pattern.permute.xlu0 0
        %2083 = vperm.xlu0 %2082, %v1411
        %v2084 = vpop.permute.xlu0 %2083
        %v2087 = vunpack.c.l.b16 %v1410
        %v2088 = vunpack.c.h.b16 %v1410
        %v2089 = vpack.c.b16 %v2087, %v2087
        %v2090 = vpack.c.b16 %v2088, %v2088
        %2129 = vrot.lane.b32.xlu0 %v1511, 1
        %v2130 = vpop.permute.xlu0 %2129
        %2131 = vrot.lane.b32.xlu0 %v1512, 1
        %v2132 = vpop.permute.xlu0 %2131
        %2133 = vrot.lane.b32.xlu0 %v1513, 1
        %v2134 = vpop.permute.xlu0 %2133
        %2135 = vrot.lane.b32.xlu0 %v1514, 1
        %v2136 = vpop.permute.xlu0 %2135
        %2137 = vrot.lane.b32.xlu0 %v1515, 1
        %v2138 = vpop.permute.xlu0 %2137
        %2139 = vrot.lane.b32.xlu0 %v1516, 1
        %v2140 = vpop.permute.xlu0 %2139
        %2141 = vrot.lane.b32.xlu0 %v1517, 1
        %v2142 = vpop.permute.xlu0 %2141
        %2143 = vrot.lane.b32.xlu0 %v1518, 1
        %v2144 = vpop.permute.xlu0 %2143
        %2145 = vrot.lane.b32.xlu0 %v1519, 1
        %v2146 = vpop.permute.xlu0 %2145
        %2147 = vrot.lane.b32.xlu0 %v1520, 1
        %v2148 = vpop.permute.xlu0 %2147
        %2149 = vrot.lane.b32.xlu0 %v1521, 1
        %v2150 = vpop.permute.xlu0 %2149
        %2151 = vrot.lane.b32.xlu0 %v1973, 1
        %v2152 = vpop.permute.xlu0 %2151
        %2153 = vrot.lane.b32.xlu0 %v1976, 1
        %v2154 = vpop.permute.xlu0 %2153
        %2155 = vrot.lane.b32.xlu0 %v1979, 1
        %v2156 = vpop.permute.xlu0 %2155
        %2157 = vrot.lane.b32.xlu0 %v1982, 1
        %v2158 = vpop.permute.xlu0 %2157
        %2159 = vrot.lane.b32.xlu0 %v1985, 1
        %v2160 = vpop.permute.xlu0 %2159
        %2161 = vrot.lane.b32.xlu0 %v1988, 1
        %v2162 = vpop.permute.xlu0 %2161
        %2163 = vrot.lane.b32.xlu0 %v1991, 1
        %v2164 = vpop.permute.xlu0 %2163
        %2165 = vrot.lane.b32.xlu0 %v1994, 1
        %v2166 = vpop.permute.xlu0 %2165
        %2167 = vrot.lane.b32.xlu0 %v1997, 1
        %v2168 = vpop.permute.xlu0 %2167
        %2169 = vrot.lane.b32.xlu0 %v2000, 1
        %v2170 = vpop.permute.xlu0 %2169
        %2171 = vrot.lane.b32.xlu0 %v2003, 1
        %v2172 = vpop.permute.xlu0 %2171
        %2173 = vrot.lane.b32.xlu0 %v1619, 1
        %v2174 = vpop.permute.xlu0 %2173
        %2175 = vrot.lane.b32.xlu0 %v1647, 1
        %v2176 = vpop.permute.xlu0 %2175
        %2177 = vrot.lane.b32.xlu0 %v1648, 1
        %v2178 = vpop.permute.xlu0 %2177
        %2179 = vrot.lane.b32.xlu0 %v1649, 1
        %v2180 = vpop.permute.xlu0 %2179
        %2181 = vrot.lane.b32.xlu0 %v1650, 1
        %v2182 = vpop.permute.xlu0 %2181
        %2183 = vrot.lane.b32.xlu0 %v1651, 1
        %v2184 = vpop.permute.xlu0 %2183
        %2185 = vrot.lane.b32.xlu0 %v1652, 1
        %v2186 = vpop.permute.xlu0 %2185
        %2187 = vrot.lane.b32.xlu0 %v1653, 1
        %v2188 = vpop.permute.xlu0 %2187
        %2189 = vrot.lane.b32.xlu0 %v1654, 1
        %v2190 = vpop.permute.xlu0 %2189
        %2191 = vrot.lane.b32.xlu0 %v1655, 1
        %v2192 = vpop.permute.xlu0 %2191
        %2193 = vrot.lane.b32.xlu0 %v1637, 1
        %v2194 = vpop.permute.xlu0 %2193
        %2195 = vrot.lane.b32.xlu0 %v1685, 1
        %v2196 = vpop.permute.xlu0 %2195
        %2197 = vrot.lane.b32.xlu0 %v1728, 1
        %v2198 = vpop.permute.xlu0 %2197
        %2199 = vrot.lane.b32.xlu0 %v1729, 1
        %v2200 = vpop.permute.xlu0 %2199
        %2201 = vrot.lane.b32.xlu0 %v1730, 1
        %v2202 = vpop.permute.xlu0 %2201
        %2203 = vrot.lane.b32.xlu0 %v1731, 1
        %v2204 = vpop.permute.xlu0 %2203
        %2205 = vrot.lane.b32.xlu0 %v1732, 1
        %v2206 = vpop.permute.xlu0 %2205
        %2207 = vrot.lane.b32.xlu0 %v1733, 1
        %v2208 = vpop.permute.xlu0 %2207
        %2209 = vrot.lane.b32.xlu0 %v1734, 1
        %v2210 = vpop.permute.xlu0 %2209
        %2211 = vrot.lane.b32.xlu0 %v1735, 1
        %v2212 = vpop.permute.xlu0 %2211
        %2213 = vrot.lane.b32.xlu0 %v1736, 1
        %v2214 = vpop.permute.xlu0 %2213
        %2215 = vrot.lane.b32.xlu0 %v1737, 1
        %v2216 = vpop.permute.xlu0 %2215
        %2217 = vrot.lane.b32.xlu0 %v2006, 1
        %v2218 = vpop.permute.xlu0 %2217
        %2219 = vrot.lane.b32.xlu0 %v2009, 1
        %v2220 = vpop.permute.xlu0 %2219
        %2221 = vrot.lane.b32.xlu0 %v2012, 1
        %v2222 = vpop.permute.xlu0 %2221
        %2223 = vrot.lane.b32.xlu0 %v2015, 1
        %v2224 = vpop.permute.xlu0 %2223
        %2225 = vrot.lane.b32.xlu0 %v2018, 1
        %v2226 = vpop.permute.xlu0 %2225
        %2227 = vrot.lane.b32.xlu0 %v2021, 1
        %v2228 = vpop.permute.xlu0 %2227
        %2229 = vrot.lane.b32.xlu0 %v2024, 1
        %v2230 = vpop.permute.xlu0 %2229
        %2231 = vrot.lane.b32.xlu0 %v2027, 1
        %v2232 = vpop.permute.xlu0 %2231
        %2233 = vrot.lane.b32.xlu0 %v2030, 1
        %v2234 = vpop.permute.xlu0 %2233
        %2235 = vrot.lane.b32.xlu0 %v2033, 1
        %v2236 = vpop.permute.xlu0 %2235
        %2237 = vrot.lane.b32.xlu0 %v2036, 1
        %v2238 = vpop.permute.xlu0 %2237
        %2239 = vrot.lane.b32.xlu0 %v1588, 1
        %v2240 = vpop.permute.xlu0 %2239
        %2241 = vrot.lane.b32.xlu0 %v1589, 1
        %v2242 = vpop.permute.xlu0 %2241
        %2243 = vrot.lane.b32.xlu0 %v1590, 1
        %v2244 = vpop.permute.xlu0 %2243
        %2245 = vrot.lane.b32.xlu0 %v1591, 1
        %v2246 = vpop.permute.xlu0 %2245
        %2247 = vrot.lane.b32.xlu0 %v1592, 1
        %v2248 = vpop.permute.xlu0 %2247
        %2249 = vrot.lane.b32.xlu0 %v1593, 1
        %v2250 = vpop.permute.xlu0 %2249
        %2251 = vrot.lane.b32.xlu0 %v1594, 1
        %v2252 = vpop.permute.xlu0 %2251
        %2253 = vrot.lane.b32.xlu0 %v1595, 1
        %v2254 = vpop.permute.xlu0 %2253
        %2255 = vrot.lane.b32.xlu0 %v1596, 1
        %v2256 = vpop.permute.xlu0 %2255
        %2257 = vrot.lane.b32.xlu0 %v1597, 1
        %v2258 = vpop.permute.xlu0 %2257
        %2259 = vrot.lane.b32.xlu0 %v1749, 1
        %v2260 = vpop.permute.xlu0 %2259
        %2261 = vrot.lane.b32.xlu0 %v1764, 1
        %v2262 = vpop.permute.xlu0 %2261
        %2263 = vrot.lane.b32.xlu0 %v1803, 1
        %v2264 = vpop.permute.xlu0 %2263
        %2265 = vrot.lane.b32.xlu0 %v1804, 1
        %v2266 = vpop.permute.xlu0 %2265
        %2267 = vrot.lane.b32.xlu0 %v1805, 1
        %v2268 = vpop.permute.xlu0 %2267
        %2269 = vrot.lane.b32.xlu0 %v1806, 1
        %v2270 = vpop.permute.xlu0 %2269
        %2271 = vrot.lane.b32.xlu0 %v1807, 1
        %v2272 = vpop.permute.xlu0 %2271
        %2273 = vrot.lane.b32.xlu0 %v1808, 1
        %v2274 = vpop.permute.xlu0 %2273
        %2275 = vrot.lane.b32.xlu0 %v1809, 1
        %v2276 = vpop.permute.xlu0 %2275
        %2277 = vrot.lane.b32.xlu0 %v1810, 1
        %v2278 = vpop.permute.xlu0 %2277
        %2279 = vrot.lane.b32.xlu0 %v1811, 1
        %v2280 = vpop.permute.xlu0 %2279
        %2281 = vrot.lane.b32.xlu0 %v1782, 1
        %v2282 = vpop.permute.xlu0 %2281
        %2283 = vrot.lane.b32.xlu0 %v2039, 1
        %v2284 = vpop.permute.xlu0 %2283
        %2285 = vrot.lane.b32.xlu0 %v2042, 1
        %v2286 = vpop.permute.xlu0 %2285
        %2287 = vrot.lane.b32.xlu0 %v2045, 1
        %v2288 = vpop.permute.xlu0 %2287
        %2289 = vrot.lane.b32.xlu0 %v2048, 1
        %v2290 = vpop.permute.xlu0 %2289
        %2291 = vrot.lane.b32.xlu0 %v2051, 1
        %v2292 = vpop.permute.xlu0 %2291
        %2293 = vrot.lane.b32.xlu0 %v2054, 1
        %v2294 = vpop.permute.xlu0 %2293
        %2295 = vrot.lane.b32.xlu0 %v2057, 1
        %v2296 = vpop.permute.xlu0 %2295
        %2297 = vrot.lane.b32.xlu0 %v2060, 1
        %v2298 = vpop.permute.xlu0 %2297
        %2299 = vrot.lane.b32.xlu0 %v2063, 1
        %v2300 = vpop.permute.xlu0 %2299
        %2301 = vrot.lane.b32.xlu0 %v2066, 1
        %v2302 = vpop.permute.xlu0 %2301
        %2303 = vrot.lane.b32.xlu0 %v2069, 1
        %v2304 = vpop.permute.xlu0 %2303
        %2305 = vrot.lane.b32.xlu0 %v1872, 1
        %v2306 = vpop.permute.xlu0 %2305
        %2307 = vrot.lane.b32.xlu0 %v1903, 1
        %v2308 = vpop.permute.xlu0 %2307
        %2309 = vrot.lane.b32.xlu0 %v1904, 1
        %v2310 = vpop.permute.xlu0 %2309
        %2311 = vrot.lane.b32.xlu0 %v1905, 1
        %v2312 = vpop.permute.xlu0 %2311
        %2313 = vrot.lane.b32.xlu0 %v1906, 1
        %v2314 = vpop.permute.xlu0 %2313
        %2315 = vrot.lane.b32.xlu0 %v1907, 1
        %v2316 = vpop.permute.xlu0 %2315
        %2317 = vrot.lane.b32.xlu0 %v1908, 1
        %v2318 = vpop.permute.xlu0 %2317
        %2319 = vrot.lane.b32.xlu0 %v1909, 1
        %v2320 = vpop.permute.xlu0 %2319
        %2321 = vrot.lane.b32.xlu0 %v1910, 1
        %v2322 = vpop.permute.xlu0 %2321
        %2323 = vrot.lane.b32.xlu0 %v1911, 1
        %v2324 = vpop.permute.xlu0 %2323
        %2325 = vrot.lane.b32.xlu0 %v1912, 1
        %v2326 = vpop.permute.xlu0 %2325
        %2327 = vrot.lane.b32.xlu0 %v1759, 1
        %v2328 = vpop.permute.xlu0 %2327
        %2329 = vrot.lane.b32.xlu0 %v1760, 1
        %v2330 = vpop.permute.xlu0 %2329
        %2331 = vrot.lane.b32.xlu0 %v1913, 1
        %v2332 = vpop.permute.xlu0 %2331
        %2333 = vrot.lane.b32.xlu0 %v2071, 1
        %v2334 = vpop.permute.xlu0 %2333
        %2335 = vrot.lane.b32.xlu0 %v2074, 1
        %v2336 = vpop.permute.xlu0 %2335
        %2337 = vrot.lane.b32.xlu0 %v2077, 1
        %v2338 = vpop.permute.xlu0 %2337
        %2339 = vrot.lane.b32.xlu0 %v2080, 1
        %v2340 = vpop.permute.xlu0 %2339
        %2341 = vrot.lane.b32.xlu0 %v1623, 1
        %v2342 = vpop.permute.xlu0 %2341
        %2343 = vrot.lane.b32.xlu0 %v1938, 1
        %v2344 = vpop.permute.xlu0 %2343
        %2345 = vrot.lane.b32.xlu0 %v1939, 1
        %v2346 = vpop.permute.xlu0 %2345
        %2347 = vrot.lane.b32.xlu0 %v1935, 1
        %v2348 = vpop.permute.xlu0 %2347
        %2349 = vrot.lane.b32.xlu0 %v1689, 1
        %v2350 = vpop.permute.xlu0 %2349
        %2351 = vrot.lane.b32.xlu0 %v1964, 1
        %v2352 = vpop.permute.xlu0 %2351
        %2353 = vrot.lane.b32.xlu0 %v1965, 1
        %v2354 = vpop.permute.xlu0 %2353
        %2355 = vrot.lane.b32.xlu0 %v1966, 1
        %v2356 = vpop.permute.xlu0 %2355
        %2357 = vrot.lane.b32.xlu0 %v1711, 1
        %v2358 = vpop.permute.xlu0 %2357
        %2359 = vrot.lane.b32.xlu0 %v1740, 1
        %v2360 = vpop.permute.xlu0 %2359
        %2361 = vrot.lane.b32.xlu0 %v1741, 1
        %v2362 = vpop.permute.xlu0 %2361
        %2363 = vrot.lane.b32.xlu0 %v1742, 1
        %v2364 = vpop.permute.xlu0 %2363
        %2365 = vrot.lane.b32.xlu0 %v1743, 1
        %v2366 = vpop.permute.xlu0 %2365
        %2367 = vrot.lane.b32.xlu0 %v1744, 1
        %v2368 = vpop.permute.xlu0 %2367
        %2369 = vrot.lane.b32.xlu0 %v1745, 1
        %v2370 = vpop.permute.xlu0 %2369
        %2371 = vrot.lane.b32.xlu0 %v1746, 1
        %v2372 = vpop.permute.xlu0 %2371
        %2373 = vrot.lane.b32.xlu0 %v1967, 1
        %v2374 = vpop.permute.xlu0 %2373
        %2375 = vrot.lane.b32.xlu0 %v1968, 1
        %v2376 = vpop.permute.xlu0 %2375
        %2377 = vrot.lane.b32.xlu0 %v1969, 1
        %v2378 = vpop.permute.xlu0 %2377
        %v2379 = vsel %vm939, %v2130, %v2132
        %v2380 = vsel %vm939, %v2132, %v2134
        %v2381 = vsel %vm939, %v2134, %v2136
        %v2382 = vsel %vm939, %v2136, %v2138
        %v2383 = vsel %vm939, %v2138, %v2140
        %v2384 = vsel %vm939, %v2140, %v2142
        %v2385 = vsel %vm939, %v2142, %v2144
        %v2386 = vsel %vm939, %v2144, %v2146
        %v2387 = vsel %vm939, %v2146, %v2148
        %v2388 = vsel %vm939, %v2148, %v2150
        %v2389 = vsel %vm939, %v2152, %v2154
        %v2390 = vsel %vm939, %v2154, %v2156
        %v2391 = vsel %vm939, %v2156, %v2158
        %v2392 = vsel %vm939, %v2158, %v2160
        %v2393 = vsel %vm939, %v2160, %v2162
        %v2394 = vsel %vm939, %v2162, %v2164
        %v2395 = vsel %vm939, %v2164, %v2166
        %v2396 = vsel %vm939, %v2166, %v2168
        %v2397 = vsel %vm939, %v2168, %v2170
        %v2398 = vsel %vm939, %v2170, %v2172
        %v2399 = vsel %vm939, %v2174, %v2176
        %v2400 = vsel %vm939, %v2176, %v2178
        %v2401 = vsel %vm939, %v2178, %v2180
        %v2402 = vsel %vm939, %v2180, %v2182
        %v2403 = vsel %vm939, %v2182, %v2184
        %v2404 = vsel %vm939, %v2184, %v2186
        %v2405 = vsel %vm939, %v2186, %v2188
        %v2406 = vsel %vm939, %v2188, %v2190
        %v2407 = vsel %vm939, %v2190, %v2192
        %v2408 = vsel %vm939, %v2192, %v2194
        %v2409 = vsel %vm939, %v2196, %v2198
        %v2410 = vsel %vm939, %v2198, %v2200
        %v2411 = vsel %vm939, %v2200, %v2202
        %v2412 = vsel %vm939, %v2202, %v2204
        %v2413 = vsel %vm939, %v2204, %v2206
        %v2414 = vsel %vm939, %v2206, %v2208
        %v2415 = vsel %vm939, %v2208, %v2210
        %v2416 = vsel %vm939, %v2210, %v2212
        %v2417 = vsel %vm939, %v2212, %v2214
        %v2418 = vsel %vm939, %v2214, %v2216
        %v2419 = vsel %vm939, %v2218, %v2220
        %v2420 = vsel %vm939, %v2220, %v2222
        %v2421 = vsel %vm939, %v2222, %v2224
        %v2422 = vsel %vm939, %v2224, %v2226
        %v2423 = vsel %vm939, %v2226, %v2228
        %v2424 = vsel %vm939, %v2228, %v2230
        %v2425 = vsel %vm939, %v2230, %v2232
        %v2426 = vsel %vm939, %v2232, %v2234
        %v2427 = vsel %vm939, %v2234, %v2236
        %v2428 = vsel %vm939, %v2236, %v2238
        %v2429 = vsel %vm939, %v2240, %v2242
        %v2430 = vsel %vm939, %v2242, %v2244
        %v2431 = vsel %vm939, %v2244, %v2246
        %v2432 = vsel %vm939, %v2246, %v2248
        %v2433 = vsel %vm939, %v2248, %v2250
        %v2434 = vsel %vm939, %v2250, %v2252
        %v2435 = vsel %vm939, %v2252, %v2254
        %v2436 = vsel %vm939, %v2254, %v2256
        %v2437 = vsel %vm939, %v2256, %v2258
        %v2438 = vsel %vm939, %v2258, %v2260
        %v2439 = vsel %vm939, %v2262, %v2264
        %v2440 = vsel %vm939, %v2264, %v2266
        %v2441 = vsel %vm939, %v2266, %v2268
        %v2442 = vsel %vm939, %v2268, %v2270
        %v2443 = vsel %vm939, %v2270, %v2272
        %v2444 = vsel %vm939, %v2272, %v2274
        %v2445 = vsel %vm939, %v2274, %v2276
        %v2446 = vsel %vm939, %v2276, %v2278
        %v2447 = vsel %vm939, %v2278, %v2280
        %v2448 = vsel %vm939, %v2280, %v2282
        %v2449 = vsel %vm939, %v2284, %v2286
        %v2450 = vsel %vm939, %v2286, %v2288
        %v2451 = vsel %vm939, %v2288, %v2290
        %v2452 = vsel %vm939, %v2290, %v2292
        %v2453 = vsel %vm939, %v2292, %v2294
        %v2454 = vsel %vm939, %v2294, %v2296
        %v2455 = vsel %vm939, %v2296, %v2298
        %v2456 = vsel %vm939, %v2298, %v2300
        %v2457 = vsel %vm939, %v2300, %v2302
        %v2458 = vsel %vm939, %v2302, %v2304
        %v2459 = vsel %vm939, %v2306, %v2308
        %v2460 = vsel %vm939, %v2308, %v2310
        %v2461 = vsel %vm939, %v2310, %v2312
        %v2462 = vsel %vm939, %v2312, %v2314
        %v2463 = vsel %vm939, %v2314, %v2316
        %v2464 = vsel %vm939, %v2316, %v2318
        %v2465 = vsel %vm939, %v2318, %v2320
        %v2466 = vsel %vm939, %v2320, %v2322
        %v2467 = vsel %vm939, %v2322, %v2324
        %v2468 = vsel %vm939, %v2324, %v2326
        %v2469 = vsel %vm939, %v2148, %v2328
        %v2470 = vsel %vm939, %v2328, %v2330
        %v2471 = vsel %vm939, %v2330, %v2332
        %v2472 = vsel %vm939, %v2334, %v2158
        %v2473 = vsel %vm939, %v2170, %v2336
        %v2474 = vsel %vm939, %v2336, %v2338
        %v2475 = vsel %vm939, %v2338, %v2340
        %v2476 = vsel %vm939, %v2342, %v2180
        %v2477 = vsel %vm939, %v2192, %v2344
        %v2478 = vsel %vm939, %v2344, %v2346
        %v2479 = vsel %vm939, %v2346, %v2348
        %v2480 = vsel %vm939, %v2350, %v2202
        %v2481 = vsel %vm939, %v2214, %v2352
        %v2482 = vsel %vm939, %v2352, %v2354
        %v2483 = vsel %vm939, %v2354, %v2356
        %v2484 = vsel %vm939, %v2358, %v2360
        %v2485 = vsel %vm939, %v2360, %v2362
        %v2486 = vsel %vm939, %v2362, %v2364
        %v2487 = vsel %vm939, %v2364, %v2366
        %v2488 = vsel %vm939, %v2366, %v2368
        %v2489 = vsel %vm939, %v2368, %v2370
        %v2490 = vsel %vm939, %v2370, %v2372
        %v2491 = vsel %vm939, %v2372, %v2374
        %v2492 = vsel %vm939, %v2374, %v2376
        %v2493 = vsel %vm939, %v2376, %v2378
        %vm2599 = vcmask 719872
        %v2601 = vsel %vm2599, %v2090, 0
        %v2604 = vsel %vm1970, %v2484, 0
        %v2607 = vsel %vm1970, %v2485, 0
        %v2610 = vsel %vm1970, %v2486, 0
        %v2613 = vsel %vm1970, %v2487, 0
        %v2616 = vsel %vm1970, %v2488, 0
        %v2619 = vsel %vm1970, %v2489, 0
        %v2622 = vsel %vm1970, %v2490, 0
        %v2625 = vsel %vm1970, %v2491, 0
        %v2628 = vsel %vm1970, %v2492, 0
        %v2631 = vsel %vm1970, %v2493, 0
        %2633 = vmatprep.subr.bf16.mxu0 %v2450
        %2634 = vmatpush1.bf16.msra.mxu0 %v2449
        %2635 = vmatprep.subr.bf16.mxu0 %v2440
        %2636 = vmatpush1.bf16.msra.mxu0 %v2439
        %2637 = vmatprep.subr.bf16.mxu0 %v2430
        %2638 = vmatpush1.bf16.msra.mxu0 %v2429
        %2639 = vmatprep.subr.bf16.mxu0 %v2420
        %2640 = vmatpush1.bf16.msra.mxu0 %v2419
        %2641 = vmatprep.subr.bf16.mxu0 %v2410
        %2642 = vmatpush1.bf16.msra.mxu0 %v2409
        %2643 = vmatprep.subr.bf16.mxu0 %v2400
        %2644 = vmatpush1.bf16.msra.mxu0 %v2399
        %2645 = vmatprep.subr.bf16.mxu0 %v2390
        %2646 = vmatpush1.bf16.msra.mxu0 %v2389
        %2647 = vmatprep.subr.bf16.mxu0 %v2380
        %2648 = vmatpush1.bf16.msra.mxu0 %v2379
        %2649 = vmatprep.subr.bf16.mxu0 0
        %2650 = vmatpush2.bf16.msra.mxu0 0
        %2651 = vmatprep.subr.bf16.mxu0 0
        %2652 = vmatpush2.bf16.msra.mxu0 0
        %2653 = vmatprep.subr.bf16.mxu0 %v2607
        %2654 = vmatpush2.bf16.msra.mxu0 %v2604
        %2655 = vmatprep.subr.bf16.mxu0 %v2412
        %2656 = vmatpush2.bf16.msra.mxu0 %v2480
        %2657 = vmatprep.subr.bf16.mxu0 %v2402
        %2658 = vmatpush2.bf16.msra.mxu0 %v2476
        %2659 = vmatprep.subr.bf16.mxu0 %v2392
        %2660 = vmatpush2.bf16.msra.mxu0 %v2472
        %2661 = vmatprep.subr.bf16.mxu0 %v2382
        %2662 = vmatpush2.bf16.msra.mxu0 %v2381
        %2663 = vmatprep.subr.bf16.mxu0 %v2460
        %2664 = vmatpush2.bf16.msra.mxu0 %v2459
        %2665 = vmatprep.mubr.bf16.mxu0 %v2601
        %2666 = vmatmul.mubr.bf16.gmra.mxu0 %v2089
        %v2667 = vpop.f32.mrf.mxu0
        %v2668 = vadd.f32 %v2084, %v2667
        %v2669 = vpop.f32.mrf.mxu0
        %v2670 = vadd.f32 %v2084, %v2669
        %v2671 = vpop.f32.mrf.mxu0
        %v2672 = vpop.f32.mrf.mxu0
        %2673 = vdwg.mxu0
        %2674 = vmatprep.subr.bf16.mxu0 %v2452
        %2675 = vmatpush1.bf16.msra.mxu0 %v2451
        %2676 = vmatprep.subr.bf16.mxu0 %v2442
        %2677 = vmatpush1.bf16.msra.mxu0 %v2441
        %2678 = vmatprep.subr.bf16.mxu0 %v2432
        %2679 = vmatpush1.bf16.msra.mxu0 %v2431
        %2680 = vmatprep.subr.bf16.mxu0 %v2422
        %2681 = vmatpush1.bf16.msra.mxu0 %v2421
        %2682 = vmatprep.subr.bf16.mxu0 %v2412
        %2683 = vmatpush1.bf16.msra.mxu0 %v2411
        %2684 = vmatprep.subr.bf16.mxu0 %v2402
        %2685 = vmatpush1.bf16.msra.mxu0 %v2401
        %2686 = vmatprep.subr.bf16.mxu0 %v2392
        %2687 = vmatpush1.bf16.msra.mxu0 %v2391
        %2688 = vmatprep.subr.bf16.mxu0 %v2382
        %2689 = vmatpush1.bf16.msra.mxu0 %v2381
        %2690 = vmatprep.subr.bf16.mxu0 0
        %2691 = vmatpush2.bf16.msra.mxu0 0
        %2692 = vmatprep.subr.bf16.mxu0 0
        %2693 = vmatpush2.bf16.msra.mxu0 0
        %2694 = vmatprep.subr.bf16.mxu0 %v2613
        %2695 = vmatpush2.bf16.msra.mxu0 %v2610
        %2696 = vmatprep.subr.bf16.mxu0 %v2414
        %2697 = vmatpush2.bf16.msra.mxu0 %v2413
        %2698 = vmatprep.subr.bf16.mxu0 %v2404
        %2699 = vmatpush2.bf16.msra.mxu0 %v2403
        %2700 = vmatprep.subr.bf16.mxu0 %v2394
        %2701 = vmatpush2.bf16.msra.mxu0 %v2393
        %2702 = vmatprep.subr.bf16.mxu0 %v2384
        %2703 = vmatpush2.bf16.msra.mxu0 %v2383
        %2704 = vmatprep.subr.bf16.mxu0 %v2462
        %2705 = vmatpush2.bf16.msra.mxu0 %v2461
        %2706 = vmatprep.mubr.bf16.mxu0 %v2601
        %2707 = vmatmul.mubr.bf16.gmra.mxu0 %v2089
        %v2708 = vpop.f32.mrf.mxu0
        %v2709 = vadd.f32 %v2084, %v2708
        %v2710 = vpop.f32.mrf.mxu0
        %v2711 = vadd.f32 %v2084, %v2710
        %v2712 = vpop.f32.mrf.mxu0
        %v2713 = vpop.f32.mrf.mxu0
        %2714 = vdwg.mxu0
        %2715 = vmatprep.subr.bf16.mxu0 %v2454
        %2716 = vmatpush1.bf16.msra.mxu0 %v2453
        %2717 = vmatprep.subr.bf16.mxu0 %v2444
        %2718 = vmatpush1.bf16.msra.mxu0 %v2443
        %2719 = vmatprep.subr.bf16.mxu0 %v2434
        %2720 = vmatpush1.bf16.msra.mxu0 %v2433
        %2721 = vmatprep.subr.bf16.mxu0 %v2424
        %2722 = vmatpush1.bf16.msra.mxu0 %v2423
        %2723 = vmatprep.subr.bf16.mxu0 %v2414
        %2724 = vmatpush1.bf16.msra.mxu0 %v2413
        %2725 = vmatprep.subr.bf16.mxu0 %v2404
        %2726 = vmatpush1.bf16.msra.mxu0 %v2403
        %2727 = vmatprep.subr.bf16.mxu0 %v2394
        %2728 = vmatpush1.bf16.msra.mxu0 %v2393
        %2729 = vmatprep.subr.bf16.mxu0 %v2384
        %2730 = vmatpush1.bf16.msra.mxu0 %v2383
        %2731 = vmatprep.subr.bf16.mxu0 0
        %2732 = vmatpush2.bf16.msra.mxu0 0
        %2733 = vmatprep.subr.bf16.mxu0 0
        %2734 = vmatpush2.bf16.msra.mxu0 0
        %2735 = vmatprep.subr.bf16.mxu0 %v2619
        %2736 = vmatpush2.bf16.msra.mxu0 %v2616
        %2737 = vmatprep.subr.bf16.mxu0 %v2416
        %2738 = vmatpush2.bf16.msra.mxu0 %v2415
        %2739 = vmatprep.subr.bf16.mxu0 %v2406
        %2740 = vmatpush2.bf16.msra.mxu0 %v2405
        %2741 = vmatprep.subr.bf16.mxu0 %v2396
        %2742 = vmatpush2.bf16.msra.mxu0 %v2395
        %2743 = vmatprep.subr.bf16.mxu0 %v2386
        %2744 = vmatpush2.bf16.msra.mxu0 %v2385
        %2745 = vmatprep.subr.bf16.mxu0 %v2464
        %2746 = vmatpush2.bf16.msra.mxu0 %v2463
        %2747 = vmatprep.mubr.bf16.mxu0 %v2601
        %2748 = vmatmul.mubr.bf16.gmra.mxu0 %v2089
        %v2749 = vpop.f32.mrf.mxu0
        %v2750 = vadd.f32 %v2084, %v2749
        %v2751 = vpop.f32.mrf.mxu0
        %v2752 = vadd.f32 %v2084, %v2751
        %v2753 = vpop.f32.mrf.mxu0
        %v2754 = vpop.f32.mrf.mxu0
        %2755 = vdwg.mxu0
        %2756 = vmatprep.subr.bf16.mxu0 %v2456
        %2757 = vmatpush1.bf16.msra.mxu0 %v2455
        %2758 = vmatprep.subr.bf16.mxu0 %v2446
        %2759 = vmatpush1.bf16.msra.mxu0 %v2445
        %2760 = vmatprep.subr.bf16.mxu0 %v2436
        %2761 = vmatpush1.bf16.msra.mxu0 %v2435
        %2762 = vmatprep.subr.bf16.mxu0 %v2426
        %2763 = vmatpush1.bf16.msra.mxu0 %v2425
        %2764 = vmatprep.subr.bf16.mxu0 %v2416
        %2765 = vmatpush1.bf16.msra.mxu0 %v2415
        %2766 = vmatprep.subr.bf16.mxu0 %v2406
        %2767 = vmatpush1.bf16.msra.mxu0 %v2405
        %2768 = vmatprep.subr.bf16.mxu0 %v2396
        %2769 = vmatpush1.bf16.msra.mxu0 %v2395
        %2770 = vmatprep.subr.bf16.mxu0 %v2386
        %2771 = vmatpush1.bf16.msra.mxu0 %v2385
        %2772 = vmatprep.subr.bf16.mxu0 0
        %2773 = vmatpush2.bf16.msra.mxu0 0
        %2774 = vmatprep.subr.bf16.mxu0 0
        %2775 = vmatpush2.bf16.msra.mxu0 0
        %2776 = vmatprep.subr.bf16.mxu0 %v2625
        %2777 = vmatpush2.bf16.msra.mxu0 %v2622
        %2778 = vmatprep.subr.bf16.mxu0 %v2481
        %2779 = vmatpush2.bf16.msra.mxu0 %v2417
        %2780 = vmatprep.subr.bf16.mxu0 %v2477
        %2781 = vmatpush2.bf16.msra.mxu0 %v2407
        %2782 = vmatprep.subr.bf16.mxu0 %v2473
        %2783 = vmatpush2.bf16.msra.mxu0 %v2397
        %2784 = vmatprep.subr.bf16.mxu0 %v2469
        %2785 = vmatpush2.bf16.msra.mxu0 %v2387
        %2786 = vmatprep.subr.bf16.mxu0 %v2466
        %2787 = vmatpush2.bf16.msra.mxu0 %v2465
        %2788 = vmatprep.mubr.bf16.mxu0 %v2601
        %2789 = vmatmul.mubr.bf16.gmra.mxu0 %v2089
        %v2790 = vpop.f32.mrf.mxu0
        %v2791 = vadd.f32 %v2084, %v2790
        %v2792 = vpop.f32.mrf.mxu0
        %v2793 = vadd.f32 %v2084, %v2792
        %v2794 = vpop.f32.mrf.mxu0
        %v2795 = vpop.f32.mrf.mxu0
        %2796 = vdwg.mxu0
        %2797 = vmatprep.subr.bf16.mxu0 %v2458
        %2798 = vmatpush1.bf16.msra.mxu0 %v2457
        %2799 = vmatprep.subr.bf16.mxu0 %v2448
        %2800 = vmatpush1.bf16.msra.mxu0 %v2447
        %2801 = vmatprep.subr.bf16.mxu0 %v2438
        %2802 = vmatpush1.bf16.msra.mxu0 %v2437
        %2803 = vmatprep.subr.bf16.mxu0 %v2428
        %2804 = vmatpush1.bf16.msra.mxu0 %v2427
        %2805 = vmatprep.subr.bf16.mxu0 %v2418
        %2806 = vmatpush1.bf16.msra.mxu0 %v2417
        %2807 = vmatprep.subr.bf16.mxu0 %v2408
        %2808 = vmatpush1.bf16.msra.mxu0 %v2407
        %2809 = vmatprep.subr.bf16.mxu0 %v2398
        %2810 = vmatpush1.bf16.msra.mxu0 %v2397
        %2811 = vmatprep.subr.bf16.mxu0 %v2388
        %2812 = vmatpush1.bf16.msra.mxu0 %v2387
        %2813 = vmatprep.subr.bf16.mxu0 0
        %2814 = vmatpush2.bf16.msra.mxu0 0
        %2815 = vmatprep.subr.bf16.mxu0 0
        %2816 = vmatpush2.bf16.msra.mxu0 0
        %2817 = vmatprep.subr.bf16.mxu0 %v2631
        %2818 = vmatpush2.bf16.msra.mxu0 %v2628
        %2819 = vmatprep.subr.bf16.mxu0 %v2483
        %2820 = vmatpush2.bf16.msra.mxu0 %v2482
        %2821 = vmatprep.subr.bf16.mxu0 %v2479
        %2822 = vmatpush2.bf16.msra.mxu0 %v2478
        %2823 = vmatprep.subr.bf16.mxu0 %v2475
        %2824 = vmatpush2.bf16.msra.mxu0 %v2474
        %2825 = vmatprep.subr.bf16.mxu0 %v2471
        %2826 = vmatpush2.bf16.msra.mxu0 %v2470
        %2827 = vmatprep.subr.bf16.mxu0 %v2468
        %2828 = vmatpush2.bf16.msra.mxu0 %v2467
        %2829 = vmatprep.mubr.bf16.mxu0 %v2601
        %2830 = vmatmul.mubr.bf16.gmra.mxu0 %v2089
        %v2831 = vpop.f32.mrf.mxu0
        %v2832 = vadd.f32 %v2084, %v2831
        %v2833 = vpop.f32.mrf.mxu0
        %v2834 = vadd.f32 %v2084, %v2833
        %v2835 = vpop.f32.mrf.mxu0
        %v2836 = vpop.f32.mrf.mxu0
        %2837 = vdwg.mxu0
        %v2838 = vmax.f32 %v2668, 0.0
        %v2839 = vmax.f32 %v2670, 0.0
        %v2840 = vmax.f32 %v2709, 0.0
        %v2841 = vmax.f32 %v2711, 0.0
        %v2842 = vmax.f32 %v2750, 0.0
        %v2843 = vmax.f32 %v2752, 0.0
        %v2844 = vmax.f32 %v2791, 0.0
        %v2845 = vmax.f32 %v2793, 0.0
        %v2846 = vmax.f32 %v2832, 0.0
        %v2847 = vmax.f32 %v2834, 0.0
        %v2848 = vsel %vm1345, %v2838, 0.0
        %v2849 = vsel %vm1346, %v2839, 0.0
        %v2850 = vsel %vm1347, %v2840, 0.0
        %v2851 = vsel %vm1348, %v2841, 0.0
        %v2852 = vsel %vm1349, %v2842, 0.0
        %v2853 = vsel %vm1350, %v2843, 0.0
        %v2854 = vsel %vm1351, %v2844, 0.0
        %v2855 = vsel %vm1352, %v2845, 0.0
        %v2856 = vsel %vm1353, %v2846, 0.0
        %v2857 = vsel %vm1354, %v2847, 0.0
        %v2858 = vpack.c.bf16 %v2848, %v2848
        %v2859 = vpack.c.bf16 %v2849, %v2849
        %v2860 = vpack.c.bf16 %v2850, %v2850
        %v2861 = vpack.c.bf16 %v2851, %v2851
        %v2862 = vpack.c.bf16 %v2852, %v2852
        %v2863 = vpack.c.bf16 %v2853, %v2853
        %v2864 = vpack.c.bf16 %v2854, %v2854
        %v2865 = vpack.c.bf16 %v2855, %v2855
        %v2866 = vpack.c.bf16 %v2856, %v2856
        %v2867 = vpack.c.bf16 %v2857, %v2857
        %v2878 = vunpack.c.l.b16 %v2858
        %v2879 = vunpack.c.l.b16 %v2859
        %v2880 = vunpack.c.l.b16 %v2860
        %v2881 = vunpack.c.l.b16 %v2861
        %v2882 = vunpack.c.l.b16 %v2862
        %v2883 = vunpack.c.l.b16 %v2863
        %v2884 = vunpack.c.l.b16 %v2864
        %v2885 = vunpack.c.l.b16 %v2865
        %v2886 = vunpack.c.l.b16 %v2866
        %v2887 = vunpack.c.l.b16 %v2867
        %v2888 = vpack.c.b16 %v2879, %v2878
        %v2889 = vpack.c.b16 %v2881, %v2880
        %v2890 = vpack.c.b16 %v2883, %v2882
        %v2891 = vpack.c.b16 %v2885, %v2884
        %v2892 = vpack.c.b16 %v2887, %v2886
        %2898 = vst [vmem:[#allocation2 + $0xb0] sm:$0xff] %v2888
        %2899 = vst [vmem:[#allocation2 + $0xb8] sm:$0xff] %v2889
        %2900 = vst [vmem:[#allocation2 + $0xc0] sm:$0xff] %v2890
        %2901 = vst [vmem:[#allocation2 + $0xc8] sm:$0xff] %v2891
        %2902 = vst [vmem:[#allocation2 + $0xd0] sm:$0xff] %v2892
        %v2903 = vld [vmem:[%s6] sm:$0xff]
        %v2904 = vld [vmem:[%s6 + $0x8] sm:$0xf]
        %v2905 = vld [vmem:[%s7] sm:$0xff]
        %v2906 = vld [vmem:[#allocation2] sm:$0xff]
        %v2907 = vld [vmem:[#allocation2 + $0x8] sm:$0xff]
        %v2908 = vld [vmem:[#allocation2 + $0x10] sm:$0xff]
        %v2909 = vld [vmem:[#allocation2 + $0x18] sm:$0xff]
        %v2910 = vld [vmem:[#allocation2 + $0x20] sm:$0xff]
        %v2911 = vld [vmem:[#allocation2 + $0x28] sm:$0xf]
        %v2912 = vld [vmem:[#allocation2 + $0x38] sm:$0xff]
        %v2913 = vld [vmem:[#allocation2 + $0x40] sm:$0xff]
        %v2914 = vld [vmem:[#allocation2 + $0x48] sm:$0xff]
        %v2915 = vld [vmem:[#allocation2 + $0x50] sm:$0xff]
        %v2916 = vld [vmem:[#allocation2 + $0x58] sm:$0xff]
        %v2917 = vld [vmem:[#allocation2 + $0x60] sm:$0xf]
        %v2918 = vld [vmem:[#allocation2 + $0x70] sm:$0xff]
        %v2919 = vld [vmem:[#allocation2 + $0x78] sm:$0xff]
        %v2920 = vld [vmem:[#allocation2 + $0x80] sm:$0xff]
        %v2921 = vld [vmem:[#allocation2 + $0x88] sm:$0xff]
        %v2922 = vld [vmem:[#allocation2 + $0x90] sm:$0xff]
        %v2923 = vld [vmem:[#allocation2 + $0x98] sm:$0xf]
        %v2924 = vld [vmem:[#allocation2 + $0xa8] sm:$0xff]
        %v2925 = vld [vmem:[#allocation2 + $0xb0] sm:$0xff]
        %v2926 = vld [vmem:[#allocation2 + $0xb8] sm:$0xff]
        %v2927 = vld [vmem:[#allocation2 + $0xc0] sm:$0xff]
        %v2928 = vld [vmem:[#allocation2 + $0xc8] sm:$0xff]
        %v2929 = vld [vmem:[#allocation2 + $0xd0] sm:$0xf]
        %v2930 = vld [vmem:[#allocation2 + $0x4] sm:$0xff]
        %v2931 = vld [vmem:[#allocation2 + $0xc] sm:$0xff]
        %v2932 = vld [vmem:[#allocation2 + $0x14] sm:$0xff]
        %v2933 = vld [vmem:[#allocation2 + $0x1c] sm:$0xff]
        %v2934 = vld [vmem:[#allocation2 + $0x24] sm:$0xff]
        %v2935 = vld [vmem:[#allocation2 + $0x3c] sm:$0xff]
        %v2936 = vld [vmem:[#allocation2 + $0x44] sm:$0xff]
        %v2937 = vld [vmem:[#allocation2 + $0x4c] sm:$0xff]
        %v2938 = vld [vmem:[#allocation2 + $0x54] sm:$0xff]
        %v2939 = vld [vmem:[#allocation2 + $0x5c] sm:$0xff]
        %v2940 = vld [vmem:[#allocation2 + $0x74] sm:$0xff]
        %v2941 = vld [vmem:[#allocation2 + $0x7c] sm:$0xff]
        %v2942 = vld [vmem:[#allocation2 + $0x84] sm:$0xff]
        %v2943 = vld [vmem:[#allocation2 + $0x8c] sm:$0xff]
        %v2944 = vld [vmem:[#allocation2 + $0x94] sm:$0xff]
        %v2945 = vld [vmem:[#allocation2 + $0xac] sm:$0xff]
        %v2946 = vld [vmem:[#allocation2 + $0xb4] sm:$0xff]
        %v2947 = vld [vmem:[#allocation2 + $0xbc] sm:$0xff]
        %v2948 = vld [vmem:[#allocation2 + $0xc4] sm:$0xff]
        %v2949 = vld [vmem:[#allocation2 + $0xcc] sm:$0xff]
        %v2950 = vld [vmem:[#allocation2 + $0x2c] sm:$0xf]
        %v2951 = vld [vmem:[#allocation2 + $0x64] sm:$0xf]
        %v2952 = vld [vmem:[#allocation2 + $0x9c] sm:$0xf]
        %v2953 = vld [vmem:[#allocation2 + $0xd4] sm:$0xf]
        %v2954 = vld [vmem:[#allocation2 + $0x28] sm:$0xff]
        %v2955 = vld [vmem:[#allocation2 + $0x60] sm:$0xff]
        %v2956 = vld [vmem:[#allocation2 + $0x98] sm:$0xff]
        %v2957 = vld [vmem:[#allocation2 + $0xd0] sm:$0xff]
        %v2958 = vld [vmem:[#allocation2 + $0x30] sm:$0xf]
        %v2959 = vld [vmem:[#allocation2 + $0x68] sm:$0xf]
        %v2960 = vld [vmem:[#allocation2 + $0xa0] sm:$0xf]
        %v2961 = vld [vmem:[#allocation2 + $0xd8] sm:$0xf]
        %v2962 = vld [vmem:[#allocation2 + $0x2c] sm:$0xff]
        %v2963 = vld [vmem:[#allocation2 + $0x64] sm:$0xff]
        %v2964 = vld [vmem:[#allocation2 + $0x9c] sm:$0xff]
        %v2965 = vld [vmem:[#allocation2 + $0xd4] sm:$0xff]
        %v2966 = vld [vmem:[#allocation2 + $0x34] sm:$0xf]
        %v2967 = vld [vmem:[#allocation2 + $0x6c] sm:$0xf]
        %v2968 = vld [vmem:[#allocation2 + $0xa4] sm:$0xf]
        %v2969 = vld [vmem:[#allocation2 + $0xdc] sm:$0xf]
        %v2994 = vunpack.c.l.b16 %v2906
        %v2995 = vunpack.c.h.b16 %v2906
        %v2996 = vunpack.c.l.b16 %v2907
        %v2997 = vunpack.c.h.b16 %v2907
        %v2998 = vunpack.c.l.b16 %v2908
        %v2999 = vunpack.c.h.b16 %v2908
        %v3000 = vunpack.c.l.b16 %v2909
        %v3001 = vunpack.c.h.b16 %v2909
        %v3002 = vunpack.c.l.b16 %v2910
        %v3003 = vunpack.c.h.b16 %v2910
        %v3004 = vunpack.c.l.b16 %v2911
        %v3005 = vunpack.c.l.b16 %v2912
        %v3006 = vunpack.c.h.b16 %v2912
        %v3007 = vunpack.c.l.b16 %v2913
        %v3008 = vunpack.c.h.b16 %v2913
        %v3009 = vunpack.c.l.b16 %v2914
        %v3010 = vunpack.c.h.b16 %v2914
        %v3011 = vunpack.c.l.b16 %v2915
        %v3012 = vunpack.c.h.b16 %v2915
        %v3013 = vunpack.c.l.b16 %v2916
        %v3014 = vunpack.c.h.b16 %v2916
        %v3015 = vunpack.c.l.b16 %v2917
        %v3016 = vunpack.c.l.b16 %v2918
        %v3017 = vunpack.c.h.b16 %v2918
        %v3018 = vunpack.c.l.b16 %v2919
        %v3019 = vunpack.c.h.b16 %v2919
        %v3020 = vunpack.c.l.b16 %v2920
        %v3021 = vunpack.c.h.b16 %v2920
        %v3022 = vunpack.c.l.b16 %v2921
        %v3023 = vunpack.c.h.b16 %v2921
        %v3024 = vunpack.c.l.b16 %v2922
        %v3025 = vunpack.c.h.b16 %v2922
        %v3026 = vunpack.c.l.b16 %v2923
        %v3027 = vunpack.c.l.b16 %v2924
        %v3028 = vunpack.c.h.b16 %v2924
        %v3029 = vunpack.c.l.b16 %v2925
        %v3030 = vunpack.c.h.b16 %v2925
        %v3031 = vunpack.c.l.b16 %v2926
        %v3032 = vunpack.c.h.b16 %v2926
        %v3033 = vunpack.c.l.b16 %v2927
        %v3034 = vunpack.c.h.b16 %v2927
        %v3035 = vunpack.c.l.b16 %v2928
        %v3036 = vunpack.c.h.b16 %v2928
        %v3037 = vunpack.c.l.b16 %v2929
        %v3038 = vpack.c.b16 %v3005, %v2994
        %v3039 = vpack.c.b16 %v3006, %v2995
        %v3040 = vpack.c.b16 %v3007, %v2996
        %v3041 = vpack.c.b16 %v3008, %v2997
        %v3042 = vpack.c.b16 %v3009, %v2998
        %v3043 = vpack.c.b16 %v3010, %v2999
        %v3044 = vpack.c.b16 %v3011, %v3000
        %v3045 = vpack.c.b16 %v3012, %v3001
        %v3046 = vpack.c.b16 %v3013, %v3002
        %v3047 = vpack.c.b16 %v3014, %v3003
        %v3048 = vpack.c.b16 %v3015, %v3004
        %v3049 = vpack.c.b16 %v3027, %v3016
        %v3050 = vpack.c.b16 %v3028, %v3017
        %v3051 = vpack.c.b16 %v3029, %v3018
        %v3052 = vpack.c.b16 %v3030, %v3019
        %v3053 = vpack.c.b16 %v3031, %v3020
        %v3054 = vpack.c.b16 %v3032, %v3021
        %v3055 = vpack.c.b16 %v3033, %v3022
        %v3056 = vpack.c.b16 %v3034, %v3023
        %v3057 = vpack.c.b16 %v3035, %v3024
        %v3058 = vpack.c.b16 %v3036, %v3025
        %v3059 = vpack.c.b16 %v3037, %v3026
        %v3080 = vunpack.c.l.b16 %v2930
        %v3081 = vunpack.c.h.b16 %v2930
        %v3082 = vunpack.c.l.b16 %v2931
        %v3083 = vunpack.c.h.b16 %v2931
        %v3084 = vunpack.c.l.b16 %v2932
        %v3085 = vunpack.c.h.b16 %v2932
        %v3086 = vunpack.c.l.b16 %v2933
        %v3087 = vunpack.c.h.b16 %v2933
        %v3088 = vunpack.c.l.b16 %v2934
        %v3089 = vunpack.c.h.b16 %v2934
        %v3090 = vunpack.c.l.b16 %v2935
        %v3091 = vunpack.c.h.b16 %v2935
        %v3092 = vunpack.c.l.b16 %v2936
        %v3093 = vunpack.c.h.b16 %v2936
        %v3094 = vunpack.c.l.b16 %v2937
        %v3095 = vunpack.c.h.b16 %v2937
        %v3096 = vunpack.c.l.b16 %v2938
        %v3097 = vunpack.c.h.b16 %v2938
        %v3098 = vunpack.c.l.b16 %v2939
        %v3099 = vunpack.c.h.b16 %v2939
        %v3100 = vunpack.c.l.b16 %v2940
        %v3101 = vunpack.c.h.b16 %v2940
        %v3102 = vunpack.c.l.b16 %v2941
        %v3103 = vunpack.c.h.b16 %v2941
        %v3104 = vunpack.c.l.b16 %v2942
        %v3105 = vunpack.c.h.b16 %v2942
        %v3106 = vunpack.c.l.b16 %v2943
        %v3107 = vunpack.c.h.b16 %v2943
        %v3108 = vunpack.c.l.b16 %v2944
        %v3109 = vunpack.c.h.b16 %v2944
        %v3110 = vunpack.c.l.b16 %v2945
        %v3111 = vunpack.c.h.b16 %v2945
        %v3112 = vunpack.c.l.b16 %v2946
        %v3113 = vunpack.c.h.b16 %v2946
        %v3114 = vunpack.c.l.b16 %v2947
        %v3115 = vunpack.c.h.b16 %v2947
        %v3116 = vunpack.c.l.b16 %v2948
        %v3117 = vunpack.c.h.b16 %v2948
        %v3118 = vunpack.c.l.b16 %v2949
        %v3119 = vunpack.c.h.b16 %v2949
        %v3120 = vpack.c.b16 %v3090, %v3080
        %v3121 = vpack.c.b16 %v3091, %v3081
        %v3122 = vpack.c.b16 %v3092, %v3082
        %v3123 = vpack.c.b16 %v3093, %v3083
        %v3124 = vpack.c.b16 %v3094, %v3084
        %v3125 = vpack.c.b16 %v3095, %v3085
        %v3126 = vpack.c.b16 %v3096, %v3086
        %v3127 = vpack.c.b16 %v3097, %v3087
        %v3128 = vpack.c.b16 %v3098, %v3088
        %v3129 = vpack.c.b16 %v3099, %v3089
        %v3130 = vpack.c.b16 %v3110, %v3100
        %v3131 = vpack.c.b16 %v3111, %v3101
        %v3132 = vpack.c.b16 %v3112, %v3102
        %v3133 = vpack.c.b16 %v3113, %v3103
        %v3134 = vpack.c.b16 %v3114, %v3104
        %v3135 = vpack.c.b16 %v3115, %v3105
        %v3136 = vpack.c.b16 %v3116, %v3106
        %v3137 = vpack.c.b16 %v3117, %v3107
        %v3138 = vpack.c.b16 %v3118, %v3108
        %v3139 = vpack.c.b16 %v3119, %v3109
        %3140 = vrot.lane.b32.xlu0 %v3120, 127
        %v3141 = vpop.permute.xlu0 %3140
        %3142 = vrot.lane.b32.xlu0 %v3121, 127
        %v3143 = vpop.permute.xlu0 %3142
        %3144 = vrot.lane.b32.xlu0 %v3122, 127
        %v3145 = vpop.permute.xlu0 %3144
        %3146 = vrot.lane.b32.xlu0 %v3123, 127
        %v3147 = vpop.permute.xlu0 %3146
        %3148 = vrot.lane.b32.xlu0 %v3124, 127
        %v3149 = vpop.permute.xlu0 %3148
        %3150 = vrot.lane.b32.xlu0 %v3125, 127
        %v3151 = vpop.permute.xlu0 %3150
        %3152 = vrot.lane.b32.xlu0 %v3126, 127
        %v3153 = vpop.permute.xlu0 %3152
        %3154 = vrot.lane.b32.xlu0 %v3127, 127
        %v3155 = vpop.permute.xlu0 %3154
        %3156 = vrot.lane.b32.xlu0 %v3128, 127
        %v3157 = vpop.permute.xlu0 %3156
        %3158 = vrot.lane.b32.xlu0 %v3129, 127
        %v3159 = vpop.permute.xlu0 %3158
        %3160 = vrot.lane.b32.xlu0 %v3130, 127
        %v3161 = vpop.permute.xlu0 %3160
        %3162 = vrot.lane.b32.xlu0 %v3131, 127
        %v3163 = vpop.permute.xlu0 %3162
        %3164 = vrot.lane.b32.xlu0 %v3132, 127
        %v3165 = vpop.permute.xlu0 %3164
        %3166 = vrot.lane.b32.xlu0 %v3133, 127
        %v3167 = vpop.permute.xlu0 %3166
        %3168 = vrot.lane.b32.xlu0 %v3134, 127
        %v3169 = vpop.permute.xlu0 %3168
        %3170 = vrot.lane.b32.xlu0 %v3135, 127
        %v3171 = vpop.permute.xlu0 %3170
        %3172 = vrot.lane.b32.xlu0 %v3136, 127
        %v3173 = vpop.permute.xlu0 %3172
        %3174 = vrot.lane.b32.xlu0 %v3137, 127
        %v3175 = vpop.permute.xlu0 %3174
        %3176 = vrot.lane.b32.xlu0 %v3138, 127
        %v3177 = vpop.permute.xlu0 %3176
        %3178 = vrot.lane.b32.xlu0 %v3139, 127
        %v3179 = vpop.permute.xlu0 %3178
        %v3180 = vsel %vm624, %v3141, %v3143
        %v3181 = vsel %vm624, %v3143, %v3145
        %v3182 = vsel %vm624, %v3145, %v3147
        %v3183 = vsel %vm624, %v3147, %v3149
        %v3184 = vsel %vm624, %v3149, %v3151
        %v3185 = vsel %vm624, %v3151, %v3153
        %v3186 = vsel %vm624, %v3153, %v3155
        %v3187 = vsel %vm624, %v3155, %v3157
        %v3188 = vsel %vm624, %v3157, %v3159
        %v3189 = vsel %vm624, %v3161, %v3163
        %v3190 = vsel %vm624, %v3163, %v3165
        %v3191 = vsel %vm624, %v3165, %v3167
        %v3192 = vsel %vm624, %v3167, %v3169
        %v3193 = vsel %vm624, %v3169, %v3171
        %v3194 = vsel %vm624, %v3171, %v3173
        %v3195 = vsel %vm624, %v3173, %v3175
        %v3196 = vsel %vm624, %v3175, %v3177
        %v3197 = vsel %vm624, %v3177, %v3179
        %v3202 = vunpack.c.l.b16 %v2950
        %v3203 = vunpack.c.l.b16 %v2951
        %v3204 = vunpack.c.l.b16 %v2952
        %v3205 = vunpack.c.l.b16 %v2953
        %v3206 = vpack.c.b16 %v3203, %v3202
        %v3207 = vpack.c.b16 %v3205, %v3204
        %3208 = vrot.lane.b32.xlu0 %v3120, 126
        %v3209 = vpop.permute.xlu0 %3208
        %3210 = vrot.lane.b32.xlu0 %v3121, 126
        %v3211 = vpop.permute.xlu0 %3210
        %3212 = vrot.lane.b32.xlu0 %v3122, 126
        %v3213 = vpop.permute.xlu0 %3212
        %3214 = vrot.lane.b32.xlu0 %v3123, 126
        %v3215 = vpop.permute.xlu0 %3214
        %3216 = vrot.lane.b32.xlu0 %v3124, 126
        %v3217 = vpop.permute.xlu0 %3216
        %3218 = vrot.lane.b32.xlu0 %v3125, 126
        %v3219 = vpop.permute.xlu0 %3218
        %3220 = vrot.lane.b32.xlu0 %v3126, 126
        %v3221 = vpop.permute.xlu0 %3220
        %3222 = vrot.lane.b32.xlu0 %v3127, 126
        %v3223 = vpop.permute.xlu0 %3222
        %3224 = vrot.lane.b32.xlu0 %v3128, 126
        %v3225 = vpop.permute.xlu0 %3224
        %3226 = vrot.lane.b32.xlu0 %v3129, 126
        %v3227 = vpop.permute.xlu0 %3226
        %3228 = vrot.lane.b32.xlu0 %v3206, 126
        %v3229 = vpop.permute.xlu0 %3228
        %3230 = vrot.lane.b32.xlu0 %v3130, 126
        %v3231 = vpop.permute.xlu0 %3230
        %3232 = vrot.lane.b32.xlu0 %v3131, 126
        %v3233 = vpop.permute.xlu0 %3232
        %3234 = vrot.lane.b32.xlu0 %v3132, 126
        %v3235 = vpop.permute.xlu0 %3234
        %3236 = vrot.lane.b32.xlu0 %v3133, 126
        %v3237 = vpop.permute.xlu0 %3236
        %3238 = vrot.lane.b32.xlu0 %v3134, 126
        %v3239 = vpop.permute.xlu0 %3238
        %3240 = vrot.lane.b32.xlu0 %v3135, 126
        %v3241 = vpop.permute.xlu0 %3240
        %3242 = vrot.lane.b32.xlu0 %v3136, 126
        %v3243 = vpop.permute.xlu0 %3242
        %3244 = vrot.lane.b32.xlu0 %v3137, 126
        %v3245 = vpop.permute.xlu0 %3244
        %3246 = vrot.lane.b32.xlu0 %v3138, 126
        %v3247 = vpop.permute.xlu0 %3246
        %3248 = vrot.lane.b32.xlu0 %v3139, 126
        %v3249 = vpop.permute.xlu0 %3248
        %3250 = vrot.lane.b32.xlu0 %v3207, 126
        %v3251 = vpop.permute.xlu0 %3250
        %v3252 = vsel %vm661, %v3209, %v3211
        %v3253 = vsel %vm661, %v3211, %v3213
        %v3254 = vsel %vm661, %v3213, %v3215
        %v3255 = vsel %vm661, %v3215, %v3217
        %v3256 = vsel %vm661, %v3217, %v3219
        %v3257 = vsel %vm661, %v3219, %v3221
        %v3258 = vsel %vm661, %v3221, %v3223
        %v3259 = vsel %vm661, %v3223, %v3225
        %v3260 = vsel %vm661, %v3225, %v3227
        %v3261 = vsel %vm661, %v3227, %v3229
        %v3262 = vsel %vm661, %v3231, %v3233
        %v3263 = vsel %vm661, %v3233, %v3235
        %v3264 = vsel %vm661, %v3235, %v3237
        %v3265 = vsel %vm661, %v3237, %v3239
        %v3266 = vsel %vm661, %v3239, %v3241
        %v3267 = vsel %vm661, %v3241, %v3243
        %v3268 = vsel %vm661, %v3243, %v3245
        %v3269 = vsel %vm661, %v3245, %v3247
        %v3270 = vsel %vm661, %v3247, %v3249
        %v3271 = vsel %vm661, %v3249, %v3251
        %v3276 = vunpack.c.l.b16 %v2954
        %v3277 = vunpack.c.h.b16 %v2954
        %v3278 = vunpack.c.l.b16 %v2955
        %v3279 = vunpack.c.h.b16 %v2955
        %v3280 = vunpack.c.l.b16 %v2956
        %v3281 = vunpack.c.h.b16 %v2956
        %v3282 = vunpack.c.l.b16 %v2957
        %v3283 = vunpack.c.h.b16 %v2957
        %v3284 = vpack.c.b16 %v3278, %v3276
        %v3285 = vpack.c.b16 %v3279, %v3277
        %v3286 = vpack.c.b16 %v3282, %v3280
        %v3287 = vpack.c.b16 %v3283, %v3281
        %3288 = vrot.lane.b32.xlu0 %v3040, 127
        %v3289 = vpop.permute.xlu0 %3288
        %3290 = vrot.lane.b32.xlu0 %v3041, 127
        %v3291 = vpop.permute.xlu0 %3290
        %3292 = vrot.lane.b32.xlu0 %v3042, 127
        %v3293 = vpop.permute.xlu0 %3292
        %3294 = vrot.lane.b32.xlu0 %v3043, 127
        %v3295 = vpop.permute.xlu0 %3294
        %3296 = vrot.lane.b32.xlu0 %v3044, 127
        %v3297 = vpop.permute.xlu0 %3296
        %3298 = vrot.lane.b32.xlu0 %v3045, 127
        %v3299 = vpop.permute.xlu0 %3298
        %3300 = vrot.lane.b32.xlu0 %v3046, 127
        %v3301 = vpop.permute.xlu0 %3300
        %3302 = vrot.lane.b32.xlu0 %v3047, 127
        %v3303 = vpop.permute.xlu0 %3302
        %3304 = vrot.lane.b32.xlu0 %v3284, 127
        %v3305 = vpop.permute.xlu0 %3304
        %3306 = vrot.lane.b32.xlu0 %v3285, 127
        %v3307 = vpop.permute.xlu0 %3306
        %3308 = vrot.lane.b32.xlu0 %v3051, 127
        %v3309 = vpop.permute.xlu0 %3308
        %3310 = vrot.lane.b32.xlu0 %v3052, 127
        %v3311 = vpop.permute.xlu0 %3310
        %3312 = vrot.lane.b32.xlu0 %v3053, 127
        %v3313 = vpop.permute.xlu0 %3312
        %3314 = vrot.lane.b32.xlu0 %v3054, 127
        %v3315 = vpop.permute.xlu0 %3314
        %3316 = vrot.lane.b32.xlu0 %v3055, 127
        %v3317 = vpop.permute.xlu0 %3316
        %3318 = vrot.lane.b32.xlu0 %v3056, 127
        %v3319 = vpop.permute.xlu0 %3318
        %3320 = vrot.lane.b32.xlu0 %v3057, 127
        %v3321 = vpop.permute.xlu0 %3320
        %3322 = vrot.lane.b32.xlu0 %v3058, 127
        %v3323 = vpop.permute.xlu0 %3322
        %3324 = vrot.lane.b32.xlu0 %v3286, 127
        %v3325 = vpop.permute.xlu0 %3324
        %3326 = vrot.lane.b32.xlu0 %v3287, 127
        %v3327 = vpop.permute.xlu0 %3326
        %v3328 = vsel %vm624, %v3289, %v3291
        %v3329 = vsel %vm624, %v3291, %v3293
        %v3330 = vsel %vm624, %v3293, %v3295
        %v3331 = vsel %vm624, %v3295, %v3297
        %v3332 = vsel %vm624, %v3297, %v3299
        %v3333 = vsel %vm624, %v3299, %v3301
        %v3334 = vsel %vm624, %v3301, %v3303
        %v3335 = vsel %vm624, %v3303, %v3305
        %v3336 = vsel %vm624, %v3305, %v3307
        %v3337 = vsel %vm624, %v3309, %v3311
        %v3338 = vsel %vm624, %v3311, %v3313
        %v3339 = vsel %vm624, %v3313, %v3315
        %v3340 = vsel %vm624, %v3315, %v3317
        %v3341 = vsel %vm624, %v3317, %v3319
        %v3342 = vsel %vm624, %v3319, %v3321
        %v3343 = vsel %vm624, %v3321, %v3323
        %v3344 = vsel %vm624, %v3323, %v3325
        %v3345 = vsel %vm624, %v3325, %v3327
        %v3350 = vunpack.c.l.b16 %v2958
        %v3351 = vunpack.c.l.b16 %v2959
        %v3352 = vunpack.c.l.b16 %v2960
        %v3353 = vunpack.c.l.b16 %v2961
        %v3354 = vpack.c.b16 %v3351, %v3350
        %v3355 = vpack.c.b16 %v3353, %v3352
        %3356 = vrot.lane.b32.xlu0 %v3040, 126
        %v3357 = vpop.permute.xlu0 %3356
        %3358 = vrot.lane.b32.xlu0 %v3041, 126
        %v3359 = vpop.permute.xlu0 %3358
        %3360 = vrot.lane.b32.xlu0 %v3042, 126
        %v3361 = vpop.permute.xlu0 %3360
        %3362 = vrot.lane.b32.xlu0 %v3043, 126
        %v3363 = vpop.permute.xlu0 %3362
        %3364 = vrot.lane.b32.xlu0 %v3044, 126
        %v3365 = vpop.permute.xlu0 %3364
        %3366 = vrot.lane.b32.xlu0 %v3045, 126
        %v3367 = vpop.permute.xlu0 %3366
        %3368 = vrot.lane.b32.xlu0 %v3046, 126
        %v3369 = vpop.permute.xlu0 %3368
        %3370 = vrot.lane.b32.xlu0 %v3047, 126
        %v3371 = vpop.permute.xlu0 %3370
        %3372 = vrot.lane.b32.xlu0 %v3284, 126
        %v3373 = vpop.permute.xlu0 %3372
        %3374 = vrot.lane.b32.xlu0 %v3285, 126
        %v3375 = vpop.permute.xlu0 %3374
        %3376 = vrot.lane.b32.xlu0 %v3354, 126
        %v3377 = vpop.permute.xlu0 %3376
        %3378 = vrot.lane.b32.xlu0 %v3051, 126
        %v3379 = vpop.permute.xlu0 %3378
        %3380 = vrot.lane.b32.xlu0 %v3052, 126
        %v3381 = vpop.permute.xlu0 %3380
        %3382 = vrot.lane.b32.xlu0 %v3053, 126
        %v3383 = vpop.permute.xlu0 %3382
        %3384 = vrot.lane.b32.xlu0 %v3054, 126
        %v3385 = vpop.permute.xlu0 %3384
        %3386 = vrot.lane.b32.xlu0 %v3055, 126
        %v3387 = vpop.permute.xlu0 %3386
        %3388 = vrot.lane.b32.xlu0 %v3056, 126
        %v3389 = vpop.permute.xlu0 %3388
        %3390 = vrot.lane.b32.xlu0 %v3057, 126
        %v3391 = vpop.permute.xlu0 %3390
        %3392 = vrot.lane.b32.xlu0 %v3058, 126
        %v3393 = vpop.permute.xlu0 %3392
        %3394 = vrot.lane.b32.xlu0 %v3286, 126
        %v3395 = vpop.permute.xlu0 %3394
        %3396 = vrot.lane.b32.xlu0 %v3287, 126
        %v3397 = vpop.permute.xlu0 %3396
        %3398 = vrot.lane.b32.xlu0 %v3355, 126
        %v3399 = vpop.permute.xlu0 %3398
        %v3400 = vsel %vm661, %v3357, %v3359
        %v3401 = vsel %vm661, %v3359, %v3361
        %v3402 = vsel %vm661, %v3361, %v3363
        %v3403 = vsel %vm661, %v3363, %v3365
        %v3404 = vsel %vm661, %v3365, %v3367
        %v3405 = vsel %vm661, %v3367, %v3369
        %v3406 = vsel %vm661, %v3369, %v3371
        %v3407 = vsel %vm661, %v3371, %v3373
        %v3408 = vsel %vm661, %v3373, %v3375
        %v3409 = vsel %vm661, %v3375, %v3377
        %v3410 = vsel %vm661, %v3379, %v3381
        %v3411 = vsel %vm661, %v3381, %v3383
        %v3412 = vsel %vm661, %v3383, %v3385
        %v3413 = vsel %vm661, %v3385, %v3387
        %v3414 = vsel %vm661, %v3387, %v3389
        %v3415 = vsel %vm661, %v3389, %v3391
        %v3416 = vsel %vm661, %v3391, %v3393
        %v3417 = vsel %vm661, %v3393, %v3395
        %v3418 = vsel %vm661, %v3395, %v3397
        %v3419 = vsel %vm661, %v3397, %v3399
        %v3424 = vunpack.c.l.b16 %v2962
        %v3425 = vunpack.c.h.b16 %v2962
        %v3426 = vunpack.c.l.b16 %v2963
        %v3427 = vunpack.c.h.b16 %v2963
        %v3428 = vunpack.c.l.b16 %v2964
        %v3429 = vunpack.c.h.b16 %v2964
        %v3430 = vunpack.c.l.b16 %v2965
        %v3431 = vunpack.c.h.b16 %v2965
        %v3432 = vpack.c.b16 %v3426, %v3424
        %v3433 = vpack.c.b16 %v3427, %v3425
        %v3434 = vpack.c.b16 %v3430, %v3428
        %v3435 = vpack.c.b16 %v3431, %v3429
        %3436 = vrot.lane.b32.xlu0 %v3432, 127
        %v3437 = vpop.permute.xlu0 %3436
        %3438 = vrot.lane.b32.xlu0 %v3433, 127
        %v3439 = vpop.permute.xlu0 %3438
        %3440 = vrot.lane.b32.xlu0 %v3434, 127
        %v3441 = vpop.permute.xlu0 %3440
        %3442 = vrot.lane.b32.xlu0 %v3435, 127
        %v3443 = vpop.permute.xlu0 %3442
        %v3444 = vsel %vm624, %v3159, %v3437
        %v3445 = vsel %vm624, %v3437, %v3439
        %v3446 = vsel %vm624, %v3179, %v3441
        %v3447 = vsel %vm624, %v3441, %v3443
        %v3452 = vunpack.c.l.b16 %v2966
        %v3453 = vunpack.c.l.b16 %v2967
        %v3454 = vunpack.c.l.b16 %v2968
        %v3455 = vunpack.c.l.b16 %v2969
        %v3456 = vpack.c.b16 %v3453, %v3452
        %v3457 = vpack.c.b16 %v3455, %v3454
        %3458 = vrot.lane.b32.xlu0 %v3432, 126
        %v3459 = vpop.permute.xlu0 %3458
        %3460 = vrot.lane.b32.xlu0 %v3433, 126
        %v3461 = vpop.permute.xlu0 %3460
        %3462 = vrot.lane.b32.xlu0 %v3456, 126
        %v3463 = vpop.permute.xlu0 %3462
        %3464 = vrot.lane.b32.xlu0 %v3434, 126
        %v3465 = vpop.permute.xlu0 %3464
        %3466 = vrot.lane.b32.xlu0 %v3435, 126
        %v3467 = vpop.permute.xlu0 %3466
        %3468 = vrot.lane.b32.xlu0 %v3457, 126
        %v3469 = vpop.permute.xlu0 %3468
        %v3470 = vsel %vm661, %v3227, %v3459
        %v3471 = vsel %vm661, %v3459, %v3461
        %v3472 = vsel %vm661, %v3461, %v3463
        %v3473 = vsel %vm661, %v3249, %v3465
        %v3474 = vsel %vm661, %v3465, %v3467
        %v3475 = vsel %vm661, %v3467, %v3469
        %3477 = vset.pattern.permute.xlu0 0
        %3478 = vperm.xlu0 %3477, %v2905
        %v3479 = vpop.permute.xlu0 %3478
        %v3483 = vunpack.c.l.b16 %v2903
        %v3484 = vunpack.c.h.b16 %v2903
        %v3485 = vunpack.c.l.b16 %v2904
        %v3486 = vpack.c.b16 %v3483, %v3483
        %v3487 = vpack.c.b16 %v3484, %v3484
        %v3488 = vpack.c.b16 %v3485, %v3485
        %3491 = vrot.lane.b32.xlu0 %v3038, 1
        %v3492 = vpop.permute.xlu0 %3491
        %3493 = vrot.lane.b32.xlu0 %v3039, 1
        %v3494 = vpop.permute.xlu0 %3493
        %3495 = vrot.lane.b32.xlu0 %v3040, 1
        %v3496 = vpop.permute.xlu0 %3495
        %3497 = vrot.lane.b32.xlu0 %v3041, 1
        %v3498 = vpop.permute.xlu0 %3497
        %3499 = vrot.lane.b32.xlu0 %v3042, 1
        %v3500 = vpop.permute.xlu0 %3499
        %3501 = vrot.lane.b32.xlu0 %v3043, 1
        %v3502 = vpop.permute.xlu0 %3501
        %3503 = vrot.lane.b32.xlu0 %v3044, 1
        %v3504 = vpop.permute.xlu0 %3503
        %3505 = vrot.lane.b32.xlu0 %v3045, 1
        %v3506 = vpop.permute.xlu0 %3505
        %3507 = vrot.lane.b32.xlu0 %v3046, 1
        %v3508 = vpop.permute.xlu0 %3507
        %3509 = vrot.lane.b32.xlu0 %v3047, 1
        %v3510 = vpop.permute.xlu0 %3509
        %3511 = vrot.lane.b32.xlu0 %v3048, 1
        %v3512 = vpop.permute.xlu0 %3511
        %3513 = vrot.lane.b32.xlu0 %v3049, 1
        %v3514 = vpop.permute.xlu0 %3513
        %3515 = vrot.lane.b32.xlu0 %v3050, 1
        %v3516 = vpop.permute.xlu0 %3515
        %3517 = vrot.lane.b32.xlu0 %v3051, 1
        %v3518 = vpop.permute.xlu0 %3517
        %3519 = vrot.lane.b32.xlu0 %v3052, 1
        %v3520 = vpop.permute.xlu0 %3519
        %3521 = vrot.lane.b32.xlu0 %v3053, 1
        %v3522 = vpop.permute.xlu0 %3521
        %3523 = vrot.lane.b32.xlu0 %v3054, 1
        %v3524 = vpop.permute.xlu0 %3523
        %3525 = vrot.lane.b32.xlu0 %v3055, 1
        %v3526 = vpop.permute.xlu0 %3525
        %3527 = vrot.lane.b32.xlu0 %v3056, 1
        %v3528 = vpop.permute.xlu0 %3527
        %3529 = vrot.lane.b32.xlu0 %v3057, 1
        %v3530 = vpop.permute.xlu0 %3529
        %3531 = vrot.lane.b32.xlu0 %v3058, 1
        %v3532 = vpop.permute.xlu0 %3531
        %3533 = vrot.lane.b32.xlu0 %v3059, 1
        %v3534 = vpop.permute.xlu0 %3533
        %3535 = vrot.lane.b32.xlu0 %v3141, 1
        %v3536 = vpop.permute.xlu0 %3535
        %3537 = vrot.lane.b32.xlu0 %v3180, 1
        %v3538 = vpop.permute.xlu0 %3537
        %3539 = vrot.lane.b32.xlu0 %v3181, 1
        %v3540 = vpop.permute.xlu0 %3539
        %3541 = vrot.lane.b32.xlu0 %v3182, 1
        %v3542 = vpop.permute.xlu0 %3541
        %3543 = vrot.lane.b32.xlu0 %v3183, 1
        %v3544 = vpop.permute.xlu0 %3543
        %3545 = vrot.lane.b32.xlu0 %v3184, 1
        %v3546 = vpop.permute.xlu0 %3545
        %3547 = vrot.lane.b32.xlu0 %v3185, 1
        %v3548 = vpop.permute.xlu0 %3547
        %3549 = vrot.lane.b32.xlu0 %v3186, 1
        %v3550 = vpop.permute.xlu0 %3549
        %3551 = vrot.lane.b32.xlu0 %v3187, 1
        %v3552 = vpop.permute.xlu0 %3551
        %3553 = vrot.lane.b32.xlu0 %v3188, 1
        %v3554 = vpop.permute.xlu0 %3553
        %3555 = vrot.lane.b32.xlu0 %v3159, 1
        %v3556 = vpop.permute.xlu0 %3555
        %3557 = vrot.lane.b32.xlu0 %v3161, 1
        %v3558 = vpop.permute.xlu0 %3557
        %3559 = vrot.lane.b32.xlu0 %v3189, 1
        %v3560 = vpop.permute.xlu0 %3559
        %3561 = vrot.lane.b32.xlu0 %v3190, 1
        %v3562 = vpop.permute.xlu0 %3561
        %3563 = vrot.lane.b32.xlu0 %v3191, 1
        %v3564 = vpop.permute.xlu0 %3563
        %3565 = vrot.lane.b32.xlu0 %v3192, 1
        %v3566 = vpop.permute.xlu0 %3565
        %3567 = vrot.lane.b32.xlu0 %v3193, 1
        %v3568 = vpop.permute.xlu0 %3567
        %3569 = vrot.lane.b32.xlu0 %v3194, 1
        %v3570 = vpop.permute.xlu0 %3569
        %3571 = vrot.lane.b32.xlu0 %v3195, 1
        %v3572 = vpop.permute.xlu0 %3571
        %3573 = vrot.lane.b32.xlu0 %v3196, 1
        %v3574 = vpop.permute.xlu0 %3573
        %3575 = vrot.lane.b32.xlu0 %v3197, 1
        %v3576 = vpop.permute.xlu0 %3575
        %3577 = vrot.lane.b32.xlu0 %v3179, 1
        %v3578 = vpop.permute.xlu0 %3577
        %3579 = vrot.lane.b32.xlu0 %v3209, 1
        %v3580 = vpop.permute.xlu0 %3579
        %3581 = vrot.lane.b32.xlu0 %v3252, 1
        %v3582 = vpop.permute.xlu0 %3581
        %3583 = vrot.lane.b32.xlu0 %v3253, 1
        %v3584 = vpop.permute.xlu0 %3583
        %3585 = vrot.lane.b32.xlu0 %v3254, 1
        %v3586 = vpop.permute.xlu0 %3585
        %3587 = vrot.lane.b32.xlu0 %v3255, 1
        %v3588 = vpop.permute.xlu0 %3587
        %3589 = vrot.lane.b32.xlu0 %v3256, 1
        %v3590 = vpop.permute.xlu0 %3589
        %3591 = vrot.lane.b32.xlu0 %v3257, 1
        %v3592 = vpop.permute.xlu0 %3591
        %3593 = vrot.lane.b32.xlu0 %v3258, 1
        %v3594 = vpop.permute.xlu0 %3593
        %3595 = vrot.lane.b32.xlu0 %v3259, 1
        %v3596 = vpop.permute.xlu0 %3595
        %3597 = vrot.lane.b32.xlu0 %v3260, 1
        %v3598 = vpop.permute.xlu0 %3597
        %3599 = vrot.lane.b32.xlu0 %v3261, 1
        %v3600 = vpop.permute.xlu0 %3599
        %3601 = vrot.lane.b32.xlu0 %v3231, 1
        %v3602 = vpop.permute.xlu0 %3601
        %3603 = vrot.lane.b32.xlu0 %v3262, 1
        %v3604 = vpop.permute.xlu0 %3603
        %3605 = vrot.lane.b32.xlu0 %v3263, 1
        %v3606 = vpop.permute.xlu0 %3605
        %3607 = vrot.lane.b32.xlu0 %v3264, 1
        %v3608 = vpop.permute.xlu0 %3607
        %3609 = vrot.lane.b32.xlu0 %v3265, 1
        %v3610 = vpop.permute.xlu0 %3609
        %3611 = vrot.lane.b32.xlu0 %v3266, 1
        %v3612 = vpop.permute.xlu0 %3611
        %3613 = vrot.lane.b32.xlu0 %v3267, 1
        %v3614 = vpop.permute.xlu0 %3613
        %3615 = vrot.lane.b32.xlu0 %v3268, 1
        %v3616 = vpop.permute.xlu0 %3615
        %3617 = vrot.lane.b32.xlu0 %v3269, 1
        %v3618 = vpop.permute.xlu0 %3617
        %3619 = vrot.lane.b32.xlu0 %v3270, 1
        %v3620 = vpop.permute.xlu0 %3619
        %3621 = vrot.lane.b32.xlu0 %v3271, 1
        %v3622 = vpop.permute.xlu0 %3621
        %3623 = vrot.lane.b32.xlu0 %v3120, 1
        %v3624 = vpop.permute.xlu0 %3623
        %3625 = vrot.lane.b32.xlu0 %v3121, 1
        %v3626 = vpop.permute.xlu0 %3625
        %3627 = vrot.lane.b32.xlu0 %v3122, 1
        %v3628 = vpop.permute.xlu0 %3627
        %3629 = vrot.lane.b32.xlu0 %v3123, 1
        %v3630 = vpop.permute.xlu0 %3629
        %3631 = vrot.lane.b32.xlu0 %v3124, 1
        %v3632 = vpop.permute.xlu0 %3631
        %3633 = vrot.lane.b32.xlu0 %v3125, 1
        %v3634 = vpop.permute.xlu0 %3633
        %3635 = vrot.lane.b32.xlu0 %v3126, 1
        %v3636 = vpop.permute.xlu0 %3635
        %3637 = vrot.lane.b32.xlu0 %v3127, 1
        %v3638 = vpop.permute.xlu0 %3637
        %3639 = vrot.lane.b32.xlu0 %v3128, 1
        %v3640 = vpop.permute.xlu0 %3639
        %3641 = vrot.lane.b32.xlu0 %v3129, 1
        %v3642 = vpop.permute.xlu0 %3641
        %3643 = vrot.lane.b32.xlu0 %v3206, 1
        %v3644 = vpop.permute.xlu0 %3643
        %3645 = vrot.lane.b32.xlu0 %v3130, 1
        %v3646 = vpop.permute.xlu0 %3645
        %3647 = vrot.lane.b32.xlu0 %v3131, 1
        %v3648 = vpop.permute.xlu0 %3647
        %3649 = vrot.lane.b32.xlu0 %v3132, 1
        %v3650 = vpop.permute.xlu0 %3649
        %3651 = vrot.lane.b32.xlu0 %v3133, 1
        %v3652 = vpop.permute.xlu0 %3651
        %3653 = vrot.lane.b32.xlu0 %v3134, 1
        %v3654 = vpop.permute.xlu0 %3653
        %3655 = vrot.lane.b32.xlu0 %v3135, 1
        %v3656 = vpop.permute.xlu0 %3655
        %3657 = vrot.lane.b32.xlu0 %v3136, 1
        %v3658 = vpop.permute.xlu0 %3657
        %3659 = vrot.lane.b32.xlu0 %v3137, 1
        %v3660 = vpop.permute.xlu0 %3659
        %3661 = vrot.lane.b32.xlu0 %v3138, 1
        %v3662 = vpop.permute.xlu0 %3661
        %3663 = vrot.lane.b32.xlu0 %v3139, 1
        %v3664 = vpop.permute.xlu0 %3663
        %3665 = vrot.lane.b32.xlu0 %v3207, 1
        %v3666 = vpop.permute.xlu0 %3665
        %3667 = vrot.lane.b32.xlu0 %v3289, 1
        %v3668 = vpop.permute.xlu0 %3667
        %3669 = vrot.lane.b32.xlu0 %v3328, 1
        %v3670 = vpop.permute.xlu0 %3669
        %3671 = vrot.lane.b32.xlu0 %v3329, 1
        %v3672 = vpop.permute.xlu0 %3671
        %3673 = vrot.lane.b32.xlu0 %v3330, 1
        %v3674 = vpop.permute.xlu0 %3673
        %3675 = vrot.lane.b32.xlu0 %v3331, 1
        %v3676 = vpop.permute.xlu0 %3675
        %3677 = vrot.lane.b32.xlu0 %v3332, 1
        %v3678 = vpop.permute.xlu0 %3677
        %3679 = vrot.lane.b32.xlu0 %v3333, 1
        %v3680 = vpop.permute.xlu0 %3679
        %3681 = vrot.lane.b32.xlu0 %v3334, 1
        %v3682 = vpop.permute.xlu0 %3681
        %3683 = vrot.lane.b32.xlu0 %v3335, 1
        %v3684 = vpop.permute.xlu0 %3683
        %3685 = vrot.lane.b32.xlu0 %v3336, 1
        %v3686 = vpop.permute.xlu0 %3685
        %3687 = vrot.lane.b32.xlu0 %v3307, 1
        %v3688 = vpop.permute.xlu0 %3687
        %3689 = vrot.lane.b32.xlu0 %v3309, 1
        %v3690 = vpop.permute.xlu0 %3689
        %3691 = vrot.lane.b32.xlu0 %v3337, 1
        %v3692 = vpop.permute.xlu0 %3691
        %3693 = vrot.lane.b32.xlu0 %v3338, 1
        %v3694 = vpop.permute.xlu0 %3693
        %3695 = vrot.lane.b32.xlu0 %v3339, 1
        %v3696 = vpop.permute.xlu0 %3695
        %3697 = vrot.lane.b32.xlu0 %v3340, 1
        %v3698 = vpop.permute.xlu0 %3697
        %3699 = vrot.lane.b32.xlu0 %v3341, 1
        %v3700 = vpop.permute.xlu0 %3699
        %3701 = vrot.lane.b32.xlu0 %v3342, 1
        %v3702 = vpop.permute.xlu0 %3701
        %3703 = vrot.lane.b32.xlu0 %v3343, 1
        %v3704 = vpop.permute.xlu0 %3703
        %3705 = vrot.lane.b32.xlu0 %v3344, 1
        %v3706 = vpop.permute.xlu0 %3705
        %3707 = vrot.lane.b32.xlu0 %v3345, 1
        %v3708 = vpop.permute.xlu0 %3707
        %3709 = vrot.lane.b32.xlu0 %v3327, 1
        %v3710 = vpop.permute.xlu0 %3709
        %3711 = vrot.lane.b32.xlu0 %v3357, 1
        %v3712 = vpop.permute.xlu0 %3711
        %3713 = vrot.lane.b32.xlu0 %v3400, 1
        %v3714 = vpop.permute.xlu0 %3713
        %3715 = vrot.lane.b32.xlu0 %v3401, 1
        %v3716 = vpop.permute.xlu0 %3715
        %3717 = vrot.lane.b32.xlu0 %v3402, 1
        %v3718 = vpop.permute.xlu0 %3717
        %3719 = vrot.lane.b32.xlu0 %v3403, 1
        %v3720 = vpop.permute.xlu0 %3719
        %3721 = vrot.lane.b32.xlu0 %v3404, 1
        %v3722 = vpop.permute.xlu0 %3721
        %3723 = vrot.lane.b32.xlu0 %v3405, 1
        %v3724 = vpop.permute.xlu0 %3723
        %3725 = vrot.lane.b32.xlu0 %v3406, 1
        %v3726 = vpop.permute.xlu0 %3725
        %3727 = vrot.lane.b32.xlu0 %v3407, 1
        %v3728 = vpop.permute.xlu0 %3727
        %3729 = vrot.lane.b32.xlu0 %v3408, 1
        %v3730 = vpop.permute.xlu0 %3729
        %3731 = vrot.lane.b32.xlu0 %v3409, 1
        %v3732 = vpop.permute.xlu0 %3731
        %3733 = vrot.lane.b32.xlu0 %v3379, 1
        %v3734 = vpop.permute.xlu0 %3733
        %3735 = vrot.lane.b32.xlu0 %v3410, 1
        %v3736 = vpop.permute.xlu0 %3735
        %3737 = vrot.lane.b32.xlu0 %v3411, 1
        %v3738 = vpop.permute.xlu0 %3737
        %3739 = vrot.lane.b32.xlu0 %v3412, 1
        %v3740 = vpop.permute.xlu0 %3739
        %3741 = vrot.lane.b32.xlu0 %v3413, 1
        %v3742 = vpop.permute.xlu0 %3741
        %3743 = vrot.lane.b32.xlu0 %v3414, 1
        %v3744 = vpop.permute.xlu0 %3743
        %3745 = vrot.lane.b32.xlu0 %v3415, 1
        %v3746 = vpop.permute.xlu0 %3745
        %3747 = vrot.lane.b32.xlu0 %v3416, 1
        %v3748 = vpop.permute.xlu0 %3747
        %3749 = vrot.lane.b32.xlu0 %v3417, 1
        %v3750 = vpop.permute.xlu0 %3749
        %3751 = vrot.lane.b32.xlu0 %v3418, 1
        %v3752 = vpop.permute.xlu0 %3751
        %3753 = vrot.lane.b32.xlu0 %v3419, 1
        %v3754 = vpop.permute.xlu0 %3753
        %3755 = vrot.lane.b32.xlu0 %v3284, 1
        %v3756 = vpop.permute.xlu0 %3755
        %3757 = vrot.lane.b32.xlu0 %v3285, 1
        %v3758 = vpop.permute.xlu0 %3757
        %3759 = vrot.lane.b32.xlu0 %v3354, 1
        %v3760 = vpop.permute.xlu0 %3759
        %3761 = vrot.lane.b32.xlu0 %v3286, 1
        %v3762 = vpop.permute.xlu0 %3761
        %3763 = vrot.lane.b32.xlu0 %v3287, 1
        %v3764 = vpop.permute.xlu0 %3763
        %3765 = vrot.lane.b32.xlu0 %v3355, 1
        %v3766 = vpop.permute.xlu0 %3765
        %3767 = vrot.lane.b32.xlu0 %v3145, 1
        %v3768 = vpop.permute.xlu0 %3767
        %3769 = vrot.lane.b32.xlu0 %v3444, 1
        %v3770 = vpop.permute.xlu0 %3769
        %3771 = vrot.lane.b32.xlu0 %v3445, 1
        %v3772 = vpop.permute.xlu0 %3771
        %3773 = vrot.lane.b32.xlu0 %v3439, 1
        %v3774 = vpop.permute.xlu0 %3773
        %3775 = vrot.lane.b32.xlu0 %v3165, 1
        %v3776 = vpop.permute.xlu0 %3775
        %3777 = vrot.lane.b32.xlu0 %v3446, 1
        %v3778 = vpop.permute.xlu0 %3777
        %3779 = vrot.lane.b32.xlu0 %v3447, 1
        %v3780 = vpop.permute.xlu0 %3779
        %3781 = vrot.lane.b32.xlu0 %v3443, 1
        %v3782 = vpop.permute.xlu0 %3781
        %3783 = vrot.lane.b32.xlu0 %v3213, 1
        %v3784 = vpop.permute.xlu0 %3783
        %3785 = vrot.lane.b32.xlu0 %v3470, 1
        %v3786 = vpop.permute.xlu0 %3785
        %3787 = vrot.lane.b32.xlu0 %v3471, 1
        %v3788 = vpop.permute.xlu0 %3787
        %3789 = vrot.lane.b32.xlu0 %v3472, 1
        %v3790 = vpop.permute.xlu0 %3789
        %3791 = vrot.lane.b32.xlu0 %v3235, 1
        %v3792 = vpop.permute.xlu0 %3791
        %3793 = vrot.lane.b32.xlu0 %v3473, 1
        %v3794 = vpop.permute.xlu0 %3793
        %3795 = vrot.lane.b32.xlu0 %v3474, 1
        %v3796 = vpop.permute.xlu0 %3795
        %3797 = vrot.lane.b32.xlu0 %v3475, 1
        %v3798 = vpop.permute.xlu0 %3797
        %v3799 = vsel %vm939, %v3492, %v3494
        %v3800 = vsel %vm939, %v3494, %v3496
        %v3801 = vsel %vm939, %v3496, %v3498
        %v3802 = vsel %vm939, %v3498, %v3500
        %v3803 = vsel %vm939, %v3500, %v3502
        %v3804 = vsel %vm939, %v3502, %v3504
        %v3805 = vsel %vm939, %v3504, %v3506
        %v3806 = vsel %vm939, %v3506, %v3508
        %v3807 = vsel %vm939, %v3508, %v3510
        %v3808 = vsel %vm939, %v3510, %v3512
        %v3809 = vsel %vm939, %v3514, %v3516
        %v3810 = vsel %vm939, %v3516, %v3518
        %v3811 = vsel %vm939, %v3518, %v3520
        %v3812 = vsel %vm939, %v3520, %v3522
        %v3813 = vsel %vm939, %v3522, %v3524
        %v3814 = vsel %vm939, %v3524, %v3526
        %v3815 = vsel %vm939, %v3526, %v3528
        %v3816 = vsel %vm939, %v3528, %v3530
        %v3817 = vsel %vm939, %v3530, %v3532
        %v3818 = vsel %vm939, %v3532, %v3534
        %v3819 = vsel %vm939, %v3536, %v3538
        %v3820 = vsel %vm939, %v3538, %v3540
        %v3821 = vsel %vm939, %v3540, %v3542
        %v3822 = vsel %vm939, %v3542, %v3544
        %v3823 = vsel %vm939, %v3544, %v3546
        %v3824 = vsel %vm939, %v3546, %v3548
        %v3825 = vsel %vm939, %v3548, %v3550
        %v3826 = vsel %vm939, %v3550, %v3552
        %v3827 = vsel %vm939, %v3552, %v3554
        %v3828 = vsel %vm939, %v3554, %v3556
        %v3829 = vsel %vm939, %v3558, %v3560
        %v3830 = vsel %vm939, %v3560, %v3562
        %v3831 = vsel %vm939, %v3562, %v3564
        %v3832 = vsel %vm939, %v3564, %v3566
        %v3833 = vsel %vm939, %v3566, %v3568
        %v3834 = vsel %vm939, %v3568, %v3570
        %v3835 = vsel %vm939, %v3570, %v3572
        %v3836 = vsel %vm939, %v3572, %v3574
        %v3837 = vsel %vm939, %v3574, %v3576
        %v3838 = vsel %vm939, %v3576, %v3578
        %v3839 = vsel %vm939, %v3580, %v3582
        %v3840 = vsel %vm939, %v3582, %v3584
        %v3841 = vsel %vm939, %v3584, %v3586
        %v3842 = vsel %vm939, %v3586, %v3588
        %v3843 = vsel %vm939, %v3588, %v3590
        %v3844 = vsel %vm939, %v3590, %v3592
        %v3845 = vsel %vm939, %v3592, %v3594
        %v3846 = vsel %vm939, %v3594, %v3596
        %v3847 = vsel %vm939, %v3596, %v3598
        %v3848 = vsel %vm939, %v3598, %v3600
        %v3849 = vsel %vm939, %v3602, %v3604
        %v3850 = vsel %vm939, %v3604, %v3606
        %v3851 = vsel %vm939, %v3606, %v3608
        %v3852 = vsel %vm939, %v3608, %v3610
        %v3853 = vsel %vm939, %v3610, %v3612
        %v3854 = vsel %vm939, %v3612, %v3614
        %v3855 = vsel %vm939, %v3614, %v3616
        %v3856 = vsel %vm939, %v3616, %v3618
        %v3857 = vsel %vm939, %v3618, %v3620
        %v3858 = vsel %vm939, %v3620, %v3622
        %v3859 = vsel %vm939, %v3624, %v3626
        %v3860 = vsel %vm939, %v3626, %v3628
        %v3861 = vsel %vm939, %v3628, %v3630
        %v3862 = vsel %vm939, %v3630, %v3632
        %v3863 = vsel %vm939, %v3632, %v3634
        %v3864 = vsel %vm939, %v3634, %v3636
        %v3865 = vsel %vm939, %v3636, %v3638
        %v3866 = vsel %vm939, %v3638, %v3640
        %v3867 = vsel %vm939, %v3640, %v3642
        %v3868 = vsel %vm939, %v3642, %v3644
        %v3869 = vsel %vm939, %v3646, %v3648
        %v3870 = vsel %vm939, %v3648, %v3650
        %v3871 = vsel %vm939, %v3650, %v3652
        %v3872 = vsel %vm939, %v3652, %v3654
        %v3873 = vsel %vm939, %v3654, %v3656
        %v3874 = vsel %vm939, %v3656, %v3658
        %v3875 = vsel %vm939, %v3658, %v3660
        %v3876 = vsel %vm939, %v3660, %v3662
        %v3877 = vsel %vm939, %v3662, %v3664
        %v3878 = vsel %vm939, %v3664, %v3666
        %v3879 = vsel %vm939, %v3668, %v3670
        %v3880 = vsel %vm939, %v3670, %v3672
        %v3881 = vsel %vm939, %v3672, %v3674
        %v3882 = vsel %vm939, %v3674, %v3676
        %v3883 = vsel %vm939, %v3676, %v3678
        %v3884 = vsel %vm939, %v3678, %v3680
        %v3885 = vsel %vm939, %v3680, %v3682
        %v3886 = vsel %vm939, %v3682, %v3684
        %v3887 = vsel %vm939, %v3684, %v3686
        %v3888 = vsel %vm939, %v3686, %v3688
        %v3889 = vsel %vm939, %v3690, %v3692
        %v3890 = vsel %vm939, %v3692, %v3694
        %v3891 = vsel %vm939, %v3694, %v3696
        %v3892 = vsel %vm939, %v3696, %v3698
        %v3893 = vsel %vm939, %v3698, %v3700
        %v3894 = vsel %vm939, %v3700, %v3702
        %v3895 = vsel %vm939, %v3702, %v3704
        %v3896 = vsel %vm939, %v3704, %v3706
        %v3897 = vsel %vm939, %v3706, %v3708
        %v3898 = vsel %vm939, %v3708, %v3710
        %v3899 = vsel %vm939, %v3712, %v3714
        %v3900 = vsel %vm939, %v3714, %v3716
        %v3901 = vsel %vm939, %v3716, %v3718
        %v3902 = vsel %vm939, %v3718, %v3720
        %v3903 = vsel %vm939, %v3720, %v3722
        %v3904 = vsel %vm939, %v3722, %v3724
        %v3905 = vsel %vm939, %v3724, %v3726
        %v3906 = vsel %vm939, %v3726, %v3728
        %v3907 = vsel %vm939, %v3728, %v3730
        %v3908 = vsel %vm939, %v3730, %v3732
        %v3909 = vsel %vm939, %v3734, %v3736
        %v3910 = vsel %vm939, %v3736, %v3738
        %v3911 = vsel %vm939, %v3738, %v3740
        %v3912 = vsel %vm939, %v3740, %v3742
        %v3913 = vsel %vm939, %v3742, %v3744
        %v3914 = vsel %vm939, %v3744, %v3746
        %v3915 = vsel %vm939, %v3746, %v3748
        %v3916 = vsel %vm939, %v3748, %v3750
        %v3917 = vsel %vm939, %v3750, %v3752
        %v3918 = vsel %vm939, %v3752, %v3754
        %v3919 = vsel %vm939, %v3510, %v3756
        %v3920 = vsel %vm939, %v3756, %v3758
        %v3921 = vsel %vm939, %v3758, %v3760
        %v3922 = vsel %vm939, %v3532, %v3762
        %v3923 = vsel %vm939, %v3762, %v3764
        %v3924 = vsel %vm939, %v3764, %v3766
        %v3925 = vsel %vm939, %v3768, %v3542
        %v3926 = vsel %vm939, %v3554, %v3770
        %v3927 = vsel %vm939, %v3770, %v3772
        %v3928 = vsel %vm939, %v3772, %v3774
        %v3929 = vsel %vm939, %v3776, %v3564
        %v3930 = vsel %vm939, %v3576, %v3778
        %v3931 = vsel %vm939, %v3778, %v3780
        %v3932 = vsel %vm939, %v3780, %v3782
        %v3933 = vsel %vm939, %v3784, %v3586
        %v3934 = vsel %vm939, %v3598, %v3786
        %v3935 = vsel %vm939, %v3786, %v3788
        %v3936 = vsel %vm939, %v3788, %v3790
        %v3937 = vsel %vm939, %v3792, %v3608
        %v3938 = vsel %vm939, %v3620, %v3794
        %v3939 = vsel %vm939, %v3794, %v3796
        %v3940 = vsel %vm939, %v3796, %v3798
        %vm4083 = vcmask 261120
        %v4085 = vsel %vm4083, %v3488, 0
        %4087 = vmatprep.subr.bf16.mxu0 %v3870
        %4088 = vmatpush1.bf16.msra.mxu0 %v3869
        %4089 = vmatprep.subr.bf16.mxu0 %v3860
        %4090 = vmatpush1.bf16.msra.mxu0 %v3859
        %4091 = vmatprep.subr.bf16.mxu0 %v3850
        %4092 = vmatpush1.bf16.msra.mxu0 %v3849
        %4093 = vmatprep.subr.bf16.mxu0 %v3840
        %4094 = vmatpush1.bf16.msra.mxu0 %v3839
        %4095 = vmatprep.subr.bf16.mxu0 %v3830
        %4096 = vmatpush1.bf16.msra.mxu0 %v3829
        %4097 = vmatprep.subr.bf16.mxu0 %v3820
        %4098 = vmatpush1.bf16.msra.mxu0 %v3819
        %4099 = vmatprep.subr.bf16.mxu0 %v3810
        %4100 = vmatpush1.bf16.msra.mxu0 %v3809
        %4101 = vmatprep.subr.bf16.mxu0 %v3800
        %4102 = vmatpush1.bf16.msra.mxu0 %v3799
        %4103 = vmatprep.subr.bf16.mxu0 %v3832
        %4104 = vmatpush2.bf16.msra.mxu0 %v3929
        %4105 = vmatprep.subr.bf16.mxu0 %v3822
        %4106 = vmatpush2.bf16.msra.mxu0 %v3925
        %4107 = vmatprep.subr.bf16.mxu0 %v3812
        %4108 = vmatpush2.bf16.msra.mxu0 %v3811
        %4109 = vmatprep.subr.bf16.mxu0 %v3802
        %4110 = vmatpush2.bf16.msra.mxu0 %v3801
        %4111 = vmatprep.subr.bf16.mxu0 %v3910
        %4112 = vmatpush2.bf16.msra.mxu0 %v3909
        %4113 = vmatprep.subr.bf16.mxu0 %v3900
        %4114 = vmatpush2.bf16.msra.mxu0 %v3899
        %4115 = vmatprep.subr.bf16.mxu0 %v3890
        %4116 = vmatpush2.bf16.msra.mxu0 %v3889
        %4117 = vmatprep.subr.bf16.mxu0 %v3880
        %4118 = vmatpush2.bf16.msra.mxu0 %v3879
        %4119 = vmatprep.mubr.bf16.mxu0 %v3487
        %4120 = vmatmul.mubr.bf16.gmra.mxu0 %v3486
        %v4121 = vpop.f32.mrf.mxu0
        %v4122 = vadd.f32 %v3479, %v4121
        %v4123 = vpop.f32.mrf.mxu0
        %v4124 = vadd.f32 %v3479, %v4123
        %v4125 = vpop.f32.mrf.mxu0
        %v4126 = vpop.f32.mrf.mxu0
        %4127 = vdwg.mxu0
        %4128 = vmatprep.subr.bf16.mxu0 0
        %4129 = vmatpush1.bf16.msra.mxu0 0
        %4130 = vmatprep.subr.bf16.mxu0 0
        %4131 = vmatpush1.bf16.msra.mxu0 0
        %4132 = vmatprep.subr.bf16.mxu0 0
        %4133 = vmatpush1.bf16.msra.mxu0 0
        %4134 = vmatprep.subr.bf16.mxu0 0
        %4135 = vmatpush1.bf16.msra.mxu0 0
        %4136 = vmatprep.subr.bf16.mxu0 0
        %4137 = vmatpush1.bf16.msra.mxu0 0
        %4138 = vmatprep.subr.bf16.mxu0 0
        %4139 = vmatpush1.bf16.msra.mxu0 0
        %4140 = vmatprep.subr.bf16.mxu0 %v3852
        %4141 = vmatpush1.bf16.msra.mxu0 %v3937
        %4142 = vmatprep.subr.bf16.mxu0 %v3842
        %4143 = vmatpush1.bf16.msra.mxu0 %v3933
        %4144 = vmatprep.subr.bf16.mxu0 0
        %4145 = vmatpush2.bf16.msra.mxu0 0
        %4146 = vmatprep.subr.bf16.mxu0 0
        %4147 = vmatpush2.bf16.msra.mxu0 0
        %4148 = vmatprep.subr.bf16.mxu0 0
        %4149 = vmatpush2.bf16.msra.mxu0 0
        %4150 = vmatprep.subr.bf16.mxu0 0
        %4151 = vmatpush2.bf16.msra.mxu0 0
        %4152 = vmatprep.subr.bf16.mxu0 0
        %4153 = vmatpush2.bf16.msra.mxu0 0
        %4154 = vmatprep.subr.bf16.mxu0 0
        %4155 = vmatpush2.bf16.msra.mxu0 0
        %4156 = vmatprep.subr.bf16.mxu0 0
        %4157 = vmatpush2.bf16.msra.mxu0 0
        %4158 = vmatprep.subr.bf16.mxu0 0
        %4159 = vmatpush2.bf16.msra.mxu0 0
        %4160 = vmatprep.mubr.bf16.mxu0 0
        %4161 = vmatmul.mubr.bf16.gmra.mxu0 %v4085
        %v4162 = vpop.f32.mrf.mxu0
        %v4163 = vadd.f32 %v4122, %v4162
        %v4164 = vpop.f32.mrf.mxu0
        %v4165 = vadd.f32 %v4124, %v4164
        %v4166 = vpop.f32.mrf.mxu0
        %v4167 = vpop.f32.mrf.mxu0
        %4168 = vdwg.mxu0
        %4169 = vmatprep.subr.bf16.mxu0 %v3872
        %4170 = vmatpush1.bf16.msra.mxu0 %v3871
        %4171 = vmatprep.subr.bf16.mxu0 %v3862
        %4172 = vmatpush1.bf16.msra.mxu0 %v3861
        %4173 = vmatprep.subr.bf16.mxu0 %v3852
        %4174 = vmatpush1.bf16.msra.mxu0 %v3851
        %4175 = vmatprep.subr.bf16.mxu0 %v3842
        %4176 = vmatpush1.bf16.msra.mxu0 %v3841
        %4177 = vmatprep.subr.bf16.mxu0 %v3832
        %4178 = vmatpush1.bf16.msra.mxu0 %v3831
        %4179 = vmatprep.subr.bf16.mxu0 %v3822
        %4180 = vmatpush1.bf16.msra.mxu0 %v3821
        %4181 = vmatprep.subr.bf16.mxu0 %v3812
        %4182 = vmatpush1.bf16.msra.mxu0 %v3811
        %4183 = vmatprep.subr.bf16.mxu0 %v3802
        %4184 = vmatpush1.bf16.msra.mxu0 %v3801
        %4185 = vmatprep.subr.bf16.mxu0 %v3834
        %4186 = vmatpush2.bf16.msra.mxu0 %v3833
        %4187 = vmatprep.subr.bf16.mxu0 %v3824
        %4188 = vmatpush2.bf16.msra.mxu0 %v3823
        %4189 = vmatprep.subr.bf16.mxu0 %v3814
        %4190 = vmatpush2.bf16.msra.mxu0 %v3813
        %4191 = vmatprep.subr.bf16.mxu0 %v3804
        %4192 = vmatpush2.bf16.msra.mxu0 %v3803
        %4193 = vmatprep.subr.bf16.mxu0 %v3912
        %4194 = vmatpush2.bf16.msra.mxu0 %v3911
        %4195 = vmatprep.subr.bf16.mxu0 %v3902
        %4196 = vmatpush2.bf16.msra.mxu0 %v3901
        %4197 = vmatprep.subr.bf16.mxu0 %v3892
        %4198 = vmatpush2.bf16.msra.mxu0 %v3891
        %4199 = vmatprep.subr.bf16.mxu0 %v3882
        %4200 = vmatpush2.bf16.msra.mxu0 %v3881
        %4201 = vmatprep.mubr.bf16.mxu0 %v3487
        %4202 = vmatmul.mubr.bf16.gmra.mxu0 %v3486
        %v4203 = vpop.f32.mrf.mxu0
        %v4204 = vadd.f32 %v3479, %v4203
        %v4205 = vpop.f32.mrf.mxu0
        %v4206 = vadd.f32 %v3479, %v4205
        %v4207 = vpop.f32.mrf.mxu0
        %v4208 = vpop.f32.mrf.mxu0
        %4209 = vdwg.mxu0
        %4210 = vmatprep.subr.bf16.mxu0 0
        %4211 = vmatpush1.bf16.msra.mxu0 0
        %4212 = vmatprep.subr.bf16.mxu0 0
        %4213 = vmatpush1.bf16.msra.mxu0 0
        %4214 = vmatprep.subr.bf16.mxu0 0
        %4215 = vmatpush1.bf16.msra.mxu0 0
        %4216 = vmatprep.subr.bf16.mxu0 0
        %4217 = vmatpush1.bf16.msra.mxu0 0
        %4218 = vmatprep.subr.bf16.mxu0 0
        %4219 = vmatpush1.bf16.msra.mxu0 0
        %4220 = vmatprep.subr.bf16.mxu0 0
        %4221 = vmatpush1.bf16.msra.mxu0 0
        %4222 = vmatprep.subr.bf16.mxu0 %v3854
        %4223 = vmatpush1.bf16.msra.mxu0 %v3853
        %4224 = vmatprep.subr.bf16.mxu0 %v3844
        %4225 = vmatpush1.bf16.msra.mxu0 %v3843
        %4226 = vmatprep.subr.bf16.mxu0 0
        %4227 = vmatpush2.bf16.msra.mxu0 0
        %4228 = vmatprep.subr.bf16.mxu0 0
        %4229 = vmatpush2.bf16.msra.mxu0 0
        %4230 = vmatprep.subr.bf16.mxu0 0
        %4231 = vmatpush2.bf16.msra.mxu0 0
        %4232 = vmatprep.subr.bf16.mxu0 0
        %4233 = vmatpush2.bf16.msra.mxu0 0
        %4234 = vmatprep.subr.bf16.mxu0 0
        %4235 = vmatpush2.bf16.msra.mxu0 0
        %4236 = vmatprep.subr.bf16.mxu0 0
        %4237 = vmatpush2.bf16.msra.mxu0 0
        %4238 = vmatprep.subr.bf16.mxu0 0
        %4239 = vmatpush2.bf16.msra.mxu0 0
        %4240 = vmatprep.subr.bf16.mxu0 0
        %4241 = vmatpush2.bf16.msra.mxu0 0
        %4242 = vmatprep.mubr.bf16.mxu0 0
        %4243 = vmatmul.mubr.bf16.gmra.mxu0 %v4085
        %v4244 = vpop.f32.mrf.mxu0
        %v4245 = vadd.f32 %v4204, %v4244
        %v4246 = vpop.f32.mrf.mxu0
        %v4247 = vadd.f32 %v4206, %v4246
        %v4248 = vpop.f32.mrf.mxu0
        %v4249 = vpop.f32.mrf.mxu0
        %4250 = vdwg.mxu0
        %4251 = vmatprep.subr.bf16.mxu0 %v3874
        %4252 = vmatpush1.bf16.msra.mxu0 %v3873
        %4253 = vmatprep.subr.bf16.mxu0 %v3864
        %4254 = vmatpush1.bf16.msra.mxu0 %v3863
        %4255 = vmatprep.subr.bf16.mxu0 %v3854
        %4256 = vmatpush1.bf16.msra.mxu0 %v3853
        %4257 = vmatprep.subr.bf16.mxu0 %v3844
        %4258 = vmatpush1.bf16.msra.mxu0 %v3843
        %4259 = vmatprep.subr.bf16.mxu0 %v3834
        %4260 = vmatpush1.bf16.msra.mxu0 %v3833
        %4261 = vmatprep.subr.bf16.mxu0 %v3824
        %4262 = vmatpush1.bf16.msra.mxu0 %v3823
        %4263 = vmatprep.subr.bf16.mxu0 %v3814
        %4264 = vmatpush1.bf16.msra.mxu0 %v3813
        %4265 = vmatprep.subr.bf16.mxu0 %v3804
        %4266 = vmatpush1.bf16.msra.mxu0 %v3803
        %4267 = vmatprep.subr.bf16.mxu0 %v3836
        %4268 = vmatpush2.bf16.msra.mxu0 %v3835
        %4269 = vmatprep.subr.bf16.mxu0 %v3826
        %4270 = vmatpush2.bf16.msra.mxu0 %v3825
        %4271 = vmatprep.subr.bf16.mxu0 %v3816
        %4272 = vmatpush2.bf16.msra.mxu0 %v3815
        %4273 = vmatprep.subr.bf16.mxu0 %v3806
        %4274 = vmatpush2.bf16.msra.mxu0 %v3805
        %4275 = vmatprep.subr.bf16.mxu0 %v3914
        %4276 = vmatpush2.bf16.msra.mxu0 %v3913
        %4277 = vmatprep.subr.bf16.mxu0 %v3904
        %4278 = vmatpush2.bf16.msra.mxu0 %v3903
        %4279 = vmatprep.subr.bf16.mxu0 %v3894
        %4280 = vmatpush2.bf16.msra.mxu0 %v3893
        %4281 = vmatprep.subr.bf16.mxu0 %v3884
        %4282 = vmatpush2.bf16.msra.mxu0 %v3883
        %4283 = vmatprep.mubr.bf16.mxu0 %v3487
        %4284 = vmatmul.mubr.bf16.gmra.mxu0 %v3486
        %v4285 = vpop.f32.mrf.mxu0
        %v4286 = vadd.f32 %v3479, %v4285
        %v4287 = vpop.f32.mrf.mxu0
        %v4288 = vadd.f32 %v3479, %v4287
        %v4289 = vpop.f32.mrf.mxu0
        %v4290 = vpop.f32.mrf.mxu0
        %4291 = vdwg.mxu0
        %4292 = vmatprep.subr.bf16.mxu0 0
        %4293 = vmatpush1.bf16.msra.mxu0 0
        %4294 = vmatprep.subr.bf16.mxu0 0
        %4295 = vmatpush1.bf16.msra.mxu0 0
        %4296 = vmatprep.subr.bf16.mxu0 0
        %4297 = vmatpush1.bf16.msra.mxu0 0
        %4298 = vmatprep.subr.bf16.mxu0 0
        %4299 = vmatpush1.bf16.msra.mxu0 0
        %4300 = vmatprep.subr.bf16.mxu0 0
        %4301 = vmatpush1.bf16.msra.mxu0 0
        %4302 = vmatprep.subr.bf16.mxu0 0
        %4303 = vmatpush1.bf16.msra.mxu0 0
        %4304 = vmatprep.subr.bf16.mxu0 %v3856
        %4305 = vmatpush1.bf16.msra.mxu0 %v3855
        %4306 = vmatprep.subr.bf16.mxu0 %v3846
        %4307 = vmatpush1.bf16.msra.mxu0 %v3845
        %4308 = vmatprep.subr.bf16.mxu0 0
        %4309 = vmatpush2.bf16.msra.mxu0 0
        %4310 = vmatprep.subr.bf16.mxu0 0
        %4311 = vmatpush2.bf16.msra.mxu0 0
        %4312 = vmatprep.subr.bf16.mxu0 0
        %4313 = vmatpush2.bf16.msra.mxu0 0
        %4314 = vmatprep.subr.bf16.mxu0 0
        %4315 = vmatpush2.bf16.msra.mxu0 0
        %4316 = vmatprep.subr.bf16.mxu0 0
        %4317 = vmatpush2.bf16.msra.mxu0 0
        %4318 = vmatprep.subr.bf16.mxu0 0
        %4319 = vmatpush2.bf16.msra.mxu0 0
        %4320 = vmatprep.subr.bf16.mxu0 0
        %4321 = vmatpush2.bf16.msra.mxu0 0
        %4322 = vmatprep.subr.bf16.mxu0 0
        %4323 = vmatpush2.bf16.msra.mxu0 0
        %4324 = vmatprep.mubr.bf16.mxu0 0
        %4325 = vmatmul.mubr.bf16.gmra.mxu0 %v4085
        %v4326 = vpop.f32.mrf.mxu0
        %v4327 = vadd.f32 %v4286, %v4326
        %v4328 = vpop.f32.mrf.mxu0
        %v4329 = vadd.f32 %v4288, %v4328
        %v4330 = vpop.f32.mrf.mxu0
        %v4331 = vpop.f32.mrf.mxu0
        %4332 = vdwg.mxu0
        %4333 = vmatprep.subr.bf16.mxu0 %v3876
        %4334 = vmatpush1.bf16.msra.mxu0 %v3875
        %4335 = vmatprep.subr.bf16.mxu0 %v3866
        %4336 = vmatpush1.bf16.msra.mxu0 %v3865
        %4337 = vmatprep.subr.bf16.mxu0 %v3856
        %4338 = vmatpush1.bf16.msra.mxu0 %v3855
        %4339 = vmatprep.subr.bf16.mxu0 %v3846
        %4340 = vmatpush1.bf16.msra.mxu0 %v3845
        %4341 = vmatprep.subr.bf16.mxu0 %v3836
        %4342 = vmatpush1.bf16.msra.mxu0 %v3835
        %4343 = vmatprep.subr.bf16.mxu0 %v3826
        %4344 = vmatpush1.bf16.msra.mxu0 %v3825
        %4345 = vmatprep.subr.bf16.mxu0 %v3816
        %4346 = vmatpush1.bf16.msra.mxu0 %v3815
        %4347 = vmatprep.subr.bf16.mxu0 %v3806
        %4348 = vmatpush1.bf16.msra.mxu0 %v3805
        %4349 = vmatprep.subr.bf16.mxu0 %v3930
        %4350 = vmatpush2.bf16.msra.mxu0 %v3837
        %4351 = vmatprep.subr.bf16.mxu0 %v3926
        %4352 = vmatpush2.bf16.msra.mxu0 %v3827
        %4353 = vmatprep.subr.bf16.mxu0 %v3922
        %4354 = vmatpush2.bf16.msra.mxu0 %v3817
        %4355 = vmatprep.subr.bf16.mxu0 %v3919
        %4356 = vmatpush2.bf16.msra.mxu0 %v3807
        %4357 = vmatprep.subr.bf16.mxu0 %v3916
        %4358 = vmatpush2.bf16.msra.mxu0 %v3915
        %4359 = vmatprep.subr.bf16.mxu0 %v3906
        %4360 = vmatpush2.bf16.msra.mxu0 %v3905
        %4361 = vmatprep.subr.bf16.mxu0 %v3896
        %4362 = vmatpush2.bf16.msra.mxu0 %v3895
        %4363 = vmatprep.subr.bf16.mxu0 %v3886
        %4364 = vmatpush2.bf16.msra.mxu0 %v3885
        %4365 = vmatprep.mubr.bf16.mxu0 %v3487
        %4366 = vmatmul.mubr.bf16.gmra.mxu0 %v3486
        %v4367 = vpop.f32.mrf.mxu0
        %v4368 = vadd.f32 %v3479, %v4367
        %v4369 = vpop.f32.mrf.mxu0
        %v4370 = vadd.f32 %v3479, %v4369
        %v4371 = vpop.f32.mrf.mxu0
        %v4372 = vpop.f32.mrf.mxu0
        %4373 = vdwg.mxu0
        %4374 = vmatprep.subr.bf16.mxu0 0
        %4375 = vmatpush1.bf16.msra.mxu0 0
        %4376 = vmatprep.subr.bf16.mxu0 0
        %4377 = vmatpush1.bf16.msra.mxu0 0
        %4378 = vmatprep.subr.bf16.mxu0 0
        %4379 = vmatpush1.bf16.msra.mxu0 0
        %4380 = vmatprep.subr.bf16.mxu0 0
        %4381 = vmatpush1.bf16.msra.mxu0 0
        %4382 = vmatprep.subr.bf16.mxu0 0
        %4383 = vmatpush1.bf16.msra.mxu0 0
        %4384 = vmatprep.subr.bf16.mxu0 0
        %4385 = vmatpush1.bf16.msra.mxu0 0
        %4386 = vmatprep.subr.bf16.mxu0 %v3938
        %4387 = vmatpush1.bf16.msra.mxu0 %v3857
        %4388 = vmatprep.subr.bf16.mxu0 %v3934
        %4389 = vmatpush1.bf16.msra.mxu0 %v3847
        %4390 = vmatprep.subr.bf16.mxu0 0
        %4391 = vmatpush2.bf16.msra.mxu0 0
        %4392 = vmatprep.subr.bf16.mxu0 0
        %4393 = vmatpush2.bf16.msra.mxu0 0
        %4394 = vmatprep.subr.bf16.mxu0 0
        %4395 = vmatpush2.bf16.msra.mxu0 0
        %4396 = vmatprep.subr.bf16.mxu0 0
        %4397 = vmatpush2.bf16.msra.mxu0 0
        %4398 = vmatprep.subr.bf16.mxu0 0
        %4399 = vmatpush2.bf16.msra.mxu0 0
        %4400 = vmatprep.subr.bf16.mxu0 0
        %4401 = vmatpush2.bf16.msra.mxu0 0
        %4402 = vmatprep.subr.bf16.mxu0 0
        %4403 = vmatpush2.bf16.msra.mxu0 0
        %4404 = vmatprep.subr.bf16.mxu0 0
        %4405 = vmatpush2.bf16.msra.mxu0 0
        %4406 = vmatprep.mubr.bf16.mxu0 0
        %4407 = vmatmul.mubr.bf16.gmra.mxu0 %v4085
        %v4408 = vpop.f32.mrf.mxu0
        %v4409 = vadd.f32 %v4368, %v4408
        %v4410 = vpop.f32.mrf.mxu0
        %v4411 = vadd.f32 %v4370, %v4410
        %v4412 = vpop.f32.mrf.mxu0
        %v4413 = vpop.f32.mrf.mxu0
        %4414 = vdwg.mxu0
        %4415 = vmatprep.subr.bf16.mxu0 %v3878
        %4416 = vmatpush1.bf16.msra.mxu0 %v3877
        %4417 = vmatprep.subr.bf16.mxu0 %v3868
        %4418 = vmatpush1.bf16.msra.mxu0 %v3867
        %4419 = vmatprep.subr.bf16.mxu0 %v3858
        %4420 = vmatpush1.bf16.msra.mxu0 %v3857
        %4421 = vmatprep.subr.bf16.mxu0 %v3848
        %4422 = vmatpush1.bf16.msra.mxu0 %v3847
        %4423 = vmatprep.subr.bf16.mxu0 %v3838
        %4424 = vmatpush1.bf16.msra.mxu0 %v3837
        %4425 = vmatprep.subr.bf16.mxu0 %v3828
        %4426 = vmatpush1.bf16.msra.mxu0 %v3827
        %4427 = vmatprep.subr.bf16.mxu0 %v3818
        %4428 = vmatpush1.bf16.msra.mxu0 %v3817
        %4429 = vmatprep.subr.bf16.mxu0 %v3808
        %4430 = vmatpush1.bf16.msra.mxu0 %v3807
        %4431 = vmatprep.subr.bf16.mxu0 %v3932
        %4432 = vmatpush2.bf16.msra.mxu0 %v3931
        %4433 = vmatprep.subr.bf16.mxu0 %v3928
        %4434 = vmatpush2.bf16.msra.mxu0 %v3927
        %4435 = vmatprep.subr.bf16.mxu0 %v3924
        %4436 = vmatpush2.bf16.msra.mxu0 %v3923
        %4437 = vmatprep.subr.bf16.mxu0 %v3921
        %4438 = vmatpush2.bf16.msra.mxu0 %v3920
        %4439 = vmatprep.subr.bf16.mxu0 %v3918
        %4440 = vmatpush2.bf16.msra.mxu0 %v3917
        %4441 = vmatprep.subr.bf16.mxu0 %v3908
        %4442 = vmatpush2.bf16.msra.mxu0 %v3907
        %4443 = vmatprep.subr.bf16.mxu0 %v3898
        %4444 = vmatpush2.bf16.msra.mxu0 %v3897
        %4445 = vmatprep.subr.bf16.mxu0 %v3888
        %4446 = vmatpush2.bf16.msra.mxu0 %v3887
        %4447 = vmatprep.mubr.bf16.mxu0 %v3487
        %4448 = vmatmul.mubr.bf16.gmra.mxu0 %v3486
        %v4449 = vpop.f32.mrf.mxu0
        %v4450 = vadd.f32 %v3479, %v4449
        %v4451 = vpop.f32.mrf.mxu0
        %v4452 = vadd.f32 %v3479, %v4451
        %v4453 = vpop.f32.mrf.mxu0
        %v4454 = vpop.f32.mrf.mxu0
        %4455 = vdwg.mxu0
        %4456 = vmatprep.subr.bf16.mxu0 0
        %4457 = vmatpush1.bf16.msra.mxu0 0
        %4458 = vmatprep.subr.bf16.mxu0 0
        %4459 = vmatpush1.bf16.msra.mxu0 0
        %4460 = vmatprep.subr.bf16.mxu0 0
        %4461 = vmatpush1.bf16.msra.mxu0 0
        %4462 = vmatprep.subr.bf16.mxu0 0
        %4463 = vmatpush1.bf16.msra.mxu0 0
        %4464 = vmatprep.subr.bf16.mxu0 0
        %4465 = vmatpush1.bf16.msra.mxu0 0
        %4466 = vmatprep.subr.bf16.mxu0 0
        %4467 = vmatpush1.bf16.msra.mxu0 0
        %4468 = vmatprep.subr.bf16.mxu0 %v3940
        %4469 = vmatpush1.bf16.msra.mxu0 %v3939
        %4470 = vmatprep.subr.bf16.mxu0 %v3936
        %4471 = vmatpush1.bf16.msra.mxu0 %v3935
        %4472 = vmatprep.subr.bf16.mxu0 0
        %4473 = vmatpush2.bf16.msra.mxu0 0
        %4474 = vmatprep.subr.bf16.mxu0 0
        %4475 = vmatpush2.bf16.msra.mxu0 0
        %4476 = vmatprep.subr.bf16.mxu0 0
        %4477 = vmatpush2.bf16.msra.mxu0 0
        %4478 = vmatprep.subr.bf16.mxu0 0
        %4479 = vmatpush2.bf16.msra.mxu0 0
        %4480 = vmatprep.subr.bf16.mxu0 0
        %4481 = vmatpush2.bf16.msra.mxu0 0
        %4482 = vmatprep.subr.bf16.mxu0 0
        %4483 = vmatpush2.bf16.msra.mxu0 0
        %4484 = vmatprep.subr.bf16.mxu0 0
        %4485 = vmatpush2.bf16.msra.mxu0 0
        %4486 = vmatprep.subr.bf16.mxu0 0
        %4487 = vmatpush2.bf16.msra.mxu0 0
        %4488 = vmatprep.mubr.bf16.mxu0 0
        %4489 = vmatmul.mubr.bf16.gmra.mxu0 %v4085
        %v4490 = vpop.f32.mrf.mxu0
        %v4491 = vadd.f32 %v4450, %v4490
        %v4492 = vpop.f32.mrf.mxu0
        %v4493 = vadd.f32 %v4452, %v4492
        %v4494 = vpop.f32.mrf.mxu0
        %v4495 = vpop.f32.mrf.mxu0
        %4496 = vdwg.mxu0
        %v4497 = vmax.f32 %v4163, 0.0
        %v4498 = vmax.f32 %v4165, 0.0
        %v4499 = vmax.f32 %v4245, 0.0
        %v4500 = vmax.f32 %v4247, 0.0
        %v4501 = vmax.f32 %v4327, 0.0
        %v4502 = vmax.f32 %v4329, 0.0
        %v4503 = vmax.f32 %v4409, 0.0
        %v4504 = vmax.f32 %v4411, 0.0
        %v4505 = vmax.f32 %v4491, 0.0
        %v4506 = vmax.f32 %v4493, 0.0
        %v4507 = vsel %vm1345, %v4497, 0.0
        %v4508 = vsel %vm1346, %v4498, 0.0
        %v4509 = vsel %vm1347, %v4499, 0.0
        %v4510 = vsel %vm1348, %v4500, 0.0
        %v4511 = vsel %vm1349, %v4501, 0.0
        %v4512 = vsel %vm1350, %v4502, 0.0
        %v4513 = vsel %vm1351, %v4503, 0.0
        %v4514 = vsel %vm1352, %v4504, 0.0
        %v4515 = vsel %vm1353, %v4505, 0.0
        %v4516 = vsel %vm1354, %v4506, 0.0
        %v4517 = vpack.c.bf16 %v4507, %v4507
        %v4518 = vpack.c.bf16 %v4508, %v4508
        %v4519 = vpack.c.bf16 %v4509, %v4509
        %v4520 = vpack.c.bf16 %v4510, %v4510
        %v4521 = vpack.c.bf16 %v4511, %v4511
        %v4522 = vpack.c.bf16 %v4512, %v4512
        %v4523 = vpack.c.bf16 %v4513, %v4513
        %v4524 = vpack.c.bf16 %v4514, %v4514
        %v4525 = vpack.c.bf16 %v4515, %v4515
        %v4526 = vpack.c.bf16 %v4516, %v4516
        %v4537 = vunpack.c.l.b16 %v4517
        %v4538 = vunpack.c.l.b16 %v4518
        %v4539 = vunpack.c.l.b16 %v4519
        %v4540 = vunpack.c.l.b16 %v4520
        %v4541 = vunpack.c.l.b16 %v4521
        %v4542 = vunpack.c.l.b16 %v4522
        %v4543 = vunpack.c.l.b16 %v4523
        %v4544 = vunpack.c.l.b16 %v4524
        %v4545 = vunpack.c.l.b16 %v4525
        %v4546 = vunpack.c.l.b16 %v4526
        %v4547 = vpack.c.b16 %v4538, %v4537
        %v4548 = vpack.c.b16 %v4540, %v4539
        %v4549 = vpack.c.b16 %v4542, %v4541
        %v4550 = vpack.c.b16 %v4544, %v4543
        %v4551 = vpack.c.b16 %v4546, %v4545
        %4557 = vst [vmem:[#allocation2 + $0xe8] sm:$0xff] %v4547
        %4558 = vst [vmem:[#allocation2 + $0xf0] sm:$0xff] %v4548
        %4559 = vst [vmem:[#allocation2 + $0xf8] sm:$0xff] %v4549
        %4560 = vst [vmem:[#allocation2 + $0x100] sm:$0xff] %v4550
        %4561 = vst [vmem:[#allocation2 + $0x108] sm:$0xff] %v4551
        %v4562 = vld [vmem:[%s8] sm:$0xf]
        %v4563 = vld [vmem:[%s8 + $0x4] sm:$0xf]
        %v4564 = vld [vmem:[%s9] sm:$0xff]
        %v4565 = vld [vmem:[%s9 + $0x8] sm:$0xff]
        %v4566 = vld [vmem:[#allocation2 + $0xc] sm:$0xf]
        %v4567 = vld [vmem:[#allocation2 + $0x44] sm:$0xf]
        %v4568 = vld [vmem:[#allocation2 + $0x7c] sm:$0xf]
        %v4569 = vld [vmem:[#allocation2 + $0xb4] sm:$0xf]
        %v4570 = vld [vmem:[#allocation2 + $0xec] sm:$0xf]
        %v4571 = vld [vmem:[#allocation2 + $0x10] sm:$0xf]
        %v4572 = vld [vmem:[#allocation2 + $0x48] sm:$0xf]
        %v4573 = vld [vmem:[#allocation2 + $0x80] sm:$0xf]
        %v4574 = vld [vmem:[#allocation2 + $0xb8] sm:$0xf]
        %v4575 = vld [vmem:[#allocation2 + $0xf0] sm:$0xf]
        %v4576 = vld [vmem:[#allocation2 + $0x14] sm:$0xf]
        %v4577 = vld [vmem:[#allocation2 + $0x4c] sm:$0xf]
        %v4578 = vld [vmem:[#allocation2 + $0x84] sm:$0xf]
        %v4579 = vld [vmem:[#allocation2 + $0xbc] sm:$0xf]
        %v4580 = vld [vmem:[#allocation2 + $0xf4] sm:$0xf]
        %v4581 = vld [vmem:[#allocation2 + $0x18] sm:$0xf]
        %v4582 = vld [vmem:[#allocation2 + $0x50] sm:$0xf]
        %v4583 = vld [vmem:[#allocation2 + $0x88] sm:$0xf]
        %v4584 = vld [vmem:[#allocation2 + $0xc0] sm:$0xf]
        %v4585 = vld [vmem:[#allocation2 + $0xf8] sm:$0xf]
        %v4586 = vld [vmem:[#allocation2 + $0x1c] sm:$0xf]
        %v4587 = vld [vmem:[#allocation2 + $0x54] sm:$0xf]
        %v4588 = vld [vmem:[#allocation2 + $0x8c] sm:$0xf]
        %v4589 = vld [vmem:[#allocation2 + $0xc4] sm:$0xf]
        %v4590 = vld [vmem:[#allocation2 + $0xfc] sm:$0xf]
        %v4591 = vld [vmem:[#allocation2 + $0x20] sm:$0xf]
        %v4592 = vld [vmem:[#allocation2 + $0x58] sm:$0xf]
        %v4593 = vld [vmem:[#allocation2 + $0x90] sm:$0xf]
        %v4594 = vld [vmem:[#allocation2 + $0xc8] sm:$0xf]
        %v4595 = vld [vmem:[#allocation2 + $0x100] sm:$0xf]
        %v4596 = vld [vmem:[#allocation2 + $0x24] sm:$0xf]
        %v4597 = vld [vmem:[#allocation2 + $0x5c] sm:$0xf]
        %v4598 = vld [vmem:[#allocation2 + $0x94] sm:$0xf]
        %v4599 = vld [vmem:[#allocation2 + $0xcc] sm:$0xf]
        %v4600 = vld [vmem:[#allocation2 + $0x104] sm:$0xf]
        %v4601 = vld [vmem:[#allocation2 + $0x28] sm:$0xf]
        %v4602 = vld [vmem:[#allocation2 + $0x60] sm:$0xf]
        %v4603 = vld [vmem:[#allocation2 + $0x98] sm:$0xf]
        %v4604 = vld [vmem:[#allocation2 + $0xd0] sm:$0xf]
        %v4605 = vld [vmem:[#allocation2 + $0x108] sm:$0xf]
        %v4611 = vunpack.c.l.b16 %v4566
        %v4612 = vunpack.c.l.b16 %v4567
        %v4613 = vunpack.c.l.b16 %v4568
        %v4614 = vunpack.c.l.b16 %v4569
        %v4615 = vunpack.c.l.b16 %v4570
        %v4616 = vpack.c.b16 %v4612, %v4611
        %v4617 = vpack.c.b16 %v4614, %v4613
        %v4618 = vpack.c.b16 %v4615, %v4615
        %v4624 = vunpack.c.l.b16 %v4571
        %v4625 = vunpack.c.l.b16 %v4572
        %v4626 = vunpack.c.l.b16 %v4573
        %v4627 = vunpack.c.l.b16 %v4574
        %v4628 = vunpack.c.l.b16 %v4575
        %v4629 = vpack.c.b16 %v4625, %v4624
        %v4630 = vpack.c.b16 %v4627, %v4626
        %v4631 = vpack.c.b16 %v4628, %v4628
        %4632 = vrot.lane.b32.xlu0 %v4629, 8
        %v4633 = vpop.permute.xlu0 %4632
        %4634 = vrot.lane.b32.xlu0 %v4630, 8
        %v4635 = vpop.permute.xlu0 %4634
        %4636 = vrot.lane.b32.xlu0 %v4631, 8
        %v4637 = vpop.permute.xlu0 %4636
        %v4643 = vunpack.c.l.b16 %v4576
        %v4644 = vunpack.c.l.b16 %v4577
        %v4645 = vunpack.c.l.b16 %v4578
        %v4646 = vunpack.c.l.b16 %v4579
        %v4647 = vunpack.c.l.b16 %v4580
        %v4648 = vpack.c.b16 %v4644, %v4643
        %v4649 = vpack.c.b16 %v4646, %v4645
        %v4650 = vpack.c.b16 %v4647, %v4647
        %4651 = vrot.lane.b32.xlu0 %v4648, 16
        %v4652 = vpop.permute.xlu0 %4651
        %4653 = vrot.lane.b32.xlu0 %v4649, 16
        %v4654 = vpop.permute.xlu0 %4653
        %4655 = vrot.lane.b32.xlu0 %v4650, 16
        %v4656 = vpop.permute.xlu0 %4655
        %v4662 = vunpack.c.l.b16 %v4581
        %v4663 = vunpack.c.l.b16 %v4582
        %v4664 = vunpack.c.l.b16 %v4583
        %v4665 = vunpack.c.l.b16 %v4584
        %v4666 = vunpack.c.l.b16 %v4585
        %v4667 = vpack.c.b16 %v4663, %v4662
        %v4668 = vpack.c.b16 %v4665, %v4664
        %v4669 = vpack.c.b16 %v4666, %v4666
        %4670 = vrot.lane.b32.xlu0 %v4667, 24
        %v4671 = vpop.permute.xlu0 %4670
        %4672 = vrot.lane.b32.xlu0 %v4668, 24
        %v4673 = vpop.permute.xlu0 %4672
        %4674 = vrot.lane.b32.xlu0 %v4669, 24
        %v4675 = vpop.permute.xlu0 %4674
        %v4681 = vunpack.c.l.b16 %v4586
        %v4682 = vunpack.c.l.b16 %v4587
        %v4683 = vunpack.c.l.b16 %v4588
        %v4684 = vunpack.c.l.b16 %v4589
        %v4685 = vunpack.c.l.b16 %v4590
        %v4686 = vpack.c.b16 %v4682, %v4681
        %v4687 = vpack.c.b16 %v4684, %v4683
        %v4688 = vpack.c.b16 %v4685, %v4685
        %4689 = vrot.lane.b32.xlu0 %v4686, 32
        %v4690 = vpop.permute.xlu0 %4689
        %4691 = vrot.lane.b32.xlu0 %v4687, 32
        %v4692 = vpop.permute.xlu0 %4691
        %4693 = vrot.lane.b32.xlu0 %v4688, 32
        %v4694 = vpop.permute.xlu0 %4693
        %v4700 = vunpack.c.l.b16 %v4591
        %v4701 = vunpack.c.l.b16 %v4592
        %v4702 = vunpack.c.l.b16 %v4593
        %v4703 = vunpack.c.l.b16 %v4594
        %v4704 = vunpack.c.l.b16 %v4595
        %v4705 = vpack.c.b16 %v4701, %v4700
        %v4706 = vpack.c.b16 %v4703, %v4702
        %v4707 = vpack.c.b16 %v4704, %v4704
        %4708 = vrot.lane.b32.xlu0 %v4705, 40
        %v4709 = vpop.permute.xlu0 %4708
        %4710 = vrot.lane.b32.xlu0 %v4706, 40
        %v4711 = vpop.permute.xlu0 %4710
        %4712 = vrot.lane.b32.xlu0 %v4707, 40
        %v4713 = vpop.permute.xlu0 %4712
        %v4719 = vunpack.c.l.b16 %v4596
        %v4720 = vunpack.c.l.b16 %v4597
        %v4721 = vunpack.c.l.b16 %v4598
        %v4722 = vunpack.c.l.b16 %v4599
        %v4723 = vunpack.c.l.b16 %v4600
        %v4724 = vpack.c.b16 %v4720, %v4719
        %v4725 = vpack.c.b16 %v4722, %v4721
        %v4726 = vpack.c.b16 %v4723, %v4723
        %4727 = vrot.lane.b32.xlu0 %v4724, 48
        %v4728 = vpop.permute.xlu0 %4727
        %4729 = vrot.lane.b32.xlu0 %v4725, 48
        %v4730 = vpop.permute.xlu0 %4729
        %4731 = vrot.lane.b32.xlu0 %v4726, 48
        %v4732 = vpop.permute.xlu0 %4731
        %v4738 = vunpack.c.l.b16 %v4601
        %v4739 = vunpack.c.l.b16 %v4602
        %v4740 = vunpack.c.l.b16 %v4603
        %v4741 = vunpack.c.l.b16 %v4604
        %v4742 = vunpack.c.l.b16 %v4605
        %v4743 = vpack.c.b16 %v4739, %v4738
        %v4744 = vpack.c.b16 %v4741, %v4740
        %v4745 = vpack.c.b16 %v4742, %v4742
        %4746 = vrot.lane.b32.xlu0 %v4743, 56
        %v4747 = vpop.permute.xlu0 %4746
        %4748 = vrot.lane.b32.xlu0 %v4744, 56
        %v4749 = vpop.permute.xlu0 %4748
        %4750 = vrot.lane.b32.xlu0 %v4745, 56
        %v4751 = vpop.permute.xlu0 %4750
        %vm4752 = vcmask 64512
        %v4755 = vsel %vm4752, %v4616, %v4633
        %v4758 = vsel %vm4752, %v4617, %v4635
        %v4761 = vsel %vm4752, %v4618, %v4637
        %v4763 = vsel %vm1082, %v4755, %v4652
        %v4765 = vsel %vm1082, %v4758, %v4654
        %v4767 = vsel %vm1082, %v4761, %v4656
        %vm4768 = vcmask 195584
        %v4770 = vsel %vm4768, %v4763, %v4671
        %v4772 = vsel %vm4768, %v4765, %v4673
        %v4774 = vsel %vm4768, %v4767, %v4675
        %v4776 = vsel %vm4083, %v4770, %v4690
        %v4778 = vsel %vm4083, %v4772, %v4692
        %v4780 = vsel %vm4083, %v4774, %v4694
        %vm4781 = vcmask 326656
        %v4783 = vsel %vm4781, %v4776, %v4709
        %v4785 = vsel %vm4781, %v4778, %v4711
        %v4787 = vsel %vm4781, %v4780, %v4713
        %vm4788 = vcmask 392192
        %v4790 = vsel %vm4788, %v4783, %v4728
        %v4792 = vsel %vm4788, %v4785, %v4730
        %v4794 = vsel %vm4788, %v4787, %v4732
        %vm4795 = vcmask 457728
        %v4797 = vsel %vm4795, %v4790, %v4747
        %v4800 = vsel %vm4795, %v4792, %v4749
        %v4803 = vsel %vm4795, %v4794, %v4751
        %4805 = vset.pattern.permute.xlu0 0
        %4806 = vperm.xlu0 %4805, %v4564
        %v4807 = vpop.permute.xlu0 %4806
        %4810 = vset.pattern.permute.xlu0 0
        %4811 = vperm.xlu0 %4810, %v4565
        %v4812 = vpop.permute.xlu0 %4811
        %v4816 = vunpack.c.l.b16 %v4562
        %v4817 = vunpack.c.l.b16 %v4563
        %v4818 = vpack.c.b16 %v4817, %v4816
        %v4820 = vsel %vm4781, %v4818, 0
        %v4822 = vsel %vm1970, %v4803, 0
        %4824 = vmatprep.subr.bf16.mxu0 0
        %4825 = vmatpush1.bf16.msra.mxu0 0
        %4826 = vmatprep.subr.bf16.mxu0 0
        %4827 = vmatpush1.bf16.msra.mxu0 0
        %4828 = vmatprep.subr.bf16.mxu0 0
        %4829 = vmatpush1.bf16.msra.mxu0 0
        %4830 = vmatprep.subr.bf16.mxu0 0
        %4831 = vmatpush1.bf16.msra.mxu0 0
        %4832 = vmatprep.subr.bf16.mxu0 0
        %4833 = vmatpush1.bf16.msra.mxu0 0
        %4834 = vmatprep.subr.bf16.mxu0 0
        %4835 = vmatpush1.bf16.msra.mxu0 %v4822
        %4836 = vmatprep.subr.bf16.mxu0 0
        %4837 = vmatpush1.bf16.msra.mxu0 %v4800
        %4838 = vmatprep.subr.bf16.mxu0 0
        %4839 = vmatpush1.bf16.msra.mxu0 %v4797
        %4840 = vmatprep.subr.bf16.mxu0 0
        %4841 = vmatpush2.bf16.msra.mxu0 0
        %4842 = vmatprep.subr.bf16.mxu0 0
        %4843 = vmatpush2.bf16.msra.mxu0 0
        %4844 = vmatprep.subr.bf16.mxu0 0
        %4845 = vmatpush2.bf16.msra.mxu0 0
        %4846 = vmatprep.subr.bf16.mxu0 0
        %4847 = vmatpush2.bf16.msra.mxu0 0
        %4848 = vmatprep.subr.bf16.mxu0 0
        %4849 = vmatpush2.bf16.msra.mxu0 0
        %4850 = vmatprep.subr.bf16.mxu0 0
        %4851 = vmatpush2.bf16.msra.mxu0 0
        %4852 = vmatprep.subr.bf16.mxu0 0
        %4853 = vmatpush2.bf16.msra.mxu0 0
        %4854 = vmatprep.subr.bf16.mxu0 0
        %4855 = vmatpush2.bf16.msra.mxu0 0
        %4856 = vmatprep.mubr.bf16.mxu0 0
        %4857 = vmatmul.mubr.bf16.gmra.mxu0 %v4820
        %v4858 = vpop.f32.mrf.mxu0
        %v4859 = vadd.f32 %v4807, %v4858
        %v4860 = vpop.f32.mrf.mxu0
        %v4861 = vpop.f32.mrf.mxu0
        %v4862 = vadd.f32 %v4812, %v4861
        %v4863 = vpop.f32.mrf.mxu0
        %4864 = vdwg.mxu0
        %v4865 = vadd.f32 %v4859, %v414
        %v4866 = vadd.f32 %v4862, %v415
        %vm4867 = vcmask 523264
        %4868 = vst.msk [vmem:[%s390] sm:$0xff] %vm4867, %v4865
        %4869 = vst.msk [vmem:[%s390 + $0x8] sm:$0xff] %vm4867, %v4866
        %s4870 = sand.u32 %s249, 1
        %s4871 = scalar_lea.sflag [#allocation5], %s4870
        %s4872 = sand.u32 %s249, 1
        %s4873 = smul.addr %s4872, 16
        %s4874 = scalar_lea.vmem [#allocation9], %s4873
        // Predicated region
        $region73: #{tpu_custom_call.1} parent=59 // pred_check
          %p4875 = pneg %p259
        $region74: #{tpu_custom_call.1} parent=59 // pred_check_branch
          %4877 = sbr.rel (%p4875) target = $region76
        $region75: #{tpu_custom_call.1} parent=59 // pred_region
          %s4879 = ssub.s32 256, 256
          %4880 = vsyncadd %s4871, %s4879
          %s4881 = smul.addr %s26, 2
          %s4882 = smul.addr %s4881, 128
          %s4883 = scalar_lea.hbm %s10, %s4882
          %s4884 = sshll.u32 %s4874, 4
          %s4885 = int_to_ptr.vmem [resolvable:$true] %s4884
          %4890 = dma.vmem_to_hbm [thread:$0]  %s4885, 256, %s4883, %s4871, 128, 128, 8
        $region76: #{tpu_custom_call.1} parent=59 // pred_fallthru
          _
      $region60: #{tpu_custom_call.1} parent=5 // pred_fallthru
        _
      %p4891 = scmp.le.s32.totalorder 2, %s21
      // Predicated region
      $region77: #{tpu_custom_call.1} parent=5 // pred_check
        %p4892 = pneg %p4891
      $region78: #{tpu_custom_call.1} parent=5 // pred_check_branch
        %4894 = sbr.rel (%p4892) target = $region80
      $region79: #{tpu_custom_call.1} parent=5 // pred_region
        %s4895 = ssub.s32 %s21, 2
        // Predicated region
        $region81: #{tpu_custom_call.1} parent=79 // pred_check
          %p4896 = pneg %p265
        $region82: #{tpu_custom_call.1} parent=79 // pred_check_branch
          %4898 = sbr.rel (%p4896) target = $region84
        $region83: #{tpu_custom_call.1} parent=79 // pred_region
          %s4899 = sand.u32 %s250, 1
          %s4900 = scalar_lea.sflag [#allocation5], %s4899
          %s4901 = sand.u32 %s250, 1
          %s4902 = smul.addr %s4901, 16
          %s4903 = scalar_lea.vmem [#allocation9], %s4902
          %4904 = dma.done %s4900, 256
        $region84: #{tpu_custom_call.1} parent=79 // pred_fallthru
          _
      $region80: #{tpu_custom_call.1} parent=5 // pred_fallthru
        _
    $region6: #{tpu_custom_call.1} parent=1 // loop_footer
      %s25 = sadd.s32 1, %s21
    $region7: #{tpu_custom_call.1} parent=1 // loop_footer_branch
      %20 = sbr.rel target = $region3
    $region8: #{tpu_custom_call.1} parent=1 // loop_exit
      _
    %4905 = vsyncpa [#allocation4], 1
    %s4906 = scalar_lea.sflag [#allocation4], 1
    %4907 = vsyncpa %s4906, 1
    %4908 = vsyncpa [#allocation7], 1
    %4909 = vsyncpa [#allocation5], 1
    %s4910 = scalar_lea.sflag [#allocation5], 1
    %4911 = vsyncpa %s4910, 1

</llo_original>
